<compile_context>
chip_gen: v7x
topology: tpu7x:2x2x1
jax: 0.10.0
libtpu: 0.0.40
codegen_flags: <defaults>
</compile_context>

<pallas_src>
import functools

import jax
import jax.numpy as jnp
from jax.experimental import pallas as pl
from jax.experimental.pallas import tpu as pltpu  # noqa: F401  (kept for parity / future tuning)

LN_EPS = 1e-5  # PyTorch nn.LayerNorm default


def _ln_silu(y, g, z):
    """SiLU(LayerNorm(y)) with one-pass mean/var (E[y^2] - E[y]^2, eps-guarded)."""
    inv_n = 1.0 / y.shape[-1]
    s1 = jnp.sum(y, axis=-1, keepdims=True)          # two independent XLU reduces
    s2 = jnp.sum(y * y, axis=-1, keepdims=True)
    mu = s1 * inv_n
    var = s2 * inv_n - mu * mu
    yn = (y - mu) * jax.lax.rsqrt(var + LN_EPS) * g + z
    return yn * jax.nn.sigmoid(yn)


def _fused_kernel(num_layers,
                  x_ref,
                  ew_ref, eb_ref, eg_ref, ez_ref,      # embed  (stacked [2, ...], f32)
                  lw_ref, lb_ref, lg_ref, lz_ref,      # layers (stacked [2, L, ...])
                  hw_ref, hb_ref,                      # heads  (stacked [2, ...])
                  out_ref):                            # [2, B, output_dim]
    x = x_ref[...]                                     # [B, input_dim] f32

    # --- embed (f32 weights: tiny matmul, avoids sub-min-tile bf16 LHS) -----
    def embed(br):
        y = jnp.dot(x, ew_ref[br], preferred_element_type=jnp.float32) + eb_ref[br]
        return _ln_silu(y, eg_ref[br], ez_ref[br])

    sc_a = embed(0)                                    # actor  skip connection
    sc_c = embed(1)                                    # critic skip connection

    # Hoist small per-layer [2, L, H] params once (avoid repeated tiny loads).
    lb = lb_ref[...]
    lg = lg_ref[...]
    lz = lz_ref[...]

    def layer(h, br, i):
        w = lw_ref[br, i]                              # [H, H] bf16
        y = jnp.dot(h.astype(w.dtype), w,
                    preferred_element_type=jnp.float32) + lb[br, i:i + 1, :]
        return _ln_silu(y, lg[br, i:i + 1, :], lz[br, i:i + 1, :])

    h_a, h_c = sc_a, sc_c
    # num_layers is a static Python int -> fully unrolled; both branch chains
    # live in one basic block so the scheduler overlaps matmul / LN / SiLU
    # across branches.
    for i in range(num_layers):
        h_a = h_a + layer(h_a, 0, i)
        h_c = h_c + layer(h_c, 1, i)
    h_a = h_a + sc_a
    h_c = h_c + sc_c

    # --- heads (lane-dense [H, output_dim]; value head is zero-padded) ------
    out_ref[0] = (jnp.dot(h_a.astype(hw_ref.dtype), hw_ref[0],
                          preferred_element_type=jnp.float32)
                  + hb_ref[0]).astype(out_ref.dtype)
    out_ref[1] = (jnp.dot(h_c.astype(hw_ref.dtype), hw_ref[1],
                          preferred_element_type=jnp.float32)
                  + hb_ref[1]).astype(out_ref.dtype)


def separated_actor_critic_forward(x, params, *, num_layers):
    """x: [B, input_dim] f32. Returns (logits [B, output_dim], value [B, 1])."""
    B, _ = x.shape
    output_dim = params["head_w"].shape[-1]

    # Single grid step, whole arrays resident in VMEM (total < 1 MiB at these
    # sizes); Pallas default specs DMA everything in once.
    out = pl.pallas_call(
        functools.partial(_fused_kernel, num_layers),
        out_shape=jax.ShapeDtypeStruct((2, B, output_dim), jnp.float32),
    )(x,
      params["emb_w"], params["emb_b"], params["emb_g"], params["emb_z"],
      params["lyr_w"], params["lyr_b"], params["lyr_g"], params["lyr_z"],
      params["head_w"], params["head_b"])

    logits = out[0]                  # actor branch, lane-dense
    value = out[1, :, :1]            # critic branch, col 0 of the padded head
    return logits, value


def init_params(key, input_dim, hidden_dim, output_dim, num_layers):
    """Deterministic synthetic parameters, branch-stacked along a leading [2] axis.

    Branch 0 = actor (logits head), branch 1 = critic (value head, zero-padded
    to output_dim columns).  Embed weights are f32; layer/head weights bf16.
    """
    ks = jax.random.split(key, 12)

    def lin_w(k, fan_in, fan_out):
        bound = 1.0 / jnp.sqrt(fan_in)
        return jax.random.uniform(k, (fan_in, fan_out), jnp.float32, -bound, bound)

    p = {}
    # Embeddings (f32: avoids sub-min-tile bf16 LHS when input_dim < 128).
    p["emb_w"] = jnp.stack([lin_w(ks[0], input_dim, hidden_dim),
                            lin_w(ks[1], input_dim, hidden_dim)])
    p["emb_b"] = 0.1 * jax.random.normal(ks[2], (2, 1, hidden_dim), jnp.float32)
    p["emb_g"] = 1.0 + 0.1 * jax.random.normal(ks[3], (2, 1, hidden_dim), jnp.float32)
    p["emb_z"] = 0.1 * jax.random.normal(ks[4], (2, 1, hidden_dim), jnp.float32)

    # Residual layers (bf16 weights, MXU-native).
    lk = jax.random.split(ks[5], 2 * num_layers)
    lw = [lin_w(lk[i], hidden_dim, hidden_dim) for i in range(2 * num_layers)]
    p["lyr_w"] = (jnp.stack(lw)
                  .reshape(2, num_layers, hidden_dim, hidden_dim)
                  .astype(jnp.bfloat16))
    p["lyr_b"] = 0.1 * jax.random.normal(ks[6], (2, num_layers, hidden_dim), jnp.float32)
    p["lyr_g"] = 1.0 + 0.1 * jax.random.normal(ks[7], (2, num_layers, hidden_dim), jnp.float32)
    p["lyr_z"] = 0.1 * jax.random.normal(ks[8], (2, num_layers, hidden_dim), jnp.float32)

    # Heads: logits [H, output_dim]; value [H, 1] zero-padded to [H, output_dim].
    logits_w = lin_w(ks[9], hidden_dim, output_dim)
    value_w = lin_w(ks[10], hidden_dim, 1)
    value_w_pad = jnp.zeros((hidden_dim, output_dim), jnp.float32).at[:, :1].set(value_w)
    p["head_w"] = jnp.stack([logits_w, value_w_pad]).astype(jnp.bfloat16)

    logits_b = 0.1 * jax.random.normal(ks[11], (1, output_dim), jnp.float32)
    value_b = jnp.zeros((1, output_dim), jnp.float32).at[0, 0].set(0.05)
    p["head_b"] = jnp.stack([logits_b, value_b])
    return p


def reference_forward(x, p, *, num_layers):
    """Pure-JAX reference matching the PyTorch module (eval mode), two-pass
    LayerNorm, same weight dtypes as fed to the kernel."""
    def block(h, w, b, g, z):
        y = jnp.dot(h.astype(w.dtype), w, preferred_element_type=jnp.float32) + b
        mu = jnp.mean(y, -1, keepdims=True)
        var = jnp.mean((y - mu) ** 2, -1, keepdims=True)
        yn = (y - mu) * jax.lax.rsqrt(var + LN_EPS) * g + z
        return yn * jax.nn.sigmoid(yn)

    outs = []
    for br in range(2):
        sc = block(x, p["emb_w"][br], p["emb_b"][br], p["emb_g"][br], p["emb_z"][br])
        h = sc
        for i in range(num_layers):
            h = h + block(h, p["lyr_w"][br, i], p["lyr_b"][br, i:i + 1],
                          p["lyr_g"][br, i:i + 1], p["lyr_z"][br, i:i + 1])
        h = h + sc
        outs.append(jnp.dot(h.astype(p["head_w"].dtype), p["head_w"][br],
                            preferred_element_type=jnp.float32) + p["head_b"][br])
    return outs[0], outs[1][:, :1]


if __name__ == "__main__":
    # B=128 per the perf review: many env states per call fills the MXU rows;
    # the model itself is small (H=128, 3 residual layers per branch).
    B, INPUT_DIM, HIDDEN_DIM, OUTPUT_DIM, LAYERS = 128, 32, 128, 128, 3

    key = jax.random.PRNGKey(0)
    kx, kp = jax.random.split(key)
    x = jax.random.normal(kx, (B, INPUT_DIM), jnp.float32)
    params = init_params(kp, INPUT_DIM, HIDDEN_DIM, OUTPUT_DIM, LAYERS)

    logits, value = separated_actor_critic_forward(x, params, num_layers=LAYERS)
    jax.block_until_ready((logits, value))

    ref_logits, ref_value = reference_forward(x, params, num_layers=LAYERS)
    assert logits.shape == (B, OUTPUT_DIM) and value.shape == (B, 1)
    # Same dtype recipe on both paths; residual differences are f32 elementwise
    # rounding (one-pass vs two-pass LayerNorm).
    assert jnp.allclose(logits, ref_logits, atol=2e-2, rtol=2e-2)
    assert jnp.allclose(value, ref_value, atol=2e-2, rtol=2e-2)

    print("KERNEL_OK")
</pallas_src>

<mosaic_0001>
module attributes {stable_mosaic.version = 11 : i64} {
  func.func @_fused_kernel(%arg0: memref<128x32xf32, #tpu.memory_space<vmem>>, %arg1: memref<2x32x128xf32, #tpu.memory_space<vmem>>, %arg2: memref<2x1x128xf32, #tpu.memory_space<vmem>>, %arg3: memref<2x1x128xf32, #tpu.memory_space<vmem>>, %arg4: memref<2x1x128xf32, #tpu.memory_space<vmem>>, %arg5: memref<2x3x128x128xbf16, #tpu.memory_space<vmem>>, %arg6: memref<2x3x128xf32, #tpu.memory_space<vmem>>, %arg7: memref<2x3x128xf32, #tpu.memory_space<vmem>>, %arg8: memref<2x3x128xf32, #tpu.memory_space<vmem>>, %arg9: memref<2x128x128xbf16, #tpu.memory_space<vmem>>, %arg10: memref<2x1x128xf32, #tpu.memory_space<vmem>>, %arg11: memref<2x128x128xf32, #tpu.memory_space<vmem>>) attributes {dimension_semantics = [], scalar_prefetch = 0 : i64, scratch_operands = 0 : i64, tpu.core_type = #tpu.core_type<tc>} {
    %c0 = arith.constant 0 : index
    %c0_0 = arith.constant 0 : index
    %0 = vector.load %arg0[%c0, %c0_0] : memref<128x32xf32, #tpu.memory_space<vmem>>, vector<128x32xf32>
    %c0_1 = arith.constant 0 : index
    %c0_2 = arith.constant 0 : index
    %c0_3 = arith.constant 0 : index
    %1 = vector.load %arg1[%c0_1, %c0_2, %c0_3] : memref<2x32x128xf32, #tpu.memory_space<vmem>>, vector<1x32x128xf32>
    %2 = vector.shape_cast %1 : vector<1x32x128xf32> to vector<32x128xf32>
    %cst = arith.constant dense<0.000000e+00> : vector<128x128xf32>
    %3 = tpu.matmul %0, %2, %cst {dimension_numbers = #tpu.dot_dimension_numbers<[1], [0], [0], [1], [0, 0, 1, 1], [], []>} : vector<128x32xf32>, vector<32x128xf32>, vector<128x128xf32> -> vector<128x128xf32>
    %c0_4 = arith.constant 0 : index
    %c0_5 = arith.constant 0 : index
    %c0_6 = arith.constant 0 : index
    %4 = vector.load %arg2[%c0_4, %c0_5, %c0_6] : memref<2x1x128xf32, #tpu.memory_space<vmem>>, vector<1x1x128xf32>
    %5 = vector.shape_cast %4 : vector<1x1x128xf32> to vector<1x128xf32>
    %6 = vector.broadcast %5 : vector<1x128xf32> to vector<128x128xf32>
    %7 = arith.addf %3, %6 : vector<128x128xf32>
    %c0_7 = arith.constant 0 : index
    %c0_8 = arith.constant 0 : index
    %c0_9 = arith.constant 0 : index
    %8 = vector.load %arg3[%c0_7, %c0_8, %c0_9] : memref<2x1x128xf32, #tpu.memory_space<vmem>>, vector<1x1x128xf32>
    %9 = vector.shape_cast %8 : vector<1x1x128xf32> to vector<1x128xf32>
    %c0_10 = arith.constant 0 : index
    %c0_11 = arith.constant 0 : index
    %c0_12 = arith.constant 0 : index
    %10 = vector.load %arg4[%c0_10, %c0_11, %c0_12] : memref<2x1x128xf32, #tpu.memory_space<vmem>>, vector<1x1x128xf32>
    %11 = vector.shape_cast %10 : vector<1x1x128xf32> to vector<1x128xf32>
    %cst_13 = arith.constant dense<0.000000e+00> : vector<128xf32>
    %12 = vector.multi_reduction <add>, %7, %cst_13 [1] : vector<128x128xf32> to vector<128xf32>
    %13 = vector.shape_cast %12 : vector<128xf32> to vector<128x1xf32>
    %14 = arith.mulf %7, %7 : vector<128x128xf32>
    %cst_14 = arith.constant dense<0.000000e+00> : vector<128xf32>
    %15 = vector.multi_reduction <add>, %14, %cst_14 [1] : vector<128x128xf32> to vector<128xf32>
    %16 = vector.shape_cast %15 : vector<128xf32> to vector<128x1xf32>
    %cst_15 = arith.constant 7.812500e-03 : f32
    %17 = vector.broadcast %cst_15 : f32 to vector<128x1xf32>
    %18 = arith.mulf %13, %17 : vector<128x1xf32>
    %cst_16 = arith.constant 7.812500e-03 : f32
    %19 = vector.broadcast %cst_16 : f32 to vector<128x1xf32>
    %20 = arith.mulf %16, %19 : vector<128x1xf32>
    %21 = arith.mulf %18, %18 : vector<128x1xf32>
    %22 = arith.subf %20, %21 : vector<128x1xf32>
    %23 = vector.broadcast %18 : vector<128x1xf32> to vector<128x128xf32>
    %24 = arith.subf %7, %23 : vector<128x128xf32>
    %cst_17 = arith.constant 9.99999974E-6 : f32
    %25 = vector.broadcast %cst_17 : f32 to vector<128x1xf32>
    %26 = arith.addf %22, %25 : vector<128x1xf32>
    %27 = math.rsqrt %26 : vector<128x1xf32>
    %28 = vector.broadcast %27 : vector<128x1xf32> to vector<128x128xf32>
    %29 = arith.mulf %24, %28 : vector<128x128xf32>
    %30 = vector.broadcast %9 : vector<1x128xf32> to vector<128x128xf32>
    %31 = arith.mulf %29, %30 : vector<128x128xf32>
    %32 = vector.broadcast %11 : vector<1x128xf32> to vector<128x128xf32>
    %33 = arith.addf %31, %32 : vector<128x128xf32>
    %34 = arith.negf %33 : vector<128x128xf32>
    %35 = math.exp %34 : vector<128x128xf32>
    %cst_18 = arith.constant 1.000000e+00 : f32
    %36 = vector.broadcast %cst_18 : f32 to vector<128x128xf32>
    %37 = arith.addf %36, %35 : vector<128x128xf32>
    %38 = arith.divf %36, %37 : vector<128x128xf32>
    %39 = arith.mulf %33, %38 : vector<128x128xf32>
    %c1 = arith.constant 1 : index
    %c0_19 = arith.constant 0 : index
    %c0_20 = arith.constant 0 : index
    %40 = vector.load %arg1[%c1, %c0_19, %c0_20] : memref<2x32x128xf32, #tpu.memory_space<vmem>>, vector<1x32x128xf32>
    %41 = vector.shape_cast %40 : vector<1x32x128xf32> to vector<32x128xf32>
    %cst_21 = arith.constant dense<0.000000e+00> : vector<128x128xf32>
    %42 = tpu.matmul %0, %41, %cst_21 {dimension_numbers = #tpu.dot_dimension_numbers<[1], [0], [0], [1], [0, 0, 1, 1], [], []>} : vector<128x32xf32>, vector<32x128xf32>, vector<128x128xf32> -> vector<128x128xf32>
    %c1_22 = arith.constant 1 : index
    %c0_23 = arith.constant 0 : index
    %c0_24 = arith.constant 0 : index
    %43 = vector.load %arg2[%c1_22, %c0_23, %c0_24] : memref<2x1x128xf32, #tpu.memory_space<vmem>>, vector<1x1x128xf32>
    %44 = vector.shape_cast %43 : vector<1x1x128xf32> to vector<1x128xf32>
    %45 = vector.broadcast %44 : vector<1x128xf32> to vector<128x128xf32>
    %46 = arith.addf %42, %45 : vector<128x128xf32>
    %c1_25 = arith.constant 1 : index
    %c0_26 = arith.constant 0 : index
    %c0_27 = arith.constant 0 : index
    %47 = vector.load %arg3[%c1_25, %c0_26, %c0_27] : memref<2x1x128xf32, #tpu.memory_space<vmem>>, vector<1x1x128xf32>
    %48 = vector.shape_cast %47 : vector<1x1x128xf32> to vector<1x128xf32>
    %c1_28 = arith.constant 1 : index
    %c0_29 = arith.constant 0 : index
    %c0_30 = arith.constant 0 : index
    %49 = vector.load %arg4[%c1_28, %c0_29, %c0_30] : memref<2x1x128xf32, #tpu.memory_space<vmem>>, vector<1x1x128xf32>
    %50 = vector.shape_cast %49 : vector<1x1x128xf32> to vector<1x128xf32>
    %cst_31 = arith.constant dense<0.000000e+00> : vector<128xf32>
    %51 = vector.multi_reduction <add>, %46, %cst_31 [1] : vector<128x128xf32> to vector<128xf32>
    %52 = vector.shape_cast %51 : vector<128xf32> to vector<128x1xf32>
    %53 = arith.mulf %46, %46 : vector<128x128xf32>
    %cst_32 = arith.constant dense<0.000000e+00> : vector<128xf32>
    %54 = vector.multi_reduction <add>, %53, %cst_32 [1] : vector<128x128xf32> to vector<128xf32>
    %55 = vector.shape_cast %54 : vector<128xf32> to vector<128x1xf32>
    %cst_33 = arith.constant 7.812500e-03 : f32
    %56 = vector.broadcast %cst_33 : f32 to vector<128x1xf32>
    %57 = arith.mulf %52, %56 : vector<128x1xf32>
    %cst_34 = arith.constant 7.812500e-03 : f32
    %58 = vector.broadcast %cst_34 : f32 to vector<128x1xf32>
    %59 = arith.mulf %55, %58 : vector<128x1xf32>
    %60 = arith.mulf %57, %57 : vector<128x1xf32>
    %61 = arith.subf %59, %60 : vector<128x1xf32>
    %62 = vector.broadcast %57 : vector<128x1xf32> to vector<128x128xf32>
    %63 = arith.subf %46, %62 : vector<128x128xf32>
    %cst_35 = arith.constant 9.99999974E-6 : f32
    %64 = vector.broadcast %cst_35 : f32 to vector<128x1xf32>
    %65 = arith.addf %61, %64 : vector<128x1xf32>
    %66 = math.rsqrt %65 : vector<128x1xf32>
    %67 = vector.broadcast %66 : vector<128x1xf32> to vector<128x128xf32>
    %68 = arith.mulf %63, %67 : vector<128x128xf32>
    %69 = vector.broadcast %48 : vector<1x128xf32> to vector<128x128xf32>
    %70 = arith.mulf %68, %69 : vector<128x128xf32>
    %71 = vector.broadcast %50 : vector<1x128xf32> to vector<128x128xf32>
    %72 = arith.addf %70, %71 : vector<128x128xf32>
    %73 = arith.negf %72 : vector<128x128xf32>
    %74 = math.exp %73 : vector<128x128xf32>
    %cst_36 = arith.constant 1.000000e+00 : f32
    %75 = vector.broadcast %cst_36 : f32 to vector<128x128xf32>
    %76 = arith.addf %75, %74 : vector<128x128xf32>
    %77 = arith.divf %75, %76 : vector<128x128xf32>
    %78 = arith.mulf %72, %77 : vector<128x128xf32>
    %c0_37 = arith.constant 0 : index
    %c0_38 = arith.constant 0 : index
    %c0_39 = arith.constant 0 : index
    %79 = vector.load %arg6[%c0_37, %c0_38, %c0_39] : memref<2x3x128xf32, #tpu.memory_space<vmem>>, vector<2x3x128xf32>
    %c0_40 = arith.constant 0 : index
    %c0_41 = arith.constant 0 : index
    %c0_42 = arith.constant 0 : index
    %80 = vector.load %arg7[%c0_40, %c0_41, %c0_42] : memref<2x3x128xf32, #tpu.memory_space<vmem>>, vector<2x3x128xf32>
    %c0_43 = arith.constant 0 : index
    %c0_44 = arith.constant 0 : index
    %c0_45 = arith.constant 0 : index
    %81 = vector.load %arg8[%c0_43, %c0_44, %c0_45] : memref<2x3x128xf32, #tpu.memory_space<vmem>>, vector<2x3x128xf32>
    %c0_46 = arith.constant 0 : index
    %c0_47 = arith.constant 0 : index
    %c0_48 = arith.constant 0 : index
    %c0_49 = arith.constant 0 : index
    %82 = vector.load %arg5[%c0_46, %c0_47, %c0_48, %c0_49] : memref<2x3x128x128xbf16, #tpu.memory_space<vmem>>, vector<1x1x128x128xbf16>
    %83 = vector.shape_cast %82 : vector<1x1x128x128xbf16> to vector<128x128xbf16>
    %84 = arith.truncf %39 : vector<128x128xf32> to vector<128x128xbf16>
    %cst_50 = arith.constant dense<0.000000e+00> : vector<128x128xf32>
    %85 = tpu.matmul %84, %83, %cst_50 {dimension_numbers = #tpu.dot_dimension_numbers<[1], [0], [0], [1], [0, 0, 1, 1], [], []>} : vector<128x128xbf16>, vector<128x128xbf16>, vector<128x128xf32> -> vector<128x128xf32>
    %86 = vector.extract_strided_slice %79 {offsets = [0, 0, 0], sizes = [1, 1, 128], strides = [1, 1, 1]} : vector<2x3x128xf32> to vector<1x1x128xf32>
    %87 = vector.shape_cast %86 : vector<1x1x128xf32> to vector<1x128xf32>
    %88 = vector.broadcast %87 : vector<1x128xf32> to vector<128x128xf32>
    %89 = arith.addf %85, %88 : vector<128x128xf32>
    %90 = vector.extract_strided_slice %80 {offsets = [0, 0, 0], sizes = [1, 1, 128], strides = [1, 1, 1]} : vector<2x3x128xf32> to vector<1x1x128xf32>
    %91 = vector.shape_cast %90 : vector<1x1x128xf32> to vector<1x128xf32>
    %92 = vector.extract_strided_slice %81 {offsets = [0, 0, 0], sizes = [1, 1, 128], strides = [1, 1, 1]} : vector<2x3x128xf32> to vector<1x1x128xf32>
    %93 = vector.shape_cast %92 : vector<1x1x128xf32> to vector<1x128xf32>
    %cst_51 = arith.constant dense<0.000000e+00> : vector<128xf32>
    %94 = vector.multi_reduction <add>, %89, %cst_51 [1] : vector<128x128xf32> to vector<128xf32>
    %95 = vector.shape_cast %94 : vector<128xf32> to vector<128x1xf32>
    %96 = arith.mulf %89, %89 : vector<128x128xf32>
    %cst_52 = arith.constant dense<0.000000e+00> : vector<128xf32>
    %97 = vector.multi_reduction <add>, %96, %cst_52 [1] : vector<128x128xf32> to vector<128xf32>
    %98 = vector.shape_cast %97 : vector<128xf32> to vector<128x1xf32>
    %cst_53 = arith.constant 7.812500e-03 : f32
    %99 = vector.broadcast %cst_53 : f32 to vector<128x1xf32>
    %100 = arith.mulf %95, %99 : vector<128x1xf32>
    %cst_54 = arith.constant 7.812500e-03 : f32
    %101 = vector.broadcast %cst_54 : f32 to vector<128x1xf32>
    %102 = arith.mulf %98, %101 : vector<128x1xf32>
    %103 = arith.mulf %100, %100 : vector<128x1xf32>
    %104 = arith.subf %102, %103 : vector<128x1xf32>
    %105 = vector.broadcast %100 : vector<128x1xf32> to vector<128x128xf32>
    %106 = arith.subf %89, %105 : vector<128x128xf32>
    %cst_55 = arith.constant 9.99999974E-6 : f32
    %107 = vector.broadcast %cst_55 : f32 to vector<128x1xf32>
    %108 = arith.addf %104, %107 : vector<128x1xf32>
    %109 = math.rsqrt %108 : vector<128x1xf32>
    %110 = vector.broadcast %109 : vector<128x1xf32> to vector<128x128xf32>
    %111 = arith.mulf %106, %110 : vector<128x128xf32>
    %112 = vector.broadcast %91 : vector<1x128xf32> to vector<128x128xf32>
    %113 = arith.mulf %111, %112 : vector<128x128xf32>
    %114 = vector.broadcast %93 : vector<1x128xf32> to vector<128x128xf32>
    %115 = arith.addf %113, %114 : vector<128x128xf32>
    %116 = arith.negf %115 : vector<128x128xf32>
    %117 = math.exp %116 : vector<128x128xf32>
    %cst_56 = arith.constant 1.000000e+00 : f32
    %118 = vector.broadcast %cst_56 : f32 to vector<128x128xf32>
    %119 = arith.addf %118, %117 : vector<128x128xf32>
    %120 = arith.divf %118, %119 : vector<128x128xf32>
    %121 = arith.mulf %115, %120 : vector<128x128xf32>
    %122 = arith.addf %39, %121 : vector<128x128xf32>
    %c1_57 = arith.constant 1 : index
    %c0_58 = arith.constant 0 : index
    %c0_59 = arith.constant 0 : index
    %c0_60 = arith.constant 0 : index
    %123 = vector.load %arg5[%c1_57, %c0_58, %c0_59, %c0_60] : memref<2x3x128x128xbf16, #tpu.memory_space<vmem>>, vector<1x1x128x128xbf16>
    %124 = vector.shape_cast %123 : vector<1x1x128x128xbf16> to vector<128x128xbf16>
    %125 = arith.truncf %78 : vector<128x128xf32> to vector<128x128xbf16>
    %cst_61 = arith.constant dense<0.000000e+00> : vector<128x128xf32>
    %126 = tpu.matmul %125, %124, %cst_61 {dimension_numbers = #tpu.dot_dimension_numbers<[1], [0], [0], [1], [0, 0, 1, 1], [], []>} : vector<128x128xbf16>, vector<128x128xbf16>, vector<128x128xf32> -> vector<128x128xf32>
    %127 = vector.extract_strided_slice %79 {offsets = [1, 0, 0], sizes = [1, 1, 128], strides = [1, 1, 1]} : vector<2x3x128xf32> to vector<1x1x128xf32>
    %128 = vector.shape_cast %127 : vector<1x1x128xf32> to vector<1x128xf32>
    %129 = vector.broadcast %128 : vector<1x128xf32> to vector<128x128xf32>
    %130 = arith.addf %126, %129 : vector<128x128xf32>
    %131 = vector.extract_strided_slice %80 {offsets = [1, 0, 0], sizes = [1, 1, 128], strides = [1, 1, 1]} : vector<2x3x128xf32> to vector<1x1x128xf32>
    %132 = vector.shape_cast %131 : vector<1x1x128xf32> to vector<1x128xf32>
    %133 = vector.extract_strided_slice %81 {offsets = [1, 0, 0], sizes = [1, 1, 128], strides = [1, 1, 1]} : vector<2x3x128xf32> to vector<1x1x128xf32>
    %134 = vector.shape_cast %133 : vector<1x1x128xf32> to vector<1x128xf32>
    %cst_62 = arith.constant dense<0.000000e+00> : vector<128xf32>
    %135 = vector.multi_reduction <add>, %130, %cst_62 [1] : vector<128x128xf32> to vector<128xf32>
    %136 = vector.shape_cast %135 : vector<128xf32> to vector<128x1xf32>
    %137 = arith.mulf %130, %130 : vector<128x128xf32>
    %cst_63 = arith.constant dense<0.000000e+00> : vector<128xf32>
    %138 = vector.multi_reduction <add>, %137, %cst_63 [1] : vector<128x128xf32> to vector<128xf32>
    %139 = vector.shape_cast %138 : vector<128xf32> to vector<128x1xf32>
    %cst_64 = arith.constant 7.812500e-03 : f32
    %140 = vector.broadcast %cst_64 : f32 to vector<128x1xf32>
    %141 = arith.mulf %136, %140 : vector<128x1xf32>
    %cst_65 = arith.constant 7.812500e-03 : f32
    %142 = vector.broadcast %cst_65 : f32 to vector<128x1xf32>
    %143 = arith.mulf %139, %142 : vector<128x1xf32>
    %144 = arith.mulf %141, %141 : vector<128x1xf32>
    %145 = arith.subf %143, %144 : vector<128x1xf32>
    %146 = vector.broadcast %141 : vector<128x1xf32> to vector<128x128xf32>
    %147 = arith.subf %130, %146 : vector<128x128xf32>
    %cst_66 = arith.constant 9.99999974E-6 : f32
    %148 = vector.broadcast %cst_66 : f32 to vector<128x1xf32>
    %149 = arith.addf %145, %148 : vector<128x1xf32>
    %150 = math.rsqrt %149 : vector<128x1xf32>
    %151 = vector.broadcast %150 : vector<128x1xf32> to vector<128x128xf32>
    %152 = arith.mulf %147, %151 : vector<128x128xf32>
    %153 = vector.broadcast %132 : vector<1x128xf32> to vector<128x128xf32>
    %154 = arith.mulf %152, %153 : vector<128x128xf32>
    %155 = vector.broadcast %134 : vector<1x128xf32> to vector<128x128xf32>
    %156 = arith.addf %154, %155 : vector<128x128xf32>
    %157 = arith.negf %156 : vector<128x128xf32>
    %158 = math.exp %157 : vector<128x128xf32>
    %cst_67 = arith.constant 1.000000e+00 : f32
    %159 = vector.broadcast %cst_67 : f32 to vector<128x128xf32>
    %160 = arith.addf %159, %158 : vector<128x128xf32>
    %161 = arith.divf %159, %160 : vector<128x128xf32>
    %162 = arith.mulf %156, %161 : vector<128x128xf32>
    %163 = arith.addf %78, %162 : vector<128x128xf32>
    %c0_68 = arith.constant 0 : index
    %c1_69 = arith.constant 1 : index
    %c0_70 = arith.constant 0 : index
    %c0_71 = arith.constant 0 : index
    %164 = vector.load %arg5[%c0_68, %c1_69, %c0_70, %c0_71] : memref<2x3x128x128xbf16, #tpu.memory_space<vmem>>, vector<1x1x128x128xbf16>
    %165 = vector.shape_cast %164 : vector<1x1x128x128xbf16> to vector<128x128xbf16>
    %166 = arith.truncf %122 : vector<128x128xf32> to vector<128x128xbf16>
    %cst_72 = arith.constant dense<0.000000e+00> : vector<128x128xf32>
    %167 = tpu.matmul %166, %165, %cst_72 {dimension_numbers = #tpu.dot_dimension_numbers<[1], [0], [0], [1], [0, 0, 1, 1], [], []>} : vector<128x128xbf16>, vector<128x128xbf16>, vector<128x128xf32> -> vector<128x128xf32>
    %168 = vector.extract_strided_slice %79 {offsets = [0, 1, 0], sizes = [1, 1, 128], strides = [1, 1, 1]} : vector<2x3x128xf32> to vector<1x1x128xf32>
    %169 = vector.shape_cast %168 : vector<1x1x128xf32> to vector<1x128xf32>
    %170 = vector.broadcast %169 : vector<1x128xf32> to vector<128x128xf32>
    %171 = arith.addf %167, %170 : vector<128x128xf32>
    %172 = vector.extract_strided_slice %80 {offsets = [0, 1, 0], sizes = [1, 1, 128], strides = [1, 1, 1]} : vector<2x3x128xf32> to vector<1x1x128xf32>
    %173 = vector.shape_cast %172 : vector<1x1x128xf32> to vector<1x128xf32>
    %174 = vector.extract_strided_slice %81 {offsets = [0, 1, 0], sizes = [1, 1, 128], strides = [1, 1, 1]} : vector<2x3x128xf32> to vector<1x1x128xf32>
    %175 = vector.shape_cast %174 : vector<1x1x128xf32> to vector<1x128xf32>
    %cst_73 = arith.constant dense<0.000000e+00> : vector<128xf32>
    %176 = vector.multi_reduction <add>, %171, %cst_73 [1] : vector<128x128xf32> to vector<128xf32>
    %177 = vector.shape_cast %176 : vector<128xf32> to vector<128x1xf32>
    %178 = arith.mulf %171, %171 : vector<128x128xf32>
    %cst_74 = arith.constant dense<0.000000e+00> : vector<128xf32>
    %179 = vector.multi_reduction <add>, %178, %cst_74 [1] : vector<128x128xf32> to vector<128xf32>
    %180 = vector.shape_cast %179 : vector<128xf32> to vector<128x1xf32>
    %cst_75 = arith.constant 7.812500e-03 : f32
    %181 = vector.broadcast %cst_75 : f32 to vector<128x1xf32>
    %182 = arith.mulf %177, %181 : vector<128x1xf32>
    %cst_76 = arith.constant 7.812500e-03 : f32
    %183 = vector.broadcast %cst_76 : f32 to vector<128x1xf32>
    %184 = arith.mulf %180, %183 : vector<128x1xf32>
    %185 = arith.mulf %182, %182 : vector<128x1xf32>
    %186 = arith.subf %184, %185 : vector<128x1xf32>
    %187 = vector.broadcast %182 : vector<128x1xf32> to vector<128x128xf32>
    %188 = arith.subf %171, %187 : vector<128x128xf32>
    %cst_77 = arith.constant 9.99999974E-6 : f32
    %189 = vector.broadcast %cst_77 : f32 to vector<128x1xf32>
    %190 = arith.addf %186, %189 : vector<128x1xf32>
    %191 = math.rsqrt %190 : vector<128x1xf32>
    %192 = vector.broadcast %191 : vector<128x1xf32> to vector<128x128xf32>
    %193 = arith.mulf %188, %192 : vector<128x128xf32>
    %194 = vector.broadcast %173 : vector<1x128xf32> to vector<128x128xf32>
    %195 = arith.mulf %193, %194 : vector<128x128xf32>
    %196 = vector.broadcast %175 : vector<1x128xf32> to vector<128x128xf32>
    %197 = arith.addf %195, %196 : vector<128x128xf32>
    %198 = arith.negf %197 : vector<128x128xf32>
    %199 = math.exp %198 : vector<128x128xf32>
    %cst_78 = arith.constant 1.000000e+00 : f32
    %200 = vector.broadcast %cst_78 : f32 to vector<128x128xf32>
    %201 = arith.addf %200, %199 : vector<128x128xf32>
    %202 = arith.divf %200, %201 : vector<128x128xf32>
    %203 = arith.mulf %197, %202 : vector<128x128xf32>
    %204 = arith.addf %122, %203 : vector<128x128xf32>
    %c1_79 = arith.constant 1 : index
    %c1_80 = arith.constant 1 : index
    %c0_81 = arith.constant 0 : index
    %c0_82 = arith.constant 0 : index
    %205 = vector.load %arg5[%c1_79, %c1_80, %c0_81, %c0_82] : memref<2x3x128x128xbf16, #tpu.memory_space<vmem>>, vector<1x1x128x128xbf16>
    %206 = vector.shape_cast %205 : vector<1x1x128x128xbf16> to vector<128x128xbf16>
    %207 = arith.truncf %163 : vector<128x128xf32> to vector<128x128xbf16>
    %cst_83 = arith.constant dense<0.000000e+00> : vector<128x128xf32>
    %208 = tpu.matmul %207, %206, %cst_83 {dimension_numbers = #tpu.dot_dimension_numbers<[1], [0], [0], [1], [0, 0, 1, 1], [], []>} : vector<128x128xbf16>, vector<128x128xbf16>, vector<128x128xf32> -> vector<128x128xf32>
    %209 = vector.extract_strided_slice %79 {offsets = [1, 1, 0], sizes = [1, 1, 128], strides = [1, 1, 1]} : vector<2x3x128xf32> to vector<1x1x128xf32>
    %210 = vector.shape_cast %209 : vector<1x1x128xf32> to vector<1x128xf32>
    %211 = vector.broadcast %210 : vector<1x128xf32> to vector<128x128xf32>
    %212 = arith.addf %208, %211 : vector<128x128xf32>
    %213 = vector.extract_strided_slice %80 {offsets = [1, 1, 0], sizes = [1, 1, 128], strides = [1, 1, 1]} : vector<2x3x128xf32> to vector<1x1x128xf32>
    %214 = vector.shape_cast %213 : vector<1x1x128xf32> to vector<1x128xf32>
    %215 = vector.extract_strided_slice %81 {offsets = [1, 1, 0], sizes = [1, 1, 128], strides = [1, 1, 1]} : vector<2x3x128xf32> to vector<1x1x128xf32>
    %216 = vector.shape_cast %215 : vector<1x1x128xf32> to vector<1x128xf32>
    %cst_84 = arith.constant dense<0.000000e+00> : vector<128xf32>
    %217 = vector.multi_reduction <add>, %212, %cst_84 [1] : vector<128x128xf32> to vector<128xf32>
    %218 = vector.shape_cast %217 : vector<128xf32> to vector<128x1xf32>
    %219 = arith.mulf %212, %212 : vector<128x128xf32>
    %cst_85 = arith.constant dense<0.000000e+00> : vector<128xf32>
    %220 = vector.multi_reduction <add>, %219, %cst_85 [1] : vector<128x128xf32> to vector<128xf32>
    %221 = vector.shape_cast %220 : vector<128xf32> to vector<128x1xf32>
    %cst_86 = arith.constant 7.812500e-03 : f32
    %222 = vector.broadcast %cst_86 : f32 to vector<128x1xf32>
    %223 = arith.mulf %218, %222 : vector<128x1xf32>
    %cst_87 = arith.constant 7.812500e-03 : f32
    %224 = vector.broadcast %cst_87 : f32 to vector<128x1xf32>
    %225 = arith.mulf %221, %224 : vector<128x1xf32>
    %226 = arith.mulf %223, %223 : vector<128x1xf32>
    %227 = arith.subf %225, %226 : vector<128x1xf32>
    %228 = vector.broadcast %223 : vector<128x1xf32> to vector<128x128xf32>
    %229 = arith.subf %212, %228 : vector<128x128xf32>
    %cst_88 = arith.constant 9.99999974E-6 : f32
    %230 = vector.broadcast %cst_88 : f32 to vector<128x1xf32>
    %231 = arith.addf %227, %230 : vector<128x1xf32>
    %232 = math.rsqrt %231 : vector<128x1xf32>
    %233 = vector.broadcast %232 : vector<128x1xf32> to vector<128x128xf32>
    %234 = arith.mulf %229, %233 : vector<128x128xf32>
    %235 = vector.broadcast %214 : vector<1x128xf32> to vector<128x128xf32>
    %236 = arith.mulf %234, %235 : vector<128x128xf32>
    %237 = vector.broadcast %216 : vector<1x128xf32> to vector<128x128xf32>
    %238 = arith.addf %236, %237 : vector<128x128xf32>
    %239 = arith.negf %238 : vector<128x128xf32>
    %240 = math.exp %239 : vector<128x128xf32>
    %cst_89 = arith.constant 1.000000e+00 : f32
    %241 = vector.broadcast %cst_89 : f32 to vector<128x128xf32>
    %242 = arith.addf %241, %240 : vector<128x128xf32>
    %243 = arith.divf %241, %242 : vector<128x128xf32>
    %244 = arith.mulf %238, %243 : vector<128x128xf32>
    %245 = arith.addf %163, %244 : vector<128x128xf32>
    %c0_90 = arith.constant 0 : index
    %c2 = arith.constant 2 : index
    %c0_91 = arith.constant 0 : index
    %c0_92 = arith.constant 0 : index
    %246 = vector.load %arg5[%c0_90, %c2, %c0_91, %c0_92] : memref<2x3x128x128xbf16, #tpu.memory_space<vmem>>, vector<1x1x128x128xbf16>
    %247 = vector.shape_cast %246 : vector<1x1x128x128xbf16> to vector<128x128xbf16>
    %248 = arith.truncf %204 : vector<128x128xf32> to vector<128x128xbf16>
    %cst_93 = arith.constant dense<0.000000e+00> : vector<128x128xf32>
    %249 = tpu.matmul %248, %247, %cst_93 {dimension_numbers = #tpu.dot_dimension_numbers<[1], [0], [0], [1], [0, 0, 1, 1], [], []>} : vector<128x128xbf16>, vector<128x128xbf16>, vector<128x128xf32> -> vector<128x128xf32>
    %250 = vector.extract_strided_slice %79 {offsets = [0, 2, 0], sizes = [1, 1, 128], strides = [1, 1, 1]} : vector<2x3x128xf32> to vector<1x1x128xf32>
    %251 = vector.shape_cast %250 : vector<1x1x128xf32> to vector<1x128xf32>
    %252 = vector.broadcast %251 : vector<1x128xf32> to vector<128x128xf32>
    %253 = arith.addf %249, %252 : vector<128x128xf32>
    %254 = vector.extract_strided_slice %80 {offsets = [0, 2, 0], sizes = [1, 1, 128], strides = [1, 1, 1]} : vector<2x3x128xf32> to vector<1x1x128xf32>
    %255 = vector.shape_cast %254 : vector<1x1x128xf32> to vector<1x128xf32>
    %256 = vector.extract_strided_slice %81 {offsets = [0, 2, 0], sizes = [1, 1, 128], strides = [1, 1, 1]} : vector<2x3x128xf32> to vector<1x1x128xf32>
    %257 = vector.shape_cast %256 : vector<1x1x128xf32> to vector<1x128xf32>
    %cst_94 = arith.constant dense<0.000000e+00> : vector<128xf32>
    %258 = vector.multi_reduction <add>, %253, %cst_94 [1] : vector<128x128xf32> to vector<128xf32>
    %259 = vector.shape_cast %258 : vector<128xf32> to vector<128x1xf32>
    %260 = arith.mulf %253, %253 : vector<128x128xf32>
    %cst_95 = arith.constant dense<0.000000e+00> : vector<128xf32>
    %261 = vector.multi_reduction <add>, %260, %cst_95 [1] : vector<128x128xf32> to vector<128xf32>
    %262 = vector.shape_cast %261 : vector<128xf32> to vector<128x1xf32>
    %cst_96 = arith.constant 7.812500e-03 : f32
    %263 = vector.broadcast %cst_96 : f32 to vector<128x1xf32>
    %264 = arith.mulf %259, %263 : vector<128x1xf32>
    %cst_97 = arith.constant 7.812500e-03 : f32
    %265 = vector.broadcast %cst_97 : f32 to vector<128x1xf32>
    %266 = arith.mulf %262, %265 : vector<128x1xf32>
    %267 = arith.mulf %264, %264 : vector<128x1xf32>
    %268 = arith.subf %266, %267 : vector<128x1xf32>
    %269 = vector.broadcast %264 : vector<128x1xf32> to vector<128x128xf32>
    %270 = arith.subf %253, %269 : vector<128x128xf32>
    %cst_98 = arith.constant 9.99999974E-6 : f32
    %271 = vector.broadcast %cst_98 : f32 to vector<128x1xf32>
    %272 = arith.addf %268, %271 : vector<128x1xf32>
    %273 = math.rsqrt %272 : vector<128x1xf32>
    %274 = vector.broadcast %273 : vector<128x1xf32> to vector<128x128xf32>
    %275 = arith.mulf %270, %274 : vector<128x128xf32>
    %276 = vector.broadcast %255 : vector<1x128xf32> to vector<128x128xf32>
    %277 = arith.mulf %275, %276 : vector<128x128xf32>
    %278 = vector.broadcast %257 : vector<1x128xf32> to vector<128x128xf32>
    %279 = arith.addf %277, %278 : vector<128x128xf32>
    %280 = arith.negf %279 : vector<128x128xf32>
    %281 = math.exp %280 : vector<128x128xf32>
    %cst_99 = arith.constant 1.000000e+00 : f32
    %282 = vector.broadcast %cst_99 : f32 to vector<128x128xf32>
    %283 = arith.addf %282, %281 : vector<128x128xf32>
    %284 = arith.divf %282, %283 : vector<128x128xf32>
    %285 = arith.mulf %279, %284 : vector<128x128xf32>
    %286 = arith.addf %204, %285 : vector<128x128xf32>
    %c1_100 = arith.constant 1 : index
    %c2_101 = arith.constant 2 : index
    %c0_102 = arith.constant 0 : index
    %c0_103 = arith.constant 0 : index
    %287 = vector.load %arg5[%c1_100, %c2_101, %c0_102, %c0_103] : memref<2x3x128x128xbf16, #tpu.memory_space<vmem>>, vector<1x1x128x128xbf16>
    %288 = vector.shape_cast %287 : vector<1x1x128x128xbf16> to vector<128x128xbf16>
    %289 = arith.truncf %245 : vector<128x128xf32> to vector<128x128xbf16>
    %cst_104 = arith.constant dense<0.000000e+00> : vector<128x128xf32>
    %290 = tpu.matmul %289, %288, %cst_104 {dimension_numbers = #tpu.dot_dimension_numbers<[1], [0], [0], [1], [0, 0, 1, 1], [], []>} : vector<128x128xbf16>, vector<128x128xbf16>, vector<128x128xf32> -> vector<128x128xf32>
    %291 = vector.extract_strided_slice %79 {offsets = [1, 2, 0], sizes = [1, 1, 128], strides = [1, 1, 1]} : vector<2x3x128xf32> to vector<1x1x128xf32>
    %292 = vector.shape_cast %291 : vector<1x1x128xf32> to vector<1x128xf32>
    %293 = vector.broadcast %292 : vector<1x128xf32> to vector<128x128xf32>
    %294 = arith.addf %290, %293 : vector<128x128xf32>
    %295 = vector.extract_strided_slice %80 {offsets = [1, 2, 0], sizes = [1, 1, 128], strides = [1, 1, 1]} : vector<2x3x128xf32> to vector<1x1x128xf32>
    %296 = vector.shape_cast %295 : vector<1x1x128xf32> to vector<1x128xf32>
    %297 = vector.extract_strided_slice %81 {offsets = [1, 2, 0], sizes = [1, 1, 128], strides = [1, 1, 1]} : vector<2x3x128xf32> to vector<1x1x128xf32>
    %298 = vector.shape_cast %297 : vector<1x1x128xf32> to vector<1x128xf32>
    %cst_105 = arith.constant dense<0.000000e+00> : vector<128xf32>
    %299 = vector.multi_reduction <add>, %294, %cst_105 [1] : vector<128x128xf32> to vector<128xf32>
    %300 = vector.shape_cast %299 : vector<128xf32> to vector<128x1xf32>
    %301 = arith.mulf %294, %294 : vector<128x128xf32>
    %cst_106 = arith.constant dense<0.000000e+00> : vector<128xf32>
    %302 = vector.multi_reduction <add>, %301, %cst_106 [1] : vector<128x128xf32> to vector<128xf32>
    %303 = vector.shape_cast %302 : vector<128xf32> to vector<128x1xf32>
    %cst_107 = arith.constant 7.812500e-03 : f32
    %304 = vector.broadcast %cst_107 : f32 to vector<128x1xf32>
    %305 = arith.mulf %300, %304 : vector<128x1xf32>
    %cst_108 = arith.constant 7.812500e-03 : f32
    %306 = vector.broadcast %cst_108 : f32 to vector<128x1xf32>
    %307 = arith.mulf %303, %306 : vector<128x1xf32>
    %308 = arith.mulf %305, %305 : vector<128x1xf32>
    %309 = arith.subf %307, %308 : vector<128x1xf32>
    %310 = vector.broadcast %305 : vector<128x1xf32> to vector<128x128xf32>
    %311 = arith.subf %294, %310 : vector<128x128xf32>
    %cst_109 = arith.constant 9.99999974E-6 : f32
    %312 = vector.broadcast %cst_109 : f32 to vector<128x1xf32>
    %313 = arith.addf %309, %312 : vector<128x1xf32>
    %314 = math.rsqrt %313 : vector<128x1xf32>
    %315 = vector.broadcast %314 : vector<128x1xf32> to vector<128x128xf32>
    %316 = arith.mulf %311, %315 : vector<128x128xf32>
    %317 = vector.broadcast %296 : vector<1x128xf32> to vector<128x128xf32>
    %318 = arith.mulf %316, %317 : vector<128x128xf32>
    %319 = vector.broadcast %298 : vector<1x128xf32> to vector<128x128xf32>
    %320 = arith.addf %318, %319 : vector<128x128xf32>
    %321 = arith.negf %320 : vector<128x128xf32>
    %322 = math.exp %321 : vector<128x128xf32>
    %cst_110 = arith.constant 1.000000e+00 : f32
    %323 = vector.broadcast %cst_110 : f32 to vector<128x128xf32>
    %324 = arith.addf %323, %322 : vector<128x128xf32>
    %325 = arith.divf %323, %324 : vector<128x128xf32>
    %326 = arith.mulf %320, %325 : vector<128x128xf32>
    %327 = arith.addf %245, %326 : vector<128x128xf32>
    %328 = arith.addf %286, %39 : vector<128x128xf32>
    %329 = arith.addf %327, %78 : vector<128x128xf32>
    %330 = arith.truncf %328 : vector<128x128xf32> to vector<128x128xbf16>
    %c0_111 = arith.constant 0 : index
    %c0_112 = arith.constant 0 : index
    %c0_113 = arith.constant 0 : index
    %331 = vector.load %arg9[%c0_111, %c0_112, %c0_113] : memref<2x128x128xbf16, #tpu.memory_space<vmem>>, vector<1x128x128xbf16>
    %332 = vector.shape_cast %331 : vector<1x128x128xbf16> to vector<128x128xbf16>
    %cst_114 = arith.constant dense<0.000000e+00> : vector<128x128xf32>
    %333 = tpu.matmul %330, %332, %cst_114 {dimension_numbers = #tpu.dot_dimension_numbers<[1], [0], [0], [1], [0, 0, 1, 1], [], []>} : vector<128x128xbf16>, vector<128x128xbf16>, vector<128x128xf32> -> vector<128x128xf32>
    %c0_115 = arith.constant 0 : index
    %c0_116 = arith.constant 0 : index
    %c0_117 = arith.constant 0 : index
    %334 = vector.load %arg10[%c0_115, %c0_116, %c0_117] : memref<2x1x128xf32, #tpu.memory_space<vmem>>, vector<1x1x128xf32>
    %335 = vector.shape_cast %334 : vector<1x1x128xf32> to vector<1x128xf32>
    %336 = vector.broadcast %335 : vector<1x128xf32> to vector<128x128xf32>
    %337 = arith.addf %333, %336 : vector<128x128xf32>
    %c0_118 = arith.constant 0 : index
    %c0_119 = arith.constant 0 : index
    %c0_120 = arith.constant 0 : index
    %338 = vector.load %arg11[%c0_118, %c0_119, %c0_120] : memref<2x128x128xf32, #tpu.memory_space<vmem>>, vector<1x128x128xf32>
    %339 = vector.shape_cast %338 : vector<1x128x128xf32> to vector<128x128xf32>
    %340 = vector.shape_cast %337 : vector<128x128xf32> to vector<1x128x128xf32>
    tpu.vector_store %arg11[%c0_118, %c0_119, %c0_120], %340 {strides = array<i32>} : memref<2x128x128xf32, #tpu.memory_space<vmem>>, vector<1x128x128xf32>,
    %341 = arith.truncf %329 : vector<128x128xf32> to vector<128x128xbf16>
    %c1_121 = arith.constant 1 : index
    %c0_122 = arith.constant 0 : index
    %c0_123 = arith.constant 0 : index
    %342 = vector.load %arg9[%c1_121, %c0_122, %c0_123] : memref<2x128x128xbf16, #tpu.memory_space<vmem>>, vector<1x128x128xbf16>
    %343 = vector.shape_cast %342 : vector<1x128x128xbf16> to vector<128x128xbf16>
    %cst_124 = arith.constant dense<0.000000e+00> : vector<128x128xf32>
    %344 = tpu.matmul %341, %343, %cst_124 {dimension_numbers = #tpu.dot_dimension_numbers<[1], [0], [0], [1], [0, 0, 1, 1], [], []>} : vector<128x128xbf16>, vector<128x128xbf16>, vector<128x128xf32> -> vector<128x128xf32>
    %c1_125 = arith.constant 1 : index
    %c0_126 = arith.constant 0 : index
    %c0_127 = arith.constant 0 : index
    %345 = vector.load %arg10[%c1_125, %c0_126, %c0_127] : memref<2x1x128xf32, #tpu.memory_space<vmem>>, vector<1x1x128xf32>
    %346 = vector.shape_cast %345 : vector<1x1x128xf32> to vector<1x128xf32>
    %347 = vector.broadcast %346 : vector<1x128xf32> to vector<128x128xf32>
    %348 = arith.addf %344, %347 : vector<128x128xf32>
    %c1_128 = arith.constant 1 : index
    %c0_129 = arith.constant 0 : index
    %c0_130 = arith.constant 0 : index
    %349 = vector.load %arg11[%c1_128, %c0_129, %c0_130] : memref<2x128x128xf32, #tpu.memory_space<vmem>>, vector<1x128x128xf32>
    %350 = vector.shape_cast %349 : vector<1x128x128xf32> to vector<128x128xf32>
    %351 = vector.shape_cast %348 : vector<128x128xf32> to vector<1x128x128xf32>
    tpu.vector_store %arg11[%c1_128, %c0_129, %c0_130], %351 {strides = array<i32>} : memref<2x128x128xf32, #tpu.memory_space<vmem>>, vector<1x128x128xf32>,
    return
  }
}

</mosaic_0001>

<llo_original>
// kernel: tpu_custom_call.1
$region0: #{tpu_custom_call.1}
  #allocation0 [shape = 'u32[]', space=smem, size = 0x4, offset = 0x4, fixed_abs, tag = 'smem constant byte address 0x4 - core index']
  #allocation1 [shape = 'u32[144,128]{1,0:T(1,128)}', space=vmem, size = 0x12000, scoped, tag = 'internal scratch']
  %s0 = inlined_call_operand.vmem [shape: f32[128,32], index: 0, kind: input, shape index: {}]
  %s1 = inlined_call_operand.vmem [shape: f32[2,32,128], index: 1, kind: input, shape index: {}]
  %s2 = inlined_call_operand.vmem [shape: f32[2,1,128], index: 2, kind: input, shape index: {}]
  %s3 = inlined_call_operand.vmem [shape: f32[2,1,128], index: 3, kind: input, shape index: {}]
  %s4 = inlined_call_operand.vmem [shape: f32[2,1,128], index: 4, kind: input, shape index: {}]
  %s5 = inlined_call_operand.hbm [shape: bf16[2,3,128,128], index: 5, kind: input, shape index: {}]
  %s6 = inlined_call_operand.vmem [shape: f32[2,3,128], index: 6, kind: input, shape index: {}]
  %s7 = inlined_call_operand.vmem [shape: f32[2,3,128], index: 7, kind: input, shape index: {}]
  %s8 = inlined_call_operand.vmem [shape: f32[2,3,128], index: 8, kind: input, shape index: {}]
  %s9 = inlined_call_operand.vmem [shape: bf16[2,128,128], index: 9, kind: input, shape index: {}]
  %s10 = inlined_call_operand.vmem [shape: f32[2,1,128], index: 10, kind: input, shape index: {}]
  %s11 = inlined_call_operand.hbm [shape: f32[2,128,128], index: 11, kind: output, shape index: {}]
  %s12 = sld [smem:[#allocation0]]
  $region58: #{tpu_custom_call.1} parent=0
    _
  %s14 = ssub.s32 1, %s12
  %s15 = scalar_select 0, %s14, %s12
  $region1: #{tpu_custom_call.1} parent=0
    #allocation2 [shape = 'u8[196608]{0}', space=vmem, size = 0x30000, scoped, tag = 'input window, operand 5, single buffered']
    #allocation3 [shape = 's32[1]{0}', space=sflag, size = 0x4, scoped, tag = 'scoped memory for tpu_custom_call.1']
    #allocation4 [shape = 's32[1]{0}', space=sflag, size = 0x4, scoped, tag = 'scoped memory for tpu_custom_call.1']
    #allocation5 [shape = 'u8[131072]{0}', space=vmem, size = 0x20000, scoped, tag = 'output window, operand 0, single buffered']
    %16 = vsyncpa [#allocation3], 0
    %17 = vsyncpa [#allocation4], 0
    // Predicated region
    $region2: #{tpu_custom_call.1} parent=1 // pred_check
      _
    $region3: #{tpu_custom_call.1} parent=1 // pred_check_branch
      %19 = sbr.rel (0) target = $region5
    $region4: #{tpu_custom_call.1} parent=1 // pred_region
      _
    $region5: #{tpu_custom_call.1} parent=1 // pred_fallthru
      _
    // Predicated region
    $region6: #{tpu_custom_call.1} parent=1 // pred_check
      _
    $region7: #{tpu_custom_call.1} parent=1 // pred_check_branch
      %21 = sbr.rel (0) target = $region9
    $region8: #{tpu_custom_call.1} parent=1 // pred_region
      _
    $region9: #{tpu_custom_call.1} parent=1 // pred_fallthru
      _
    // Predicated region
    $region10: #{tpu_custom_call.1} parent=1 // pred_check
      _
    $region11: #{tpu_custom_call.1} parent=1 // pred_check_branch
      %23 = sbr.rel (0) target = $region13
    $region12: #{tpu_custom_call.1} parent=1 // pred_region
      _
    $region13: #{tpu_custom_call.1} parent=1 // pred_fallthru
      _
    // Predicated region
    $region14: #{tpu_custom_call.1} parent=1 // pred_check
      _
    $region15: #{tpu_custom_call.1} parent=1 // pred_check_branch
      %25 = sbr.rel (0) target = $region17
    $region16: #{tpu_custom_call.1} parent=1 // pred_region
      _
    $region17: #{tpu_custom_call.1} parent=1 // pred_fallthru
      _
    // Predicated region
    $region18: #{tpu_custom_call.1} parent=1 // pred_check
      _
    $region19: #{tpu_custom_call.1} parent=1 // pred_check_branch
      %27 = sbr.rel (0) target = $region21
    $region20: #{tpu_custom_call.1} parent=1 // pred_region
      _
    $region21: #{tpu_custom_call.1} parent=1 // pred_fallthru
      _
    // Predicated region
    $region22: #{tpu_custom_call.1} parent=1 // pred_check
      _
    $region23: #{tpu_custom_call.1} parent=1 // pred_check_branch
      %29 = sbr.rel (0) target = $region25
    $region24: #{tpu_custom_call.1} parent=1 // pred_region
      %s31 = ssub.s32 6144, 6144
      %32 = vsyncadd [#allocation3], %s31
      %s33 = sshll.u32 [#allocation2], 4
      %s34 = int_to_ptr.vmem [resolvable:$true] %s33
      %39 = dma.hbm_to_vmem [thread:$0]  %s5, 6144, %s34, [#allocation3], 64, 64, 4
    $region25: #{tpu_custom_call.1} parent=1 // pred_fallthru
      _
    // Predicated region
    $region26: #{tpu_custom_call.1} parent=1 // pred_check
      _
    $region27: #{tpu_custom_call.1} parent=1 // pred_check_branch
      %41 = sbr.rel (0) target = $region29
    $region28: #{tpu_custom_call.1} parent=1 // pred_region
      _
    $region29: #{tpu_custom_call.1} parent=1 // pred_fallthru
      _
    // Predicated region
    $region30: #{tpu_custom_call.1} parent=1 // pred_check
      _
    $region31: #{tpu_custom_call.1} parent=1 // pred_check_branch
      %43 = sbr.rel (0) target = $region33
    $region32: #{tpu_custom_call.1} parent=1 // pred_region
      _
    $region33: #{tpu_custom_call.1} parent=1 // pred_fallthru
      _
    // Predicated region
    $region34: #{tpu_custom_call.1} parent=1 // pred_check
      _
    $region35: #{tpu_custom_call.1} parent=1 // pred_check_branch
      %45 = sbr.rel (0) target = $region37
    $region36: #{tpu_custom_call.1} parent=1 // pred_region
      _
    $region37: #{tpu_custom_call.1} parent=1 // pred_fallthru
      _
    // Predicated region
    $region38: #{tpu_custom_call.1} parent=1 // pred_check
      _
    $region39: #{tpu_custom_call.1} parent=1 // pred_check_branch
      %47 = sbr.rel (0) target = $region41
    $region40: #{tpu_custom_call.1} parent=1 // pred_region
      _
    $region41: #{tpu_custom_call.1} parent=1 // pred_fallthru
      _
    // Predicated region
    $region42: #{tpu_custom_call.1} parent=1 // pred_check
      _
    $region43: #{tpu_custom_call.1} parent=1 // pred_check_branch
      %49 = sbr.rel (0) target = $region45
    $region44: #{tpu_custom_call.1} parent=1 // pred_region
      _
    $region45: #{tpu_custom_call.1} parent=1 // pred_fallthru
      _
    // Predicated region
    $region46: #{tpu_custom_call.1} parent=1 // pred_check
      _
    $region47: #{tpu_custom_call.1} parent=1 // pred_check_branch
      %51 = sbr.rel (0) target = $region49
    $region48: #{tpu_custom_call.1} parent=1 // pred_region
      %52 = dma.done [#allocation3], 6144
    $region49: #{tpu_custom_call.1} parent=1 // pred_fallthru
      _
    %v54 = vld [vmem:[%s0] sm:$0xff]
    %v55 = vld [vmem:[%s0 + $0x8] sm:$0xff]
    %v56 = vld [vmem:[%s0 + $0x10] sm:$0xff]
    %v57 = vld [vmem:[%s0 + $0x18] sm:$0xff]
    %v58 = vld [vmem:[%s0 + $0x20] sm:$0xff]
    %v59 = vld [vmem:[%s0 + $0x28] sm:$0xff]
    %v60 = vld [vmem:[%s0 + $0x30] sm:$0xff]
    %v61 = vld [vmem:[%s0 + $0x38] sm:$0xff]
    %v62 = vld [vmem:[%s0 + $0x40] sm:$0xff]
    %v63 = vld [vmem:[%s0 + $0x48] sm:$0xff]
    %v64 = vld [vmem:[%s0 + $0x50] sm:$0xff]
    %v65 = vld [vmem:[%s0 + $0x58] sm:$0xff]
    %v66 = vld [vmem:[%s0 + $0x60] sm:$0xff]
    %v67 = vld [vmem:[%s0 + $0x68] sm:$0xff]
    %v68 = vld [vmem:[%s0 + $0x70] sm:$0xff]
    %v69 = vld [vmem:[%s0 + $0x78] sm:$0xff]
    %v70 = vld [vmem:[%s1] sm:$0xff]
    %v71 = vld [vmem:[%s1 + $0x8] sm:$0xff]
    %v72 = vld [vmem:[%s1 + $0x10] sm:$0xff]
    %v73 = vld [vmem:[%s1 + $0x18] sm:$0xff]
    %v74 = vld [vmem:[%s2] sm:$0x1]
    %v76 = vlaneseq
    %v77 = vshrl.u32 %v76, 7
    %v78 = vsub.s32 0, %v77
    %v79 = vrot.slane %v74, %v78
    %vm81 = vcmask 261120
    %v83 = vsel %vm81, %v54, 0
    %v86 = vsel %vm81, %v55, 0
    %v89 = vsel %vm81, %v56, 0
    %v92 = vsel %vm81, %v57, 0
    %v95 = vsel %vm81, %v58, 0
    %v98 = vsel %vm81, %v59, 0
    %v101 = vsel %vm81, %v60, 0
    %v104 = vsel %vm81, %v61, 0
    %v107 = vsel %vm81, %v62, 0
    %v110 = vsel %vm81, %v63, 0
    %v113 = vsel %vm81, %v64, 0
    %v116 = vsel %vm81, %v65, 0
    %v119 = vsel %vm81, %v66, 0
    %v122 = vsel %vm81, %v67, 0
    %v125 = vsel %vm81, %v68, 0
    %v128 = vsel %vm81, %v69, 0
    %130 = vmatprep.subr.mxu0 0.0
    %131 = vmatpush1.msra.mxu0 %v70
    %132 = vmatprep.subr.mxu0 0.0
    %133 = vmatpush1.msra.mxu0 %v71
    %134 = vmatprep.subr.mxu0 0.0
    %135 = vmatpush1.msra.mxu0 %v72
    %136 = vmatprep.subr.mxu0 0.0
    %137 = vmatpush1.msra.mxu0 %v73
    %138 = vmatprep.subr.mxu0 0.0
    %139 = vmatpush1.msra.mxu0 0.0
    %140 = vmatprep.subr.mxu0 0.0
    %141 = vmatpush1.msra.mxu0 0.0
    %142 = vmatprep.subr.mxu0 0.0
    %143 = vmatpush1.msra.mxu0 0.0
    %144 = vmatprep.subr.mxu0 0.0
    %145 = vmatpush1.msra.mxu0 0.0
    %146 = vmatprep.subr.mxu0 0.0
    %147 = vmatpush1.msra.mxu0 0.0
    %148 = vmatprep.subr.mxu0 0.0
    %149 = vmatpush1.msra.mxu0 0.0
    %150 = vmatprep.subr.mxu0 0.0
    %151 = vmatpush1.msra.mxu0 0.0
    %152 = vmatprep.subr.mxu0 0.0
    %153 = vmatpush1.msra.mxu0 0.0
    %154 = vmatprep.subr.mxu0 0.0
    %155 = vmatpush1.msra.mxu0 0.0
    %156 = vmatprep.subr.mxu0 0.0
    %157 = vmatpush1.msra.mxu0 0.0
    %158 = vmatprep.subr.mxu0 0.0
    %159 = vmatpush1.msra.mxu0 0.0
    %160 = vmatprep.subr.mxu0 0.0
    %161 = vmatpush1.msra.mxu0 0.0
    %162 = vmatprep.subr.mxu0 0.0
    %163 = vmatpush1.msra.mxu0 0.0
    %164 = vmatprep.subr.mxu0 0.0
    %165 = vmatpush1.msra.mxu0 0.0
    %166 = vmatprep.subr.mxu0 0.0
    %167 = vmatpush1.msra.mxu0 0.0
    %168 = vmatprep.subr.mxu0 0.0
    %169 = vmatpush1.msra.mxu0 0.0
    %170 = vmatprep.subr.mxu0 0.0
    %171 = vmatpush1.msra.mxu0 0.0
    %172 = vmatprep.subr.mxu0 0.0
    %173 = vmatpush1.msra.mxu0 0.0
    %174 = vmatprep.subr.mxu0 0.0
    %175 = vmatpush1.msra.mxu0 0.0
    %176 = vmatprep.subr.mxu0 0.0
    %177 = vmatpush1.msra.mxu0 0.0
    %178 = vmatprep.subr.mxu0 0.0
    %179 = vmatpush1.msra.mxu0 0.0
    %180 = vmatprep.subr.mxu0 0.0
    %181 = vmatpush1.msra.mxu0 0.0
    %182 = vmatprep.subr.mxu0 0.0
    %183 = vmatpush1.msra.mxu0 0.0
    %184 = vmatprep.subr.mxu0 0.0
    %185 = vmatpush1.msra.mxu0 0.0
    %186 = vmatprep.subr.mxu0 0.0
    %187 = vmatpush1.msra.mxu0 0.0
    %188 = vmatprep.subr.mxu0 0.0
    %189 = vmatpush1.msra.mxu0 0.0
    %190 = vmatprep.subr.mxu0 0.0
    %191 = vmatpush1.msra.mxu0 0.0
    %192 = vmatprep.subr.mxu0 0.0
    %193 = vmatpush1.msra.mxu0 0.0
    %194 = vmatprep.mubr.f32.mxu0 0.0
    %195 = vmatmul.mubr.f32.gmra.mrb[0].mxu0 %v83
    %v196 = vpop.f32.mrb[0].mxu0
    %v197 = vadd.f32 %v79, %v196
    %v198 = vpop.f32.mrb[0].mxu0
    %199 = vmatprep.mubr.f32.mxu0 0.0
    %200 = vmatmul.mubr.f32.gmra.mrb[0].mxu0 %v86
    %v201 = vpop.f32.mrb[0].mxu0
    %v202 = vadd.f32 %v79, %v201
    %v203 = vpop.f32.mrb[0].mxu0
    %204 = vmatprep.mubr.f32.mxu0 0.0
    %205 = vmatmul.mubr.f32.gmra.mrb[0].mxu0 %v89
    %v206 = vpop.f32.mrb[0].mxu0
    %v207 = vadd.f32 %v79, %v206
    %v208 = vpop.f32.mrb[0].mxu0
    %209 = vmatprep.mubr.f32.mxu0 0.0
    %210 = vmatmul.mubr.f32.gmra.mrb[0].mxu0 %v92
    %v211 = vpop.f32.mrb[0].mxu0
    %v212 = vadd.f32 %v79, %v211
    %v213 = vpop.f32.mrb[0].mxu0
    %214 = vmatprep.mubr.f32.mxu0 0.0
    %215 = vmatmul.mubr.f32.gmra.mrb[0].mxu0 %v95
    %v216 = vpop.f32.mrb[0].mxu0
    %v217 = vadd.f32 %v79, %v216
    %v218 = vpop.f32.mrb[0].mxu0
    %219 = vmatprep.mubr.f32.mxu0 0.0
    %220 = vmatmul.mubr.f32.gmra.mrb[0].mxu0 %v98
    %v221 = vpop.f32.mrb[0].mxu0
    %v222 = vadd.f32 %v79, %v221
    %v223 = vpop.f32.mrb[0].mxu0
    %224 = vmatprep.mubr.f32.mxu0 0.0
    %225 = vmatmul.mubr.f32.gmra.mrb[0].mxu0 %v101
    %v226 = vpop.f32.mrb[0].mxu0
    %v227 = vadd.f32 %v79, %v226
    %v228 = vpop.f32.mrb[0].mxu0
    %229 = vmatprep.mubr.f32.mxu0 0.0
    %230 = vmatmul.mubr.f32.gmra.mrb[0].mxu0 %v104
    %v231 = vpop.f32.mrb[0].mxu0
    %v232 = vadd.f32 %v79, %v231
    %v233 = vpop.f32.mrb[0].mxu0
    %234 = vmatprep.mubr.f32.mxu0 0.0
    %235 = vmatmul.mubr.f32.gmra.mrb[0].mxu0 %v107
    %v236 = vpop.f32.mrb[0].mxu0
    %v237 = vadd.f32 %v79, %v236
    %v238 = vpop.f32.mrb[0].mxu0
    %239 = vmatprep.mubr.f32.mxu0 0.0
    %240 = vmatmul.mubr.f32.gmra.mrb[0].mxu0 %v110
    %v241 = vpop.f32.mrb[0].mxu0
    %v242 = vadd.f32 %v79, %v241
    %v243 = vpop.f32.mrb[0].mxu0
    %244 = vmatprep.mubr.f32.mxu0 0.0
    %245 = vmatmul.mubr.f32.gmra.mrb[0].mxu0 %v113
    %v246 = vpop.f32.mrb[0].mxu0
    %v247 = vadd.f32 %v79, %v246
    %v248 = vpop.f32.mrb[0].mxu0
    %249 = vmatprep.mubr.f32.mxu0 0.0
    %250 = vmatmul.mubr.f32.gmra.mrb[0].mxu0 %v116
    %v251 = vpop.f32.mrb[0].mxu0
    %v252 = vadd.f32 %v79, %v251
    %v253 = vpop.f32.mrb[0].mxu0
    %254 = vmatprep.mubr.f32.mxu0 0.0
    %255 = vmatmul.mubr.f32.gmra.mrb[0].mxu0 %v119
    %v256 = vpop.f32.mrb[0].mxu0
    %v257 = vadd.f32 %v79, %v256
    %v258 = vpop.f32.mrb[0].mxu0
    %259 = vmatprep.mubr.f32.mxu0 0.0
    %260 = vmatmul.mubr.f32.gmra.mrb[0].mxu0 %v122
    %v261 = vpop.f32.mrb[0].mxu0
    %v262 = vadd.f32 %v79, %v261
    %v263 = vpop.f32.mrb[0].mxu0
    %264 = vmatprep.mubr.f32.mxu0 0.0
    %265 = vmatmul.mubr.f32.gmra.mrb[0].mxu0 %v125
    %v266 = vpop.f32.mrb[0].mxu0
    %v267 = vadd.f32 %v79, %v266
    %v268 = vpop.f32.mrb[0].mxu0
    %269 = vmatprep.mubr.f32.mxu0 0.0
    %270 = vmatmul.mubr.f32.gmra.mrb[0].mxu0 %v128
    %v271 = vpop.f32.mrb[0].mxu0
    %v272 = vadd.f32 %v79, %v271
    %v273 = vpop.f32.mrb[0].mxu0
    %274 = vdwg.mxu0
    %v275 = vld [vmem:[%s3] sm:$0x1]
    %v276 = vld [vmem:[%s4] sm:$0x1]
    %277 = vadd.xlane.f32.xlu0 %v197
    %v278 = vpop.xlane.xlu0 %277
    %279 = vadd.xlane.f32.xlu0 %v202
    %v280 = vpop.xlane.xlu0 %279
    %281 = vadd.xlane.f32.xlu0 %v207
    %v282 = vpop.xlane.xlu0 %281
    %283 = vadd.xlane.f32.xlu0 %v212
    %v284 = vpop.xlane.xlu0 %283
    %285 = vadd.xlane.f32.xlu0 %v217
    %v286 = vpop.xlane.xlu0 %285
    %287 = vadd.xlane.f32.xlu0 %v222
    %v288 = vpop.xlane.xlu0 %287
    %289 = vadd.xlane.f32.xlu0 %v227
    %v290 = vpop.xlane.xlu0 %289
    %291 = vadd.xlane.f32.xlu0 %v232
    %v292 = vpop.xlane.xlu0 %291
    %293 = vadd.xlane.f32.xlu0 %v237
    %v294 = vpop.xlane.xlu0 %293
    %295 = vadd.xlane.f32.xlu0 %v242
    %v296 = vpop.xlane.xlu0 %295
    %297 = vadd.xlane.f32.xlu0 %v247
    %v298 = vpop.xlane.xlu0 %297
    %299 = vadd.xlane.f32.xlu0 %v252
    %v300 = vpop.xlane.xlu0 %299
    %301 = vadd.xlane.f32.xlu0 %v257
    %v302 = vpop.xlane.xlu0 %301
    %303 = vadd.xlane.f32.xlu0 %v262
    %v304 = vpop.xlane.xlu0 %303
    %305 = vadd.xlane.f32.xlu0 %v267
    %v306 = vpop.xlane.xlu0 %305
    %307 = vadd.xlane.f32.xlu0 %v272
    %v308 = vpop.xlane.xlu0 %307
    %v309 = vmul.f32 %v197, %v197
    %v310 = vmul.f32 %v202, %v202
    %v311 = vmul.f32 %v207, %v207
    %v312 = vmul.f32 %v212, %v212
    %v313 = vmul.f32 %v217, %v217
    %v314 = vmul.f32 %v222, %v222
    %v315 = vmul.f32 %v227, %v227
    %v316 = vmul.f32 %v232, %v232
    %v317 = vmul.f32 %v237, %v237
    %v318 = vmul.f32 %v242, %v242
    %v319 = vmul.f32 %v247, %v247
    %v320 = vmul.f32 %v252, %v252
    %v321 = vmul.f32 %v257, %v257
    %v322 = vmul.f32 %v262, %v262
    %v323 = vmul.f32 %v267, %v267
    %v324 = vmul.f32 %v272, %v272
    %325 = vadd.xlane.f32.xlu0 %v309
    %v326 = vpop.xlane.xlu0 %325
    %327 = vadd.xlane.f32.xlu0 %v310
    %v328 = vpop.xlane.xlu0 %327
    %329 = vadd.xlane.f32.xlu0 %v311
    %v330 = vpop.xlane.xlu0 %329
    %331 = vadd.xlane.f32.xlu0 %v312
    %v332 = vpop.xlane.xlu0 %331
    %333 = vadd.xlane.f32.xlu0 %v313
    %v334 = vpop.xlane.xlu0 %333
    %335 = vadd.xlane.f32.xlu0 %v314
    %v336 = vpop.xlane.xlu0 %335
    %337 = vadd.xlane.f32.xlu0 %v315
    %v338 = vpop.xlane.xlu0 %337
    %339 = vadd.xlane.f32.xlu0 %v316
    %v340 = vpop.xlane.xlu0 %339
    %341 = vadd.xlane.f32.xlu0 %v317
    %v342 = vpop.xlane.xlu0 %341
    %343 = vadd.xlane.f32.xlu0 %v318
    %v344 = vpop.xlane.xlu0 %343
    %345 = vadd.xlane.f32.xlu0 %v319
    %v346 = vpop.xlane.xlu0 %345
    %347 = vadd.xlane.f32.xlu0 %v320
    %v348 = vpop.xlane.xlu0 %347
    %349 = vadd.xlane.f32.xlu0 %v321
    %v350 = vpop.xlane.xlu0 %349
    %351 = vadd.xlane.f32.xlu0 %v322
    %v352 = vpop.xlane.xlu0 %351
    %353 = vadd.xlane.f32.xlu0 %v323
    %v354 = vpop.xlane.xlu0 %353
    %355 = vadd.xlane.f32.xlu0 %v324
    %v356 = vpop.xlane.xlu0 %355
    %v357 = vmul.f32 %v278, 0.0078125
    %v358 = vmul.f32 %v280, 0.0078125
    %v359 = vmul.f32 %v282, 0.0078125
    %v360 = vmul.f32 %v284, 0.0078125
    %v361 = vmul.f32 %v286, 0.0078125
    %v362 = vmul.f32 %v288, 0.0078125
    %v363 = vmul.f32 %v290, 0.0078125
    %v364 = vmul.f32 %v292, 0.0078125
    %v365 = vmul.f32 %v294, 0.0078125
    %v366 = vmul.f32 %v296, 0.0078125
    %v367 = vmul.f32 %v298, 0.0078125
    %v368 = vmul.f32 %v300, 0.0078125
    %v369 = vmul.f32 %v302, 0.0078125
    %v370 = vmul.f32 %v304, 0.0078125
    %v371 = vmul.f32 %v306, 0.0078125
    %v372 = vmul.f32 %v308, 0.0078125
    %v373 = vmul.f32 %v326, 0.0078125
    %v374 = vmul.f32 %v328, 0.0078125
    %v375 = vmul.f32 %v330, 0.0078125
    %v376 = vmul.f32 %v332, 0.0078125
    %v377 = vmul.f32 %v334, 0.0078125
    %v378 = vmul.f32 %v336, 0.0078125
    %v379 = vmul.f32 %v338, 0.0078125
    %v380 = vmul.f32 %v340, 0.0078125
    %v381 = vmul.f32 %v342, 0.0078125
    %v382 = vmul.f32 %v344, 0.0078125
    %v383 = vmul.f32 %v346, 0.0078125
    %v384 = vmul.f32 %v348, 0.0078125
    %v385 = vmul.f32 %v350, 0.0078125
    %v386 = vmul.f32 %v352, 0.0078125
    %v387 = vmul.f32 %v354, 0.0078125
    %v388 = vmul.f32 %v356, 0.0078125
    %v389 = vmul.f32 %v357, %v357
    %v390 = vmul.f32 %v358, %v358
    %v391 = vmul.f32 %v359, %v359
    %v392 = vmul.f32 %v360, %v360
    %v393 = vmul.f32 %v361, %v361
    %v394 = vmul.f32 %v362, %v362
    %v395 = vmul.f32 %v363, %v363
    %v396 = vmul.f32 %v364, %v364
    %v397 = vmul.f32 %v365, %v365
    %v398 = vmul.f32 %v366, %v366
    %v399 = vmul.f32 %v367, %v367
    %v400 = vmul.f32 %v368, %v368
    %v401 = vmul.f32 %v369, %v369
    %v402 = vmul.f32 %v370, %v370
    %v403 = vmul.f32 %v371, %v371
    %v404 = vmul.f32 %v372, %v372
    %v405 = vsub.f32 %v373, %v389
    %v406 = vsub.f32 %v374, %v390
    %v407 = vsub.f32 %v375, %v391
    %v408 = vsub.f32 %v376, %v392
    %v409 = vsub.f32 %v377, %v393
    %v410 = vsub.f32 %v378, %v394
    %v411 = vsub.f32 %v379, %v395
    %v412 = vsub.f32 %v380, %v396
    %v413 = vsub.f32 %v381, %v397
    %v414 = vsub.f32 %v382, %v398
    %v415 = vsub.f32 %v383, %v399
    %v416 = vsub.f32 %v384, %v400
    %v417 = vsub.f32 %v385, %v401
    %v418 = vsub.f32 %v386, %v402
    %v419 = vsub.f32 %v387, %v403
    %v420 = vsub.f32 %v388, %v404
    %v421 = vsub.f32 %v197, %v357
    %v422 = vsub.f32 %v202, %v358
    %v423 = vsub.f32 %v207, %v359
    %v424 = vsub.f32 %v212, %v360
    %v425 = vsub.f32 %v217, %v361
    %v426 = vsub.f32 %v222, %v362
    %v427 = vsub.f32 %v227, %v363
    %v428 = vsub.f32 %v232, %v364
    %v429 = vsub.f32 %v237, %v365
    %v430 = vsub.f32 %v242, %v366
    %v431 = vsub.f32 %v247, %v367
    %v432 = vsub.f32 %v252, %v368
    %v433 = vsub.f32 %v257, %v369
    %v434 = vsub.f32 %v262, %v370
    %v435 = vsub.f32 %v267, %v371
    %v436 = vsub.f32 %v272, %v372
    %v437 = vadd.f32 %v405, 1e-05
    %v438 = vadd.f32 %v406, 1e-05
    %v439 = vadd.f32 %v407, 1e-05
    %v440 = vadd.f32 %v408, 1e-05
    %v441 = vadd.f32 %v409, 1e-05
    %v442 = vadd.f32 %v410, 1e-05
    %v443 = vadd.f32 %v411, 1e-05
    %v444 = vadd.f32 %v412, 1e-05
    %v445 = vadd.f32 %v413, 1e-05
    %v446 = vadd.f32 %v414, 1e-05
    %v447 = vadd.f32 %v415, 1e-05
    %v448 = vadd.f32 %v416, 1e-05
    %v449 = vadd.f32 %v417, 1e-05
    %v450 = vadd.f32 %v418, 1e-05
    %v451 = vadd.f32 %v419, 1e-05
    %v452 = vadd.f32 %v420, 1e-05
    %v453 = vrsqrt.pop %v437
    %v454 = vrsqrt.pop %v438
    %v455 = vrsqrt.pop %v439
    %v456 = vrsqrt.pop %v440
    %v457 = vrsqrt.pop %v441
    %v458 = vrsqrt.pop %v442
    %v459 = vrsqrt.pop %v443
    %v460 = vrsqrt.pop %v444
    %v461 = vrsqrt.pop %v445
    %v462 = vrsqrt.pop %v446
    %v463 = vrsqrt.pop %v447
    %v464 = vrsqrt.pop %v448
    %v465 = vrsqrt.pop %v449
    %v466 = vrsqrt.pop %v450
    %v467 = vrsqrt.pop %v451
    %v468 = vrsqrt.pop %v452
    %v469 = vmul.f32 %v421, %v453
    %v470 = vmul.f32 %v422, %v454
    %v471 = vmul.f32 %v423, %v455
    %v472 = vmul.f32 %v424, %v456
    %v473 = vmul.f32 %v425, %v457
    %v474 = vmul.f32 %v426, %v458
    %v475 = vmul.f32 %v427, %v459
    %v476 = vmul.f32 %v428, %v460
    %v477 = vmul.f32 %v429, %v461
    %v478 = vmul.f32 %v430, %v462
    %v479 = vmul.f32 %v431, %v463
    %v480 = vmul.f32 %v432, %v464
    %v481 = vmul.f32 %v433, %v465
    %v482 = vmul.f32 %v434, %v466
    %v483 = vmul.f32 %v435, %v467
    %v484 = vmul.f32 %v436, %v468
    %v486 = vlaneseq
    %v487 = vshrl.u32 %v486, 7
    %v488 = vsub.s32 0, %v487
    %v489 = vrot.slane %v275, %v488
    %v491 = vmul.f32 %v469, %v489
    %v492 = vmul.f32 %v470, %v489
    %v493 = vmul.f32 %v471, %v489
    %v494 = vmul.f32 %v472, %v489
    %v495 = vmul.f32 %v473, %v489
    %v496 = vmul.f32 %v474, %v489
    %v497 = vmul.f32 %v475, %v489
    %v498 = vmul.f32 %v476, %v489
    %v499 = vmul.f32 %v477, %v489
    %v500 = vmul.f32 %v478, %v489
    %v501 = vmul.f32 %v479, %v489
    %v502 = vmul.f32 %v480, %v489
    %v503 = vmul.f32 %v481, %v489
    %v504 = vmul.f32 %v482, %v489
    %v505 = vmul.f32 %v483, %v489
    %v506 = vmul.f32 %v484, %v489
    %v508 = vlaneseq
    %v509 = vshrl.u32 %v508, 7
    %v510 = vsub.s32 0, %v509
    %v511 = vrot.slane %v276, %v510
    %v513 = vadd.f32 %v491, %v511
    %v514 = vadd.f32 %v492, %v511
    %v515 = vadd.f32 %v493, %v511
    %v516 = vadd.f32 %v494, %v511
    %v517 = vadd.f32 %v495, %v511
    %v518 = vadd.f32 %v496, %v511
    %v519 = vadd.f32 %v497, %v511
    %v520 = vadd.f32 %v498, %v511
    %v521 = vadd.f32 %v499, %v511
    %v522 = vadd.f32 %v500, %v511
    %v523 = vadd.f32 %v501, %v511
    %v524 = vadd.f32 %v502, %v511
    %v525 = vadd.f32 %v503, %v511
    %v526 = vadd.f32 %v504, %v511
    %v527 = vadd.f32 %v505, %v511
    %v528 = vadd.f32 %v506, %v511
    %v529 = vxor.u32 %v513, 2147483648
    %v530 = vxor.u32 %v514, 2147483648
    %v531 = vxor.u32 %v515, 2147483648
    %v532 = vxor.u32 %v516, 2147483648
    %v533 = vxor.u32 %v517, 2147483648
    %v534 = vxor.u32 %v518, 2147483648
    %v535 = vxor.u32 %v519, 2147483648
    %v536 = vxor.u32 %v520, 2147483648
    %v537 = vxor.u32 %v521, 2147483648
    %v538 = vxor.u32 %v522, 2147483648
    %v539 = vxor.u32 %v523, 2147483648
    %v540 = vxor.u32 %v524, 2147483648
    %v541 = vxor.u32 %v525, 2147483648
    %v542 = vxor.u32 %v526, 2147483648
    %v543 = vxor.u32 %v527, 2147483648
    %v544 = vxor.u32 %v528, 2147483648
    %v545 = vmul.f32 %v529, 1.442695
    %v546 = vpow.pop %v545
    %v547 = vmul.f32 %v530, 1.442695
    %v548 = vpow.pop %v547
    %v549 = vmul.f32 %v531, 1.442695
    %v550 = vpow.pop %v549
    %v551 = vmul.f32 %v532, 1.442695
    %v552 = vpow.pop %v551
    %v553 = vmul.f32 %v533, 1.442695
    %v554 = vpow.pop %v553
    %v555 = vmul.f32 %v534, 1.442695
    %v556 = vpow.pop %v555
    %v557 = vmul.f32 %v535, 1.442695
    %v558 = vpow.pop %v557
    %v559 = vmul.f32 %v536, 1.442695
    %v560 = vpow.pop %v559
    %v561 = vmul.f32 %v537, 1.442695
    %v562 = vpow.pop %v561
    %v563 = vmul.f32 %v538, 1.442695
    %v564 = vpow.pop %v563
    %v565 = vmul.f32 %v539, 1.442695
    %v566 = vpow.pop %v565
    %v567 = vmul.f32 %v540, 1.442695
    %v568 = vpow.pop %v567
    %v569 = vmul.f32 %v541, 1.442695
    %v570 = vpow.pop %v569
    %v571 = vmul.f32 %v542, 1.442695
    %v572 = vpow.pop %v571
    %v573 = vmul.f32 %v543, 1.442695
    %v574 = vpow.pop %v573
    %v575 = vmul.f32 %v544, 1.442695
    %v576 = vpow.pop %v575
    %v577 = vadd.f32 %v546, 1.0
    %v578 = vadd.f32 %v548, 1.0
    %v579 = vadd.f32 %v550, 1.0
    %v580 = vadd.f32 %v552, 1.0
    %v581 = vadd.f32 %v554, 1.0
    %v582 = vadd.f32 %v556, 1.0
    %v583 = vadd.f32 %v558, 1.0
    %v584 = vadd.f32 %v560, 1.0
    %v585 = vadd.f32 %v562, 1.0
    %v586 = vadd.f32 %v564, 1.0
    %v587 = vadd.f32 %v566, 1.0
    %v588 = vadd.f32 %v568, 1.0
    %v589 = vadd.f32 %v570, 1.0
    %v590 = vadd.f32 %v572, 1.0
    %v591 = vadd.f32 %v574, 1.0
    %v592 = vadd.f32 %v576, 1.0
    %v593 = vrcp.pop %v577
    %v594 = vmul.f32 1.0, %v593
    %v595 = vrcp.pop %v578
    %v596 = vmul.f32 1.0, %v595
    %v597 = vrcp.pop %v579
    %v598 = vmul.f32 1.0, %v597
    %v599 = vrcp.pop %v580
    %v600 = vmul.f32 1.0, %v599
    %v601 = vrcp.pop %v581
    %v602 = vmul.f32 1.0, %v601
    %v603 = vrcp.pop %v582
    %v604 = vmul.f32 1.0, %v603
    %v605 = vrcp.pop %v583
    %v606 = vmul.f32 1.0, %v605
    %v607 = vrcp.pop %v584
    %v608 = vmul.f32 1.0, %v607
    %v609 = vrcp.pop %v585
    %v610 = vmul.f32 1.0, %v609
    %v611 = vrcp.pop %v586
    %v612 = vmul.f32 1.0, %v611
    %v613 = vrcp.pop %v587
    %v614 = vmul.f32 1.0, %v613
    %v615 = vrcp.pop %v588
    %v616 = vmul.f32 1.0, %v615
    %v617 = vrcp.pop %v589
    %v618 = vmul.f32 1.0, %v617
    %v619 = vrcp.pop %v590
    %v620 = vmul.f32 1.0, %v619
    %v621 = vrcp.pop %v591
    %v622 = vmul.f32 1.0, %v621
    %v623 = vrcp.pop %v592
    %v624 = vmul.f32 1.0, %v623
    %v625 = vmul.f32 %v513, %v594
    %v626 = vmul.f32 %v514, %v596
    %v627 = vmul.f32 %v515, %v598
    %v628 = vmul.f32 %v516, %v600
    %v629 = vmul.f32 %v517, %v602
    %v630 = vmul.f32 %v518, %v604
    %v631 = vmul.f32 %v519, %v606
    %v632 = vmul.f32 %v520, %v608
    %v633 = vmul.f32 %v521, %v610
    %v634 = vmul.f32 %v522, %v612
    %v635 = vmul.f32 %v523, %v614
    %v636 = vmul.f32 %v524, %v616
    %v637 = vmul.f32 %v525, %v618
    %v638 = vmul.f32 %v526, %v620
    %v639 = vmul.f32 %v527, %v622
    %v640 = vmul.f32 %v528, %v624
    %s641 = scalar_lea.vmem %s1, 32
    %v642 = vld [vmem:[%s641] sm:$0xff]
    %v643 = vld [vmem:[%s641 + $0x8] sm:$0xff]
    %v644 = vld [vmem:[%s641 + $0x10] sm:$0xff]
    %v645 = vld [vmem:[%s641 + $0x18] sm:$0xff]
    %s646 = scalar_lea.vmem %s2, 1
    %v647 = vld [vmem:[%s646] sm:$0x1]
    %v649 = vlaneseq
    %v650 = vshrl.u32 %v649, 7
    %v651 = vsub.s32 0, %v650
    %v652 = vrot.slane %v647, %v651
    %654 = vmatprep.subr.mxu0 0.0
    %655 = vmatpush1.msra.mxu0 %v642
    %656 = vmatprep.subr.mxu0 0.0
    %657 = vmatpush1.msra.mxu0 %v643
    %658 = vmatprep.subr.mxu0 0.0
    %659 = vmatpush1.msra.mxu0 %v644
    %660 = vmatprep.subr.mxu0 0.0
    %661 = vmatpush1.msra.mxu0 %v645
    %662 = vmatprep.subr.mxu0 0.0
    %663 = vmatpush1.msra.mxu0 0.0
    %664 = vmatprep.subr.mxu0 0.0
    %665 = vmatpush1.msra.mxu0 0.0
    %666 = vmatprep.subr.mxu0 0.0
    %667 = vmatpush1.msra.mxu0 0.0
    %668 = vmatprep.subr.mxu0 0.0
    %669 = vmatpush1.msra.mxu0 0.0
    %670 = vmatprep.subr.mxu0 0.0
    %671 = vmatpush1.msra.mxu0 0.0
    %672 = vmatprep.subr.mxu0 0.0
    %673 = vmatpush1.msra.mxu0 0.0
    %674 = vmatprep.subr.mxu0 0.0
    %675 = vmatpush1.msra.mxu0 0.0
    %676 = vmatprep.subr.mxu0 0.0
    %677 = vmatpush1.msra.mxu0 0.0
    %678 = vmatprep.subr.mxu0 0.0
    %679 = vmatpush1.msra.mxu0 0.0
    %680 = vmatprep.subr.mxu0 0.0
    %681 = vmatpush1.msra.mxu0 0.0
    %682 = vmatprep.subr.mxu0 0.0
    %683 = vmatpush1.msra.mxu0 0.0
    %684 = vmatprep.subr.mxu0 0.0
    %685 = vmatpush1.msra.mxu0 0.0
    %686 = vmatprep.subr.mxu0 0.0
    %687 = vmatpush1.msra.mxu0 0.0
    %688 = vmatprep.subr.mxu0 0.0
    %689 = vmatpush1.msra.mxu0 0.0
    %690 = vmatprep.subr.mxu0 0.0
    %691 = vmatpush1.msra.mxu0 0.0
    %692 = vmatprep.subr.mxu0 0.0
    %693 = vmatpush1.msra.mxu0 0.0
    %694 = vmatprep.subr.mxu0 0.0
    %695 = vmatpush1.msra.mxu0 0.0
    %696 = vmatprep.subr.mxu0 0.0
    %697 = vmatpush1.msra.mxu0 0.0
    %698 = vmatprep.subr.mxu0 0.0
    %699 = vmatpush1.msra.mxu0 0.0
    %700 = vmatprep.subr.mxu0 0.0
    %701 = vmatpush1.msra.mxu0 0.0
    %702 = vmatprep.subr.mxu0 0.0
    %703 = vmatpush1.msra.mxu0 0.0
    %704 = vmatprep.subr.mxu0 0.0
    %705 = vmatpush1.msra.mxu0 0.0
    %706 = vmatprep.subr.mxu0 0.0
    %707 = vmatpush1.msra.mxu0 0.0
    %708 = vmatprep.subr.mxu0 0.0
    %709 = vmatpush1.msra.mxu0 0.0
    %710 = vmatprep.subr.mxu0 0.0
    %711 = vmatpush1.msra.mxu0 0.0
    %712 = vmatprep.subr.mxu0 0.0
    %713 = vmatpush1.msra.mxu0 0.0
    %714 = vmatprep.subr.mxu0 0.0
    %715 = vmatpush1.msra.mxu0 0.0
    %716 = vmatprep.subr.mxu0 0.0
    %717 = vmatpush1.msra.mxu0 0.0
    %718 = vmatprep.mubr.f32.mxu0 0.0
    %719 = vmatmul.mubr.f32.gmra.mrb[0].mxu0 %v83
    %v720 = vpop.f32.mrb[0].mxu0
    %v721 = vadd.f32 %v652, %v720
    %v722 = vpop.f32.mrb[0].mxu0
    %723 = vmatprep.mubr.f32.mxu0 0.0
    %724 = vmatmul.mubr.f32.gmra.mrb[0].mxu0 %v86
    %v725 = vpop.f32.mrb[0].mxu0
    %v726 = vadd.f32 %v652, %v725
    %v727 = vpop.f32.mrb[0].mxu0
    %728 = vmatprep.mubr.f32.mxu0 0.0
    %729 = vmatmul.mubr.f32.gmra.mrb[0].mxu0 %v89
    %v730 = vpop.f32.mrb[0].mxu0
    %v731 = vadd.f32 %v652, %v730
    %v732 = vpop.f32.mrb[0].mxu0
    %733 = vmatprep.mubr.f32.mxu0 0.0
    %734 = vmatmul.mubr.f32.gmra.mrb[0].mxu0 %v92
    %v735 = vpop.f32.mrb[0].mxu0
    %v736 = vadd.f32 %v652, %v735
    %v737 = vpop.f32.mrb[0].mxu0
    %738 = vmatprep.mubr.f32.mxu0 0.0
    %739 = vmatmul.mubr.f32.gmra.mrb[0].mxu0 %v95
    %v740 = vpop.f32.mrb[0].mxu0
    %v741 = vadd.f32 %v652, %v740
    %v742 = vpop.f32.mrb[0].mxu0
    %743 = vmatprep.mubr.f32.mxu0 0.0
    %744 = vmatmul.mubr.f32.gmra.mrb[0].mxu0 %v98
    %v745 = vpop.f32.mrb[0].mxu0
    %v746 = vadd.f32 %v652, %v745
    %v747 = vpop.f32.mrb[0].mxu0
    %748 = vmatprep.mubr.f32.mxu0 0.0
    %749 = vmatmul.mubr.f32.gmra.mrb[0].mxu0 %v101
    %v750 = vpop.f32.mrb[0].mxu0
    %v751 = vadd.f32 %v652, %v750
    %v752 = vpop.f32.mrb[0].mxu0
    %753 = vmatprep.mubr.f32.mxu0 0.0
    %754 = vmatmul.mubr.f32.gmra.mrb[0].mxu0 %v104
    %v755 = vpop.f32.mrb[0].mxu0
    %v756 = vadd.f32 %v652, %v755
    %v757 = vpop.f32.mrb[0].mxu0
    %758 = vmatprep.mubr.f32.mxu0 0.0
    %759 = vmatmul.mubr.f32.gmra.mrb[0].mxu0 %v107
    %v760 = vpop.f32.mrb[0].mxu0
    %v761 = vadd.f32 %v652, %v760
    %v762 = vpop.f32.mrb[0].mxu0
    %763 = vmatprep.mubr.f32.mxu0 0.0
    %764 = vmatmul.mubr.f32.gmra.mrb[0].mxu0 %v110
    %v765 = vpop.f32.mrb[0].mxu0
    %v766 = vadd.f32 %v652, %v765
    %v767 = vpop.f32.mrb[0].mxu0
    %768 = vmatprep.mubr.f32.mxu0 0.0
    %769 = vmatmul.mubr.f32.gmra.mrb[0].mxu0 %v113
    %v770 = vpop.f32.mrb[0].mxu0
    %v771 = vadd.f32 %v652, %v770
    %v772 = vpop.f32.mrb[0].mxu0
    %773 = vmatprep.mubr.f32.mxu0 0.0
    %774 = vmatmul.mubr.f32.gmra.mrb[0].mxu0 %v116
    %v775 = vpop.f32.mrb[0].mxu0
    %v776 = vadd.f32 %v652, %v775
    %v777 = vpop.f32.mrb[0].mxu0
    %778 = vmatprep.mubr.f32.mxu0 0.0
    %779 = vmatmul.mubr.f32.gmra.mrb[0].mxu0 %v119
    %v780 = vpop.f32.mrb[0].mxu0
    %v781 = vadd.f32 %v652, %v780
    %v782 = vpop.f32.mrb[0].mxu0
    %783 = vmatprep.mubr.f32.mxu0 0.0
    %784 = vmatmul.mubr.f32.gmra.mrb[0].mxu0 %v122
    %v785 = vpop.f32.mrb[0].mxu0
    %v786 = vadd.f32 %v652, %v785
    %v787 = vpop.f32.mrb[0].mxu0
    %788 = vmatprep.mubr.f32.mxu0 0.0
    %789 = vmatmul.mubr.f32.gmra.mrb[0].mxu0 %v125
    %v790 = vpop.f32.mrb[0].mxu0
    %v791 = vadd.f32 %v652, %v790
    %v792 = vpop.f32.mrb[0].mxu0
    %793 = vmatprep.mubr.f32.mxu0 0.0
    %794 = vmatmul.mubr.f32.gmra.mrb[0].mxu0 %v128
    %v795 = vpop.f32.mrb[0].mxu0
    %v796 = vadd.f32 %v652, %v795
    %v797 = vpop.f32.mrb[0].mxu0
    %798 = vdwg.mxu0
    %s799 = scalar_lea.vmem %s3, 1
    %v800 = vld [vmem:[%s799] sm:$0x1]
    %s801 = scalar_lea.vmem %s4, 1
    %v802 = vld [vmem:[%s801] sm:$0x1]
    %803 = vadd.xlane.f32.xlu0 %v721
    %v804 = vpop.xlane.xlu0 %803
    %805 = vadd.xlane.f32.xlu0 %v726
    %v806 = vpop.xlane.xlu0 %805
    %807 = vadd.xlane.f32.xlu0 %v731
    %v808 = vpop.xlane.xlu0 %807
    %809 = vadd.xlane.f32.xlu0 %v736
    %v810 = vpop.xlane.xlu0 %809
    %811 = vadd.xlane.f32.xlu0 %v741
    %v812 = vpop.xlane.xlu0 %811
    %813 = vadd.xlane.f32.xlu0 %v746
    %v814 = vpop.xlane.xlu0 %813
    %815 = vadd.xlane.f32.xlu0 %v751
    %v816 = vpop.xlane.xlu0 %815
    %817 = vadd.xlane.f32.xlu0 %v756
    %v818 = vpop.xlane.xlu0 %817
    %819 = vadd.xlane.f32.xlu0 %v761
    %v820 = vpop.xlane.xlu0 %819
    %821 = vadd.xlane.f32.xlu0 %v766
    %v822 = vpop.xlane.xlu0 %821
    %823 = vadd.xlane.f32.xlu0 %v771
    %v824 = vpop.xlane.xlu0 %823
    %825 = vadd.xlane.f32.xlu0 %v776
    %v826 = vpop.xlane.xlu0 %825
    %827 = vadd.xlane.f32.xlu0 %v781
    %v828 = vpop.xlane.xlu0 %827
    %829 = vadd.xlane.f32.xlu0 %v786
    %v830 = vpop.xlane.xlu0 %829
    %831 = vadd.xlane.f32.xlu0 %v791
    %v832 = vpop.xlane.xlu0 %831
    %833 = vadd.xlane.f32.xlu0 %v796
    %v834 = vpop.xlane.xlu0 %833
    %v835 = vmul.f32 %v721, %v721
    %v836 = vmul.f32 %v726, %v726
    %v837 = vmul.f32 %v731, %v731
    %v838 = vmul.f32 %v736, %v736
    %v839 = vmul.f32 %v741, %v741
    %v840 = vmul.f32 %v746, %v746
    %v841 = vmul.f32 %v751, %v751
    %v842 = vmul.f32 %v756, %v756
    %v843 = vmul.f32 %v761, %v761
    %v844 = vmul.f32 %v766, %v766
    %v845 = vmul.f32 %v771, %v771
    %v846 = vmul.f32 %v776, %v776
    %v847 = vmul.f32 %v781, %v781
    %v848 = vmul.f32 %v786, %v786
    %v849 = vmul.f32 %v791, %v791
    %v850 = vmul.f32 %v796, %v796
    %851 = vadd.xlane.f32.xlu0 %v835
    %v852 = vpop.xlane.xlu0 %851
    %853 = vadd.xlane.f32.xlu0 %v836
    %v854 = vpop.xlane.xlu0 %853
    %855 = vadd.xlane.f32.xlu0 %v837
    %v856 = vpop.xlane.xlu0 %855
    %857 = vadd.xlane.f32.xlu0 %v838
    %v858 = vpop.xlane.xlu0 %857
    %859 = vadd.xlane.f32.xlu0 %v839
    %v860 = vpop.xlane.xlu0 %859
    %861 = vadd.xlane.f32.xlu0 %v840
    %v862 = vpop.xlane.xlu0 %861
    %863 = vadd.xlane.f32.xlu0 %v841
    %v864 = vpop.xlane.xlu0 %863
    %865 = vadd.xlane.f32.xlu0 %v842
    %v866 = vpop.xlane.xlu0 %865
    %867 = vadd.xlane.f32.xlu0 %v843
    %v868 = vpop.xlane.xlu0 %867
    %869 = vadd.xlane.f32.xlu0 %v844
    %v870 = vpop.xlane.xlu0 %869
    %871 = vadd.xlane.f32.xlu0 %v845
    %v872 = vpop.xlane.xlu0 %871
    %873 = vadd.xlane.f32.xlu0 %v846
    %v874 = vpop.xlane.xlu0 %873
    %875 = vadd.xlane.f32.xlu0 %v847
    %v876 = vpop.xlane.xlu0 %875
    %877 = vadd.xlane.f32.xlu0 %v848
    %v878 = vpop.xlane.xlu0 %877
    %879 = vadd.xlane.f32.xlu0 %v849
    %v880 = vpop.xlane.xlu0 %879
    %881 = vadd.xlane.f32.xlu0 %v850
    %v882 = vpop.xlane.xlu0 %881
    %v883 = vmul.f32 %v804, 0.0078125
    %v884 = vmul.f32 %v806, 0.0078125
    %v885 = vmul.f32 %v808, 0.0078125
    %v886 = vmul.f32 %v810, 0.0078125
    %v887 = vmul.f32 %v812, 0.0078125
    %v888 = vmul.f32 %v814, 0.0078125
    %v889 = vmul.f32 %v816, 0.0078125
    %v890 = vmul.f32 %v818, 0.0078125
    %v891 = vmul.f32 %v820, 0.0078125
    %v892 = vmul.f32 %v822, 0.0078125
    %v893 = vmul.f32 %v824, 0.0078125
    %v894 = vmul.f32 %v826, 0.0078125
    %v895 = vmul.f32 %v828, 0.0078125
    %v896 = vmul.f32 %v830, 0.0078125
    %v897 = vmul.f32 %v832, 0.0078125
    %v898 = vmul.f32 %v834, 0.0078125
    %v899 = vmul.f32 %v852, 0.0078125
    %v900 = vmul.f32 %v854, 0.0078125
    %v901 = vmul.f32 %v856, 0.0078125
    %v902 = vmul.f32 %v858, 0.0078125
    %v903 = vmul.f32 %v860, 0.0078125
    %v904 = vmul.f32 %v862, 0.0078125
    %v905 = vmul.f32 %v864, 0.0078125
    %v906 = vmul.f32 %v866, 0.0078125
    %v907 = vmul.f32 %v868, 0.0078125
    %v908 = vmul.f32 %v870, 0.0078125
    %v909 = vmul.f32 %v872, 0.0078125
    %v910 = vmul.f32 %v874, 0.0078125
    %v911 = vmul.f32 %v876, 0.0078125
    %v912 = vmul.f32 %v878, 0.0078125
    %v913 = vmul.f32 %v880, 0.0078125
    %v914 = vmul.f32 %v882, 0.0078125
    %v915 = vmul.f32 %v883, %v883
    %v916 = vmul.f32 %v884, %v884
    %v917 = vmul.f32 %v885, %v885
    %v918 = vmul.f32 %v886, %v886
    %v919 = vmul.f32 %v887, %v887
    %v920 = vmul.f32 %v888, %v888
    %v921 = vmul.f32 %v889, %v889
    %v922 = vmul.f32 %v890, %v890
    %v923 = vmul.f32 %v891, %v891
    %v924 = vmul.f32 %v892, %v892
    %v925 = vmul.f32 %v893, %v893
    %v926 = vmul.f32 %v894, %v894
    %v927 = vmul.f32 %v895, %v895
    %v928 = vmul.f32 %v896, %v896
    %v929 = vmul.f32 %v897, %v897
    %v930 = vmul.f32 %v898, %v898
    %v931 = vsub.f32 %v899, %v915
    %v932 = vsub.f32 %v900, %v916
    %v933 = vsub.f32 %v901, %v917
    %v934 = vsub.f32 %v902, %v918
    %v935 = vsub.f32 %v903, %v919
    %v936 = vsub.f32 %v904, %v920
    %v937 = vsub.f32 %v905, %v921
    %v938 = vsub.f32 %v906, %v922
    %v939 = vsub.f32 %v907, %v923
    %v940 = vsub.f32 %v908, %v924
    %v941 = vsub.f32 %v909, %v925
    %v942 = vsub.f32 %v910, %v926
    %v943 = vsub.f32 %v911, %v927
    %v944 = vsub.f32 %v912, %v928
    %v945 = vsub.f32 %v913, %v929
    %v946 = vsub.f32 %v914, %v930
    %v947 = vsub.f32 %v721, %v883
    %v948 = vsub.f32 %v726, %v884
    %v949 = vsub.f32 %v731, %v885
    %v950 = vsub.f32 %v736, %v886
    %v951 = vsub.f32 %v741, %v887
    %v952 = vsub.f32 %v746, %v888
    %v953 = vsub.f32 %v751, %v889
    %v954 = vsub.f32 %v756, %v890
    %v955 = vsub.f32 %v761, %v891
    %v956 = vsub.f32 %v766, %v892
    %v957 = vsub.f32 %v771, %v893
    %v958 = vsub.f32 %v776, %v894
    %v959 = vsub.f32 %v781, %v895
    %v960 = vsub.f32 %v786, %v896
    %v961 = vsub.f32 %v791, %v897
    %v962 = vsub.f32 %v796, %v898
    %v963 = vadd.f32 %v931, 1e-05
    %v964 = vadd.f32 %v932, 1e-05
    %v965 = vadd.f32 %v933, 1e-05
    %v966 = vadd.f32 %v934, 1e-05
    %v967 = vadd.f32 %v935, 1e-05
    %v968 = vadd.f32 %v936, 1e-05
    %v969 = vadd.f32 %v937, 1e-05
    %v970 = vadd.f32 %v938, 1e-05
    %v971 = vadd.f32 %v939, 1e-05
    %v972 = vadd.f32 %v940, 1e-05
    %v973 = vadd.f32 %v941, 1e-05
    %v974 = vadd.f32 %v942, 1e-05
    %v975 = vadd.f32 %v943, 1e-05
    %v976 = vadd.f32 %v944, 1e-05
    %v977 = vadd.f32 %v945, 1e-05
    %v978 = vadd.f32 %v946, 1e-05
    %v979 = vrsqrt.pop %v963
    %v980 = vrsqrt.pop %v964
    %v981 = vrsqrt.pop %v965
    %v982 = vrsqrt.pop %v966
    %v983 = vrsqrt.pop %v967
    %v984 = vrsqrt.pop %v968
    %v985 = vrsqrt.pop %v969
    %v986 = vrsqrt.pop %v970
    %v987 = vrsqrt.pop %v971
    %v988 = vrsqrt.pop %v972
    %v989 = vrsqrt.pop %v973
    %v990 = vrsqrt.pop %v974
    %v991 = vrsqrt.pop %v975
    %v992 = vrsqrt.pop %v976
    %v993 = vrsqrt.pop %v977
    %v994 = vrsqrt.pop %v978
    %v995 = vmul.f32 %v947, %v979
    %v996 = vmul.f32 %v948, %v980
    %v997 = vmul.f32 %v949, %v981
    %v998 = vmul.f32 %v950, %v982
    %v999 = vmul.f32 %v951, %v983
    %v1000 = vmul.f32 %v952, %v984
    %v1001 = vmul.f32 %v953, %v985
    %v1002 = vmul.f32 %v954, %v986
    %v1003 = vmul.f32 %v955, %v987
    %v1004 = vmul.f32 %v956, %v988
    %v1005 = vmul.f32 %v957, %v989
    %v1006 = vmul.f32 %v958, %v990
    %v1007 = vmul.f32 %v959, %v991
    %v1008 = vmul.f32 %v960, %v992
    %v1009 = vmul.f32 %v961, %v993
    %v1010 = vmul.f32 %v962, %v994
    %v1012 = vlaneseq
    %v1013 = vshrl.u32 %v1012, 7
    %v1014 = vsub.s32 0, %v1013
    %v1015 = vrot.slane %v800, %v1014
    %v1017 = vmul.f32 %v995, %v1015
    %v1018 = vmul.f32 %v996, %v1015
    %v1019 = vmul.f32 %v997, %v1015
    %v1020 = vmul.f32 %v998, %v1015
    %v1021 = vmul.f32 %v999, %v1015
    %v1022 = vmul.f32 %v1000, %v1015
    %v1023 = vmul.f32 %v1001, %v1015
    %v1024 = vmul.f32 %v1002, %v1015
    %v1025 = vmul.f32 %v1003, %v1015
    %v1026 = vmul.f32 %v1004, %v1015
    %v1027 = vmul.f32 %v1005, %v1015
    %v1028 = vmul.f32 %v1006, %v1015
    %v1029 = vmul.f32 %v1007, %v1015
    %v1030 = vmul.f32 %v1008, %v1015
    %v1031 = vmul.f32 %v1009, %v1015
    %v1032 = vmul.f32 %v1010, %v1015
    %v1034 = vlaneseq
    %v1035 = vshrl.u32 %v1034, 7
    %v1036 = vsub.s32 0, %v1035
    %v1037 = vrot.slane %v802, %v1036
    %v1039 = vadd.f32 %v1017, %v1037
    %v1040 = vadd.f32 %v1018, %v1037
    %v1041 = vadd.f32 %v1019, %v1037
    %v1042 = vadd.f32 %v1020, %v1037
    %v1043 = vadd.f32 %v1021, %v1037
    %v1044 = vadd.f32 %v1022, %v1037
    %v1045 = vadd.f32 %v1023, %v1037
    %v1046 = vadd.f32 %v1024, %v1037
    %v1047 = vadd.f32 %v1025, %v1037
    %v1048 = vadd.f32 %v1026, %v1037
    %v1049 = vadd.f32 %v1027, %v1037
    %v1050 = vadd.f32 %v1028, %v1037
    %v1051 = vadd.f32 %v1029, %v1037
    %v1052 = vadd.f32 %v1030, %v1037
    %v1053 = vadd.f32 %v1031, %v1037
    %v1054 = vadd.f32 %v1032, %v1037
    %v1055 = vxor.u32 %v1039, 2147483648
    %v1056 = vxor.u32 %v1040, 2147483648
    %v1057 = vxor.u32 %v1041, 2147483648
    %v1058 = vxor.u32 %v1042, 2147483648
    %v1059 = vxor.u32 %v1043, 2147483648
    %v1060 = vxor.u32 %v1044, 2147483648
    %v1061 = vxor.u32 %v1045, 2147483648
    %v1062 = vxor.u32 %v1046, 2147483648
    %v1063 = vxor.u32 %v1047, 2147483648
    %v1064 = vxor.u32 %v1048, 2147483648
    %v1065 = vxor.u32 %v1049, 2147483648
    %v1066 = vxor.u32 %v1050, 2147483648
    %v1067 = vxor.u32 %v1051, 2147483648
    %v1068 = vxor.u32 %v1052, 2147483648
    %v1069 = vxor.u32 %v1053, 2147483648
    %v1070 = vxor.u32 %v1054, 2147483648
    %v1071 = vmul.f32 %v1055, 1.442695
    %v1072 = vpow.pop %v1071
    %v1073 = vmul.f32 %v1056, 1.442695
    %v1074 = vpow.pop %v1073
    %v1075 = vmul.f32 %v1057, 1.442695
    %v1076 = vpow.pop %v1075
    %v1077 = vmul.f32 %v1058, 1.442695
    %v1078 = vpow.pop %v1077
    %v1079 = vmul.f32 %v1059, 1.442695
    %v1080 = vpow.pop %v1079
    %v1081 = vmul.f32 %v1060, 1.442695
    %v1082 = vpow.pop %v1081
    %v1083 = vmul.f32 %v1061, 1.442695
    %v1084 = vpow.pop %v1083
    %v1085 = vmul.f32 %v1062, 1.442695
    %v1086 = vpow.pop %v1085
    %v1087 = vmul.f32 %v1063, 1.442695
    %v1088 = vpow.pop %v1087
    %v1089 = vmul.f32 %v1064, 1.442695
    %v1090 = vpow.pop %v1089
    %v1091 = vmul.f32 %v1065, 1.442695
    %v1092 = vpow.pop %v1091
    %v1093 = vmul.f32 %v1066, 1.442695
    %v1094 = vpow.pop %v1093
    %v1095 = vmul.f32 %v1067, 1.442695
    %v1096 = vpow.pop %v1095
    %v1097 = vmul.f32 %v1068, 1.442695
    %v1098 = vpow.pop %v1097
    %v1099 = vmul.f32 %v1069, 1.442695
    %v1100 = vpow.pop %v1099
    %v1101 = vmul.f32 %v1070, 1.442695
    %v1102 = vpow.pop %v1101
    %v1103 = vadd.f32 %v1072, 1.0
    %v1104 = vadd.f32 %v1074, 1.0
    %v1105 = vadd.f32 %v1076, 1.0
    %v1106 = vadd.f32 %v1078, 1.0
    %v1107 = vadd.f32 %v1080, 1.0
    %v1108 = vadd.f32 %v1082, 1.0
    %v1109 = vadd.f32 %v1084, 1.0
    %v1110 = vadd.f32 %v1086, 1.0
    %v1111 = vadd.f32 %v1088, 1.0
    %v1112 = vadd.f32 %v1090, 1.0
    %v1113 = vadd.f32 %v1092, 1.0
    %v1114 = vadd.f32 %v1094, 1.0
    %v1115 = vadd.f32 %v1096, 1.0
    %v1116 = vadd.f32 %v1098, 1.0
    %v1117 = vadd.f32 %v1100, 1.0
    %v1118 = vadd.f32 %v1102, 1.0
    %v1119 = vrcp.pop %v1103
    %v1120 = vmul.f32 1.0, %v1119
    %v1121 = vrcp.pop %v1104
    %v1122 = vmul.f32 1.0, %v1121
    %v1123 = vrcp.pop %v1105
    %v1124 = vmul.f32 1.0, %v1123
    %v1125 = vrcp.pop %v1106
    %v1126 = vmul.f32 1.0, %v1125
    %v1127 = vrcp.pop %v1107
    %v1128 = vmul.f32 1.0, %v1127
    %v1129 = vrcp.pop %v1108
    %v1130 = vmul.f32 1.0, %v1129
    %v1131 = vrcp.pop %v1109
    %v1132 = vmul.f32 1.0, %v1131
    %v1133 = vrcp.pop %v1110
    %v1134 = vmul.f32 1.0, %v1133
    %v1135 = vrcp.pop %v1111
    %v1136 = vmul.f32 1.0, %v1135
    %v1137 = vrcp.pop %v1112
    %v1138 = vmul.f32 1.0, %v1137
    %v1139 = vrcp.pop %v1113
    %v1140 = vmul.f32 1.0, %v1139
    %v1141 = vrcp.pop %v1114
    %v1142 = vmul.f32 1.0, %v1141
    %v1143 = vrcp.pop %v1115
    %v1144 = vmul.f32 1.0, %v1143
    %v1145 = vrcp.pop %v1116
    %v1146 = vmul.f32 1.0, %v1145
    %v1147 = vrcp.pop %v1117
    %v1148 = vmul.f32 1.0, %v1147
    %v1149 = vrcp.pop %v1118
    %v1150 = vmul.f32 1.0, %v1149
    %v1151 = vmul.f32 %v1039, %v1120
    %v1152 = vmul.f32 %v1040, %v1122
    %v1153 = vmul.f32 %v1041, %v1124
    %v1154 = vmul.f32 %v1042, %v1126
    %v1155 = vmul.f32 %v1043, %v1128
    %v1156 = vmul.f32 %v1044, %v1130
    %v1157 = vmul.f32 %v1045, %v1132
    %v1158 = vmul.f32 %v1046, %v1134
    %v1159 = vmul.f32 %v1047, %v1136
    %v1160 = vmul.f32 %v1048, %v1138
    %v1161 = vmul.f32 %v1049, %v1140
    %v1162 = vmul.f32 %v1050, %v1142
    %v1163 = vmul.f32 %v1051, %v1144
    %v1164 = vmul.f32 %v1052, %v1146
    %v1165 = vmul.f32 %v1053, %v1148
    %v1166 = vmul.f32 %v1054, %v1150
    %v1167 = vld [vmem:[%s6] sm:$0x7]
    %v1168 = vld [vmem:[%s6 + $0x4] sm:$0x7]
    %v1169 = vld [vmem:[%s7] sm:$0x7]
    %v1170 = vld [vmem:[%s7 + $0x4] sm:$0x7]
    %v1171 = vld [vmem:[%s8] sm:$0x7]
    %v1172 = vld [vmem:[%s8 + $0x4] sm:$0x7]
    %v1173 = vld [vmem:[#allocation2] sm:$0xf]
    %v1174 = vld [vmem:[#allocation2 + $0x4] sm:$0xf]
    %v1175 = vld [vmem:[#allocation2 + $0x8] sm:$0xf]
    %v1176 = vld [vmem:[#allocation2 + $0xc] sm:$0xf]
    %v1177 = vld [vmem:[#allocation2 + $0x10] sm:$0xf]
    %v1178 = vld [vmem:[#allocation2 + $0x14] sm:$0xf]
    %v1179 = vld [vmem:[#allocation2 + $0x18] sm:$0xf]
    %v1180 = vld [vmem:[#allocation2 + $0x1c] sm:$0xf]
    %v1181 = vld [vmem:[#allocation2 + $0x20] sm:$0xf]
    %v1182 = vld [vmem:[#allocation2 + $0x24] sm:$0xf]
    %v1183 = vld [vmem:[#allocation2 + $0x28] sm:$0xf]
    %v1184 = vld [vmem:[#allocation2 + $0x2c] sm:$0xf]
    %v1185 = vld [vmem:[#allocation2 + $0x30] sm:$0xf]
    %v1186 = vld [vmem:[#allocation2 + $0x34] sm:$0xf]
    %v1187 = vld [vmem:[#allocation2 + $0x38] sm:$0xf]
    %v1188 = vld [vmem:[#allocation2 + $0x3c] sm:$0xf]
    %v1189 = vpack.c.bf16 %v626, %v625
    %v1190 = vpack.c.bf16 %v628, %v627
    %v1191 = vpack.c.bf16 %v630, %v629
    %v1192 = vpack.c.bf16 %v632, %v631
    %v1193 = vpack.c.bf16 %v634, %v633
    %v1194 = vpack.c.bf16 %v636, %v635
    %v1195 = vpack.c.bf16 %v638, %v637
    %v1196 = vpack.c.bf16 %v640, %v639
    %v1197 = vlaneseq
    %v1198 = vshrl.u32 %v1197, 7
    %v1199 = vsub.s32 0, %v1198
    %v1200 = vrot.slane %v1167, %v1199
    %v1217 = vunpack.c.l.b16 %v1173
    %v1218 = vunpack.c.l.b16 %v1174
    %v1219 = vunpack.c.l.b16 %v1175
    %v1220 = vunpack.c.l.b16 %v1176
    %v1221 = vunpack.c.l.b16 %v1177
    %v1222 = vunpack.c.l.b16 %v1178
    %v1223 = vunpack.c.l.b16 %v1179
    %v1224 = vunpack.c.l.b16 %v1180
    %v1225 = vunpack.c.l.b16 %v1181
    %v1226 = vunpack.c.l.b16 %v1182
    %v1227 = vunpack.c.l.b16 %v1183
    %v1228 = vunpack.c.l.b16 %v1184
    %v1229 = vunpack.c.l.b16 %v1185
    %v1230 = vunpack.c.l.b16 %v1186
    %v1231 = vunpack.c.l.b16 %v1187
    %v1232 = vunpack.c.l.b16 %v1188
    %v1233 = vpack.c.b16 %v1218, %v1217
    %v1234 = vpack.c.b16 %v1220, %v1219
    %v1235 = vpack.c.b16 %v1222, %v1221
    %v1236 = vpack.c.b16 %v1224, %v1223
    %v1237 = vpack.c.b16 %v1226, %v1225
    %v1238 = vpack.c.b16 %v1228, %v1227
    %v1239 = vpack.c.b16 %v1230, %v1229
    %v1240 = vpack.c.b16 %v1232, %v1231
    %1249 = vmatprep.subr.bf16.mxu0 0
    %1250 = vmatpush1.bf16.msra.mxu0 %v1233
    %1251 = vmatprep.subr.bf16.mxu0 0
    %1252 = vmatpush1.bf16.msra.mxu0 %v1234
    %1253 = vmatprep.subr.bf16.mxu0 0
    %1254 = vmatpush1.bf16.msra.mxu0 %v1235
    %1255 = vmatprep.subr.bf16.mxu0 0
    %1256 = vmatpush1.bf16.msra.mxu0 %v1236
    %1257 = vmatprep.subr.bf16.mxu0 0
    %1258 = vmatpush1.bf16.msra.mxu0 %v1237
    %1259 = vmatprep.subr.bf16.mxu0 0
    %1260 = vmatpush1.bf16.msra.mxu0 %v1238
    %1261 = vmatprep.subr.bf16.mxu0 0
    %1262 = vmatpush1.bf16.msra.mxu0 %v1239
    %1263 = vmatprep.subr.bf16.mxu0 0
    %1264 = vmatpush1.bf16.msra.mxu0 %v1240
    %1265 = vmatprep.subr.bf16.mxu0 0
    %1266 = vmatpush1.bf16.msra.mxu0 0
    %1267 = vmatprep.subr.bf16.mxu0 0
    %1268 = vmatpush1.bf16.msra.mxu0 0
    %1269 = vmatprep.subr.bf16.mxu0 0
    %1270 = vmatpush1.bf16.msra.mxu0 0
    %1271 = vmatprep.subr.bf16.mxu0 0
    %1272 = vmatpush1.bf16.msra.mxu0 0
    %1273 = vmatprep.subr.bf16.mxu0 0
    %1274 = vmatpush1.bf16.msra.mxu0 0
    %1275 = vmatprep.subr.bf16.mxu0 0
    %1276 = vmatpush1.bf16.msra.mxu0 0
    %1277 = vmatprep.subr.bf16.mxu0 0
    %1278 = vmatpush1.bf16.msra.mxu0 0
    %1279 = vmatprep.subr.bf16.mxu0 0
    %1280 = vmatpush1.bf16.msra.mxu0 0
    %1281 = vmatprep.mubr.bf16.mxu0 0
    %1282 = vmatmul.mubr.bf16.gmra.mrb[0].mxu0 %v1189
    %v1283 = vpop.f32.mrb[0].mxu0
    %v1284 = vadd.f32 %v1200, %v1283
    %v1285 = vpop.f32.mrb[0].mxu0
    %v1286 = vpop.f32.mrb[0].mxu0
    %v1287 = vadd.f32 %v1200, %v1286
    %v1288 = vpop.f32.mrb[0].mxu0
    %1289 = vmatprep.mubr.bf16.mxu0 0
    %1290 = vmatmul.mubr.bf16.gmra.mrb[0].mxu0 %v1190
    %v1291 = vpop.f32.mrb[0].mxu0
    %v1292 = vadd.f32 %v1200, %v1291
    %v1293 = vpop.f32.mrb[0].mxu0
    %v1294 = vpop.f32.mrb[0].mxu0
    %v1295 = vadd.f32 %v1200, %v1294
    %v1296 = vpop.f32.mrb[0].mxu0
    %1297 = vmatprep.mubr.bf16.mxu0 0
    %1298 = vmatmul.mubr.bf16.gmra.mrb[0].mxu0 %v1191
    %v1299 = vpop.f32.mrb[0].mxu0
    %v1300 = vadd.f32 %v1200, %v1299
    %v1301 = vpop.f32.mrb[0].mxu0
    %v1302 = vpop.f32.mrb[0].mxu0
    %v1303 = vadd.f32 %v1200, %v1302
    %v1304 = vpop.f32.mrb[0].mxu0
    %1305 = vmatprep.mubr.bf16.mxu0 0
    %1306 = vmatmul.mubr.bf16.gmra.mrb[0].mxu0 %v1192
    %v1307 = vpop.f32.mrb[0].mxu0
    %v1308 = vadd.f32 %v1200, %v1307
    %v1309 = vpop.f32.mrb[0].mxu0
    %v1310 = vpop.f32.mrb[0].mxu0
    %v1311 = vadd.f32 %v1200, %v1310
    %v1312 = vpop.f32.mrb[0].mxu0
    %1313 = vmatprep.mubr.bf16.mxu0 0
    %1314 = vmatmul.mubr.bf16.gmra.mrb[0].mxu0 %v1193
    %v1315 = vpop.f32.mrb[0].mxu0
    %v1316 = vadd.f32 %v1200, %v1315
    %v1317 = vpop.f32.mrb[0].mxu0
    %v1318 = vpop.f32.mrb[0].mxu0
    %v1319 = vadd.f32 %v1200, %v1318
    %v1320 = vpop.f32.mrb[0].mxu0
    %1321 = vmatprep.mubr.bf16.mxu0 0
    %1322 = vmatmul.mubr.bf16.gmra.mrb[0].mxu0 %v1194
    %v1323 = vpop.f32.mrb[0].mxu0
    %v1324 = vadd.f32 %v1200, %v1323
    %v1325 = vpop.f32.mrb[0].mxu0
    %v1326 = vpop.f32.mrb[0].mxu0
    %v1327 = vadd.f32 %v1200, %v1326
    %v1328 = vpop.f32.mrb[0].mxu0
    %1329 = vmatprep.mubr.bf16.mxu0 0
    %1330 = vmatmul.mubr.bf16.gmra.mrb[0].mxu0 %v1195
    %v1331 = vpop.f32.mrb[0].mxu0
    %v1332 = vadd.f32 %v1200, %v1331
    %v1333 = vpop.f32.mrb[0].mxu0
    %v1334 = vpop.f32.mrb[0].mxu0
    %v1335 = vadd.f32 %v1200, %v1334
    %v1336 = vpop.f32.mrb[0].mxu0
    %1337 = vmatprep.mubr.bf16.mxu0 0
    %1338 = vmatmul.mubr.bf16.gmra.mrb[0].mxu0 %v1196
    %v1339 = vpop.f32.mrb[0].mxu0
    %v1340 = vadd.f32 %v1200, %v1339
    %v1341 = vpop.f32.mrb[0].mxu0
    %v1342 = vpop.f32.mrb[0].mxu0
    %v1343 = vadd.f32 %v1200, %v1342
    %v1344 = vpop.f32.mrb[0].mxu0
    %1345 = vdwg.mxu0
    %1346 = vadd.xlane.f32.xlu0 %v1284
    %v1347 = vpop.xlane.xlu0 %1346
    %1348 = vadd.xlane.f32.xlu0 %v1287
    %v1349 = vpop.xlane.xlu0 %1348
    %1350 = vadd.xlane.f32.xlu0 %v1292
    %v1351 = vpop.xlane.xlu0 %1350
    %1352 = vadd.xlane.f32.xlu0 %v1295
    %v1353 = vpop.xlane.xlu0 %1352
    %1354 = vadd.xlane.f32.xlu0 %v1300
    %v1355 = vpop.xlane.xlu0 %1354
    %1356 = vadd.xlane.f32.xlu0 %v1303
    %v1357 = vpop.xlane.xlu0 %1356
    %1358 = vadd.xlane.f32.xlu0 %v1308
    %v1359 = vpop.xlane.xlu0 %1358
    %1360 = vadd.xlane.f32.xlu0 %v1311
    %v1361 = vpop.xlane.xlu0 %1360
    %1362 = vadd.xlane.f32.xlu0 %v1316
    %v1363 = vpop.xlane.xlu0 %1362
    %1364 = vadd.xlane.f32.xlu0 %v1319
    %v1365 = vpop.xlane.xlu0 %1364
    %1366 = vadd.xlane.f32.xlu0 %v1324
    %v1367 = vpop.xlane.xlu0 %1366
    %1368 = vadd.xlane.f32.xlu0 %v1327
    %v1369 = vpop.xlane.xlu0 %1368
    %1370 = vadd.xlane.f32.xlu0 %v1332
    %v1371 = vpop.xlane.xlu0 %1370
    %1372 = vadd.xlane.f32.xlu0 %v1335
    %v1373 = vpop.xlane.xlu0 %1372
    %1374 = vadd.xlane.f32.xlu0 %v1340
    %v1375 = vpop.xlane.xlu0 %1374
    %1376 = vadd.xlane.f32.xlu0 %v1343
    %v1377 = vpop.xlane.xlu0 %1376
    %v1378 = vmul.f32 %v1284, %v1284
    %v1379 = vmul.f32 %v1287, %v1287
    %v1380 = vmul.f32 %v1292, %v1292
    %v1381 = vmul.f32 %v1295, %v1295
    %v1382 = vmul.f32 %v1300, %v1300
    %v1383 = vmul.f32 %v1303, %v1303
    %v1384 = vmul.f32 %v1308, %v1308
    %v1385 = vmul.f32 %v1311, %v1311
    %v1386 = vmul.f32 %v1316, %v1316
    %v1387 = vmul.f32 %v1319, %v1319
    %v1388 = vmul.f32 %v1324, %v1324
    %v1389 = vmul.f32 %v1327, %v1327
    %v1390 = vmul.f32 %v1332, %v1332
    %v1391 = vmul.f32 %v1335, %v1335
    %v1392 = vmul.f32 %v1340, %v1340
    %v1393 = vmul.f32 %v1343, %v1343
    %1394 = vadd.xlane.f32.xlu0 %v1378
    %v1395 = vpop.xlane.xlu0 %1394
    %1396 = vadd.xlane.f32.xlu0 %v1379
    %v1397 = vpop.xlane.xlu0 %1396
    %1398 = vadd.xlane.f32.xlu0 %v1380
    %v1399 = vpop.xlane.xlu0 %1398
    %1400 = vadd.xlane.f32.xlu0 %v1381
    %v1401 = vpop.xlane.xlu0 %1400
    %1402 = vadd.xlane.f32.xlu0 %v1382
    %v1403 = vpop.xlane.xlu0 %1402
    %1404 = vadd.xlane.f32.xlu0 %v1383
    %v1405 = vpop.xlane.xlu0 %1404
    %1406 = vadd.xlane.f32.xlu0 %v1384
    %v1407 = vpop.xlane.xlu0 %1406
    %1408 = vadd.xlane.f32.xlu0 %v1385
    %v1409 = vpop.xlane.xlu0 %1408
    %1410 = vadd.xlane.f32.xlu0 %v1386
    %v1411 = vpop.xlane.xlu0 %1410
    %1412 = vadd.xlane.f32.xlu0 %v1387
    %v1413 = vpop.xlane.xlu0 %1412
    %1414 = vadd.xlane.f32.xlu0 %v1388
    %v1415 = vpop.xlane.xlu0 %1414
    %1416 = vadd.xlane.f32.xlu0 %v1389
    %v1417 = vpop.xlane.xlu0 %1416
    %1418 = vadd.xlane.f32.xlu0 %v1390
    %v1419 = vpop.xlane.xlu0 %1418
    %1420 = vadd.xlane.f32.xlu0 %v1391
    %v1421 = vpop.xlane.xlu0 %1420
    %1422 = vadd.xlane.f32.xlu0 %v1392
    %v1423 = vpop.xlane.xlu0 %1422
    %1424 = vadd.xlane.f32.xlu0 %v1393
    %v1425 = vpop.xlane.xlu0 %1424
    %v1426 = vmul.f32 %v1347, 0.0078125
    %v1427 = vmul.f32 %v1349, 0.0078125
    %v1428 = vmul.f32 %v1351, 0.0078125
    %v1429 = vmul.f32 %v1353, 0.0078125
    %v1430 = vmul.f32 %v1355, 0.0078125
    %v1431 = vmul.f32 %v1357, 0.0078125
    %v1432 = vmul.f32 %v1359, 0.0078125
    %v1433 = vmul.f32 %v1361, 0.0078125
    %v1434 = vmul.f32 %v1363, 0.0078125
    %v1435 = vmul.f32 %v1365, 0.0078125
    %v1436 = vmul.f32 %v1367, 0.0078125
    %v1437 = vmul.f32 %v1369, 0.0078125
    %v1438 = vmul.f32 %v1371, 0.0078125
    %v1439 = vmul.f32 %v1373, 0.0078125
    %v1440 = vmul.f32 %v1375, 0.0078125
    %v1441 = vmul.f32 %v1377, 0.0078125
    %v1442 = vmul.f32 %v1395, 0.0078125
    %v1443 = vmul.f32 %v1397, 0.0078125
    %v1444 = vmul.f32 %v1399, 0.0078125
    %v1445 = vmul.f32 %v1401, 0.0078125
    %v1446 = vmul.f32 %v1403, 0.0078125
    %v1447 = vmul.f32 %v1405, 0.0078125
    %v1448 = vmul.f32 %v1407, 0.0078125
    %v1449 = vmul.f32 %v1409, 0.0078125
    %v1450 = vmul.f32 %v1411, 0.0078125
    %v1451 = vmul.f32 %v1413, 0.0078125
    %v1452 = vmul.f32 %v1415, 0.0078125
    %v1453 = vmul.f32 %v1417, 0.0078125
    %v1454 = vmul.f32 %v1419, 0.0078125
    %v1455 = vmul.f32 %v1421, 0.0078125
    %v1456 = vmul.f32 %v1423, 0.0078125
    %v1457 = vmul.f32 %v1425, 0.0078125
    %v1458 = vmul.f32 %v1426, %v1426
    %v1459 = vmul.f32 %v1427, %v1427
    %v1460 = vmul.f32 %v1428, %v1428
    %v1461 = vmul.f32 %v1429, %v1429
    %v1462 = vmul.f32 %v1430, %v1430
    %v1463 = vmul.f32 %v1431, %v1431
    %v1464 = vmul.f32 %v1432, %v1432
    %v1465 = vmul.f32 %v1433, %v1433
    %v1466 = vmul.f32 %v1434, %v1434
    %v1467 = vmul.f32 %v1435, %v1435
    %v1468 = vmul.f32 %v1436, %v1436
    %v1469 = vmul.f32 %v1437, %v1437
    %v1470 = vmul.f32 %v1438, %v1438
    %v1471 = vmul.f32 %v1439, %v1439
    %v1472 = vmul.f32 %v1440, %v1440
    %v1473 = vmul.f32 %v1441, %v1441
    %v1474 = vsub.f32 %v1442, %v1458
    %v1475 = vsub.f32 %v1443, %v1459
    %v1476 = vsub.f32 %v1444, %v1460
    %v1477 = vsub.f32 %v1445, %v1461
    %v1478 = vsub.f32 %v1446, %v1462
    %v1479 = vsub.f32 %v1447, %v1463
    %v1480 = vsub.f32 %v1448, %v1464
    %v1481 = vsub.f32 %v1449, %v1465
    %v1482 = vsub.f32 %v1450, %v1466
    %v1483 = vsub.f32 %v1451, %v1467
    %v1484 = vsub.f32 %v1452, %v1468
    %v1485 = vsub.f32 %v1453, %v1469
    %v1486 = vsub.f32 %v1454, %v1470
    %v1487 = vsub.f32 %v1455, %v1471
    %v1488 = vsub.f32 %v1456, %v1472
    %v1489 = vsub.f32 %v1457, %v1473
    %v1490 = vsub.f32 %v1284, %v1426
    %v1491 = vsub.f32 %v1287, %v1427
    %v1492 = vsub.f32 %v1292, %v1428
    %v1493 = vsub.f32 %v1295, %v1429
    %v1494 = vsub.f32 %v1300, %v1430
    %v1495 = vsub.f32 %v1303, %v1431
    %v1496 = vsub.f32 %v1308, %v1432
    %v1497 = vsub.f32 %v1311, %v1433
    %v1498 = vsub.f32 %v1316, %v1434
    %v1499 = vsub.f32 %v1319, %v1435
    %v1500 = vsub.f32 %v1324, %v1436
    %v1501 = vsub.f32 %v1327, %v1437
    %v1502 = vsub.f32 %v1332, %v1438
    %v1503 = vsub.f32 %v1335, %v1439
    %v1504 = vsub.f32 %v1340, %v1440
    %v1505 = vsub.f32 %v1343, %v1441
    %v1506 = vadd.f32 %v1474, 1e-05
    %v1507 = vadd.f32 %v1475, 1e-05
    %v1508 = vadd.f32 %v1476, 1e-05
    %v1509 = vadd.f32 %v1477, 1e-05
    %v1510 = vadd.f32 %v1478, 1e-05
    %v1511 = vadd.f32 %v1479, 1e-05
    %v1512 = vadd.f32 %v1480, 1e-05
    %v1513 = vadd.f32 %v1481, 1e-05
    %v1514 = vadd.f32 %v1482, 1e-05
    %v1515 = vadd.f32 %v1483, 1e-05
    %v1516 = vadd.f32 %v1484, 1e-05
    %v1517 = vadd.f32 %v1485, 1e-05
    %v1518 = vadd.f32 %v1486, 1e-05
    %v1519 = vadd.f32 %v1487, 1e-05
    %v1520 = vadd.f32 %v1488, 1e-05
    %v1521 = vadd.f32 %v1489, 1e-05
    %v1522 = vrsqrt.pop %v1506
    %v1523 = vrsqrt.pop %v1507
    %v1524 = vrsqrt.pop %v1508
    %v1525 = vrsqrt.pop %v1509
    %v1526 = vrsqrt.pop %v1510
    %v1527 = vrsqrt.pop %v1511
    %v1528 = vrsqrt.pop %v1512
    %v1529 = vrsqrt.pop %v1513
    %v1530 = vrsqrt.pop %v1514
    %v1531 = vrsqrt.pop %v1515
    %v1532 = vrsqrt.pop %v1516
    %v1533 = vrsqrt.pop %v1517
    %v1534 = vrsqrt.pop %v1518
    %v1535 = vrsqrt.pop %v1519
    %v1536 = vrsqrt.pop %v1520
    %v1537 = vrsqrt.pop %v1521
    %v1538 = vmul.f32 %v1490, %v1522
    %v1539 = vmul.f32 %v1491, %v1523
    %v1540 = vmul.f32 %v1492, %v1524
    %v1541 = vmul.f32 %v1493, %v1525
    %v1542 = vmul.f32 %v1494, %v1526
    %v1543 = vmul.f32 %v1495, %v1527
    %v1544 = vmul.f32 %v1496, %v1528
    %v1545 = vmul.f32 %v1497, %v1529
    %v1546 = vmul.f32 %v1498, %v1530
    %v1547 = vmul.f32 %v1499, %v1531
    %v1548 = vmul.f32 %v1500, %v1532
    %v1549 = vmul.f32 %v1501, %v1533
    %v1550 = vmul.f32 %v1502, %v1534
    %v1551 = vmul.f32 %v1503, %v1535
    %v1552 = vmul.f32 %v1504, %v1536
    %v1553 = vmul.f32 %v1505, %v1537
    %v1554 = vlaneseq
    %v1555 = vshrl.u32 %v1554, 7
    %v1556 = vsub.s32 0, %v1555
    %v1557 = vrot.slane %v1169, %v1556
    %v1558 = vmul.f32 %v1538, %v1557
    %v1559 = vmul.f32 %v1539, %v1557
    %v1560 = vmul.f32 %v1540, %v1557
    %v1561 = vmul.f32 %v1541, %v1557
    %v1562 = vmul.f32 %v1542, %v1557
    %v1563 = vmul.f32 %v1543, %v1557
    %v1564 = vmul.f32 %v1544, %v1557
    %v1565 = vmul.f32 %v1545, %v1557
    %v1566 = vmul.f32 %v1546, %v1557
    %v1567 = vmul.f32 %v1547, %v1557
    %v1568 = vmul.f32 %v1548, %v1557
    %v1569 = vmul.f32 %v1549, %v1557
    %v1570 = vmul.f32 %v1550, %v1557
    %v1571 = vmul.f32 %v1551, %v1557
    %v1572 = vmul.f32 %v1552, %v1557
    %v1573 = vmul.f32 %v1553, %v1557
    %v1574 = vlaneseq
    %v1575 = vshrl.u32 %v1574, 7
    %v1576 = vsub.s32 0, %v1575
    %v1577 = vrot.slane %v1171, %v1576
    %v1578 = vadd.f32 %v1558, %v1577
    %v1579 = vadd.f32 %v1559, %v1577
    %v1580 = vadd.f32 %v1560, %v1577
    %v1581 = vadd.f32 %v1561, %v1577
    %v1582 = vadd.f32 %v1562, %v1577
    %v1583 = vadd.f32 %v1563, %v1577
    %v1584 = vadd.f32 %v1564, %v1577
    %v1585 = vadd.f32 %v1565, %v1577
    %v1586 = vadd.f32 %v1566, %v1577
    %v1587 = vadd.f32 %v1567, %v1577
    %v1588 = vadd.f32 %v1568, %v1577
    %v1589 = vadd.f32 %v1569, %v1577
    %v1590 = vadd.f32 %v1570, %v1577
    %v1591 = vadd.f32 %v1571, %v1577
    %v1592 = vadd.f32 %v1572, %v1577
    %v1593 = vadd.f32 %v1573, %v1577
    %v1594 = vxor.u32 %v1578, 2147483648
    %v1595 = vxor.u32 %v1579, 2147483648
    %v1596 = vxor.u32 %v1580, 2147483648
    %v1597 = vxor.u32 %v1581, 2147483648
    %v1598 = vxor.u32 %v1582, 2147483648
    %v1599 = vxor.u32 %v1583, 2147483648
    %v1600 = vxor.u32 %v1584, 2147483648
    %v1601 = vxor.u32 %v1585, 2147483648
    %v1602 = vxor.u32 %v1586, 2147483648
    %v1603 = vxor.u32 %v1587, 2147483648
    %v1604 = vxor.u32 %v1588, 2147483648
    %v1605 = vxor.u32 %v1589, 2147483648
    %v1606 = vxor.u32 %v1590, 2147483648
    %v1607 = vxor.u32 %v1591, 2147483648
    %v1608 = vxor.u32 %v1592, 2147483648
    %v1609 = vxor.u32 %v1593, 2147483648
    %v1610 = vmul.f32 %v1594, 1.442695
    %v1611 = vpow.pop %v1610
    %v1612 = vmul.f32 %v1595, 1.442695
    %v1613 = vpow.pop %v1612
    %v1614 = vmul.f32 %v1596, 1.442695
    %v1615 = vpow.pop %v1614
    %v1616 = vmul.f32 %v1597, 1.442695
    %v1617 = vpow.pop %v1616
    %v1618 = vmul.f32 %v1598, 1.442695
    %v1619 = vpow.pop %v1618
    %v1620 = vmul.f32 %v1599, 1.442695
    %v1621 = vpow.pop %v1620
    %v1622 = vmul.f32 %v1600, 1.442695
    %v1623 = vpow.pop %v1622
    %v1624 = vmul.f32 %v1601, 1.442695
    %v1625 = vpow.pop %v1624
    %v1626 = vmul.f32 %v1602, 1.442695
    %v1627 = vpow.pop %v1626
    %v1628 = vmul.f32 %v1603, 1.442695
    %v1629 = vpow.pop %v1628
    %v1630 = vmul.f32 %v1604, 1.442695
    %v1631 = vpow.pop %v1630
    %v1632 = vmul.f32 %v1605, 1.442695
    %v1633 = vpow.pop %v1632
    %v1634 = vmul.f32 %v1606, 1.442695
    %v1635 = vpow.pop %v1634
    %v1636 = vmul.f32 %v1607, 1.442695
    %v1637 = vpow.pop %v1636
    %v1638 = vmul.f32 %v1608, 1.442695
    %v1639 = vpow.pop %v1638
    %v1640 = vmul.f32 %v1609, 1.442695
    %v1641 = vpow.pop %v1640
    %v1642 = vadd.f32 %v1611, 1.0
    %v1643 = vadd.f32 %v1613, 1.0
    %v1644 = vadd.f32 %v1615, 1.0
    %v1645 = vadd.f32 %v1617, 1.0
    %v1646 = vadd.f32 %v1619, 1.0
    %v1647 = vadd.f32 %v1621, 1.0
    %v1648 = vadd.f32 %v1623, 1.0
    %v1649 = vadd.f32 %v1625, 1.0
    %v1650 = vadd.f32 %v1627, 1.0
    %v1651 = vadd.f32 %v1629, 1.0
    %v1652 = vadd.f32 %v1631, 1.0
    %v1653 = vadd.f32 %v1633, 1.0
    %v1654 = vadd.f32 %v1635, 1.0
    %v1655 = vadd.f32 %v1637, 1.0
    %v1656 = vadd.f32 %v1639, 1.0
    %v1657 = vadd.f32 %v1641, 1.0
    %v1658 = vrcp.pop %v1642
    %v1659 = vmul.f32 1.0, %v1658
    %v1660 = vrcp.pop %v1643
    %v1661 = vmul.f32 1.0, %v1660
    %v1662 = vrcp.pop %v1644
    %v1663 = vmul.f32 1.0, %v1662
    %v1664 = vrcp.pop %v1645
    %v1665 = vmul.f32 1.0, %v1664
    %v1666 = vrcp.pop %v1646
    %v1667 = vmul.f32 1.0, %v1666
    %v1668 = vrcp.pop %v1647
    %v1669 = vmul.f32 1.0, %v1668
    %v1670 = vrcp.pop %v1648
    %v1671 = vmul.f32 1.0, %v1670
    %v1672 = vrcp.pop %v1649
    %v1673 = vmul.f32 1.0, %v1672
    %v1674 = vrcp.pop %v1650
    %v1675 = vmul.f32 1.0, %v1674
    %v1676 = vrcp.pop %v1651
    %v1677 = vmul.f32 1.0, %v1676
    %v1678 = vrcp.pop %v1652
    %v1679 = vmul.f32 1.0, %v1678
    %v1680 = vrcp.pop %v1653
    %v1681 = vmul.f32 1.0, %v1680
    %v1682 = vrcp.pop %v1654
    %v1683 = vmul.f32 1.0, %v1682
    %v1684 = vrcp.pop %v1655
    %v1685 = vmul.f32 1.0, %v1684
    %v1686 = vrcp.pop %v1656
    %v1687 = vmul.f32 1.0, %v1686
    %v1688 = vrcp.pop %v1657
    %v1689 = vmul.f32 1.0, %v1688
    %v1690 = vmul.f32 %v1578, %v1659
    %v1691 = vmul.f32 %v1579, %v1661
    %v1692 = vmul.f32 %v1580, %v1663
    %v1693 = vmul.f32 %v1581, %v1665
    %v1694 = vmul.f32 %v1582, %v1667
    %v1695 = vmul.f32 %v1583, %v1669
    %v1696 = vmul.f32 %v1584, %v1671
    %v1697 = vmul.f32 %v1585, %v1673
    %v1698 = vmul.f32 %v1586, %v1675
    %v1699 = vmul.f32 %v1587, %v1677
    %v1700 = vmul.f32 %v1588, %v1679
    %v1701 = vmul.f32 %v1589, %v1681
    %v1702 = vmul.f32 %v1590, %v1683
    %v1703 = vmul.f32 %v1591, %v1685
    %v1704 = vmul.f32 %v1592, %v1687
    %v1705 = vmul.f32 %v1593, %v1689
    %v1706 = vadd.f32 %v625, %v1690
    %v1707 = vadd.f32 %v626, %v1691
    %v1708 = vadd.f32 %v627, %v1692
    %v1709 = vadd.f32 %v628, %v1693
    %v1710 = vadd.f32 %v629, %v1694
    %v1711 = vadd.f32 %v630, %v1695
    %v1712 = vadd.f32 %v631, %v1696
    %v1713 = vadd.f32 %v632, %v1697
    %v1714 = vadd.f32 %v633, %v1698
    %v1715 = vadd.f32 %v634, %v1699
    %v1716 = vadd.f32 %v635, %v1700
    %v1717 = vadd.f32 %v636, %v1701
    %v1718 = vadd.f32 %v637, %v1702
    %v1719 = vadd.f32 %v638, %v1703
    %v1720 = vadd.f32 %v639, %v1704
    %v1721 = vadd.f32 %v640, %v1705
    %s1722 = scalar_lea.vmem [#allocation2], 192
    %v1723 = vld [vmem:[%s1722] sm:$0xf]
    %v1724 = vld [vmem:[%s1722 + $0x4] sm:$0xf]
    %v1725 = vld [vmem:[%s1722 + $0x8] sm:$0xf]
    %v1726 = vld [vmem:[%s1722 + $0xc] sm:$0xf]
    %v1727 = vld [vmem:[%s1722 + $0x10] sm:$0xf]
    %v1728 = vld [vmem:[%s1722 + $0x14] sm:$0xf]
    %v1729 = vld [vmem:[%s1722 + $0x18] sm:$0xf]
    %v1730 = vld [vmem:[%s1722 + $0x1c] sm:$0xf]
    %v1731 = vld [vmem:[%s1722 + $0x20] sm:$0xf]
    %v1732 = vld [vmem:[%s1722 + $0x24] sm:$0xf]
    %v1733 = vld [vmem:[%s1722 + $0x28] sm:$0xf]
    %v1734 = vld [vmem:[%s1722 + $0x2c] sm:$0xf]
    %v1735 = vld [vmem:[%s1722 + $0x30] sm:$0xf]
    %v1736 = vld [vmem:[%s1722 + $0x34] sm:$0xf]
    %v1737 = vld [vmem:[%s1722 + $0x38] sm:$0xf]
    %v1738 = vld [vmem:[%s1722 + $0x3c] sm:$0xf]
    %v1739 = vpack.c.bf16 %v1152, %v1151
    %v1740 = vpack.c.bf16 %v1154, %v1153
    %v1741 = vpack.c.bf16 %v1156, %v1155
    %v1742 = vpack.c.bf16 %v1158, %v1157
    %v1743 = vpack.c.bf16 %v1160, %v1159
    %v1744 = vpack.c.bf16 %v1162, %v1161
    %v1745 = vpack.c.bf16 %v1164, %v1163
    %v1746 = vpack.c.bf16 %v1166, %v1165
    %v1747 = vlaneseq
    %v1748 = vshrl.u32 %v1747, 7
    %v1749 = vsub.s32 0, %v1748
    %v1750 = vrot.slane %v1168, %v1749
    %v1767 = vunpack.c.l.b16 %v1723
    %v1768 = vunpack.c.l.b16 %v1724
    %v1769 = vunpack.c.l.b16 %v1725
    %v1770 = vunpack.c.l.b16 %v1726
    %v1771 = vunpack.c.l.b16 %v1727
    %v1772 = vunpack.c.l.b16 %v1728
    %v1773 = vunpack.c.l.b16 %v1729
    %v1774 = vunpack.c.l.b16 %v1730
    %v1775 = vunpack.c.l.b16 %v1731
    %v1776 = vunpack.c.l.b16 %v1732
    %v1777 = vunpack.c.l.b16 %v1733
    %v1778 = vunpack.c.l.b16 %v1734
    %v1779 = vunpack.c.l.b16 %v1735
    %v1780 = vunpack.c.l.b16 %v1736
    %v1781 = vunpack.c.l.b16 %v1737
    %v1782 = vunpack.c.l.b16 %v1738
    %v1783 = vpack.c.b16 %v1768, %v1767
    %v1784 = vpack.c.b16 %v1770, %v1769
    %v1785 = vpack.c.b16 %v1772, %v1771
    %v1786 = vpack.c.b16 %v1774, %v1773
    %v1787 = vpack.c.b16 %v1776, %v1775
    %v1788 = vpack.c.b16 %v1778, %v1777
    %v1789 = vpack.c.b16 %v1780, %v1779
    %v1790 = vpack.c.b16 %v1782, %v1781
    %1799 = vmatprep.subr.bf16.mxu0 0
    %1800 = vmatpush1.bf16.msra.mxu0 %v1783
    %1801 = vmatprep.subr.bf16.mxu0 0
    %1802 = vmatpush1.bf16.msra.mxu0 %v1784
    %1803 = vmatprep.subr.bf16.mxu0 0
    %1804 = vmatpush1.bf16.msra.mxu0 %v1785
    %1805 = vmatprep.subr.bf16.mxu0 0
    %1806 = vmatpush1.bf16.msra.mxu0 %v1786
    %1807 = vmatprep.subr.bf16.mxu0 0
    %1808 = vmatpush1.bf16.msra.mxu0 %v1787
    %1809 = vmatprep.subr.bf16.mxu0 0
    %1810 = vmatpush1.bf16.msra.mxu0 %v1788
    %1811 = vmatprep.subr.bf16.mxu0 0
    %1812 = vmatpush1.bf16.msra.mxu0 %v1789
    %1813 = vmatprep.subr.bf16.mxu0 0
    %1814 = vmatpush1.bf16.msra.mxu0 %v1790
    %1815 = vmatprep.subr.bf16.mxu0 0
    %1816 = vmatpush1.bf16.msra.mxu0 0
    %1817 = vmatprep.subr.bf16.mxu0 0
    %1818 = vmatpush1.bf16.msra.mxu0 0
    %1819 = vmatprep.subr.bf16.mxu0 0
    %1820 = vmatpush1.bf16.msra.mxu0 0
    %1821 = vmatprep.subr.bf16.mxu0 0
    %1822 = vmatpush1.bf16.msra.mxu0 0
    %1823 = vmatprep.subr.bf16.mxu0 0
    %1824 = vmatpush1.bf16.msra.mxu0 0
    %1825 = vmatprep.subr.bf16.mxu0 0
    %1826 = vmatpush1.bf16.msra.mxu0 0
    %1827 = vmatprep.subr.bf16.mxu0 0
    %1828 = vmatpush1.bf16.msra.mxu0 0
    %1829 = vmatprep.subr.bf16.mxu0 0
    %1830 = vmatpush1.bf16.msra.mxu0 0
    %1831 = vmatprep.mubr.bf16.mxu0 0
    %1832 = vmatmul.mubr.bf16.gmra.mrb[0].mxu0 %v1739
    %v1833 = vpop.f32.mrb[0].mxu0
    %v1834 = vadd.f32 %v1750, %v1833
    %v1835 = vpop.f32.mrb[0].mxu0
    %v1836 = vpop.f32.mrb[0].mxu0
    %v1837 = vadd.f32 %v1750, %v1836
    %v1838 = vpop.f32.mrb[0].mxu0
    %1839 = vmatprep.mubr.bf16.mxu0 0
    %1840 = vmatmul.mubr.bf16.gmra.mrb[0].mxu0 %v1740
    %v1841 = vpop.f32.mrb[0].mxu0
    %v1842 = vadd.f32 %v1750, %v1841
    %v1843 = vpop.f32.mrb[0].mxu0
    %v1844 = vpop.f32.mrb[0].mxu0
    %v1845 = vadd.f32 %v1750, %v1844
    %v1846 = vpop.f32.mrb[0].mxu0
    %1847 = vmatprep.mubr.bf16.mxu0 0
    %1848 = vmatmul.mubr.bf16.gmra.mrb[0].mxu0 %v1741
    %v1849 = vpop.f32.mrb[0].mxu0
    %v1850 = vadd.f32 %v1750, %v1849
    %v1851 = vpop.f32.mrb[0].mxu0
    %v1852 = vpop.f32.mrb[0].mxu0
    %v1853 = vadd.f32 %v1750, %v1852
    %v1854 = vpop.f32.mrb[0].mxu0
    %1855 = vmatprep.mubr.bf16.mxu0 0
    %1856 = vmatmul.mubr.bf16.gmra.mrb[0].mxu0 %v1742
    %v1857 = vpop.f32.mrb[0].mxu0
    %v1858 = vadd.f32 %v1750, %v1857
    %v1859 = vpop.f32.mrb[0].mxu0
    %v1860 = vpop.f32.mrb[0].mxu0
    %v1861 = vadd.f32 %v1750, %v1860
    %v1862 = vpop.f32.mrb[0].mxu0
    %1863 = vmatprep.mubr.bf16.mxu0 0
    %1864 = vmatmul.mubr.bf16.gmra.mrb[0].mxu0 %v1743
    %v1865 = vpop.f32.mrb[0].mxu0
    %v1866 = vadd.f32 %v1750, %v1865
    %v1867 = vpop.f32.mrb[0].mxu0
    %v1868 = vpop.f32.mrb[0].mxu0
    %v1869 = vadd.f32 %v1750, %v1868
    %v1870 = vpop.f32.mrb[0].mxu0
    %1871 = vmatprep.mubr.bf16.mxu0 0
    %1872 = vmatmul.mubr.bf16.gmra.mrb[0].mxu0 %v1744
    %v1873 = vpop.f32.mrb[0].mxu0
    %v1874 = vadd.f32 %v1750, %v1873
    %v1875 = vpop.f32.mrb[0].mxu0
    %v1876 = vpop.f32.mrb[0].mxu0
    %v1877 = vadd.f32 %v1750, %v1876
    %v1878 = vpop.f32.mrb[0].mxu0
    %1879 = vmatprep.mubr.bf16.mxu0 0
    %1880 = vmatmul.mubr.bf16.gmra.mrb[0].mxu0 %v1745
    %v1881 = vpop.f32.mrb[0].mxu0
    %v1882 = vadd.f32 %v1750, %v1881
    %v1883 = vpop.f32.mrb[0].mxu0
    %v1884 = vpop.f32.mrb[0].mxu0
    %v1885 = vadd.f32 %v1750, %v1884
    %v1886 = vpop.f32.mrb[0].mxu0
    %1887 = vmatprep.mubr.bf16.mxu0 0
    %1888 = vmatmul.mubr.bf16.gmra.mrb[0].mxu0 %v1746
    %v1889 = vpop.f32.mrb[0].mxu0
    %v1890 = vadd.f32 %v1750, %v1889
    %v1891 = vpop.f32.mrb[0].mxu0
    %v1892 = vpop.f32.mrb[0].mxu0
    %v1893 = vadd.f32 %v1750, %v1892
    %v1894 = vpop.f32.mrb[0].mxu0
    %1895 = vdwg.mxu0
    %1896 = vadd.xlane.f32.xlu0 %v1834
    %v1897 = vpop.xlane.xlu0 %1896
    %1898 = vadd.xlane.f32.xlu0 %v1837
    %v1899 = vpop.xlane.xlu0 %1898
    %1900 = vadd.xlane.f32.xlu0 %v1842
    %v1901 = vpop.xlane.xlu0 %1900
    %1902 = vadd.xlane.f32.xlu0 %v1845
    %v1903 = vpop.xlane.xlu0 %1902
    %1904 = vadd.xlane.f32.xlu0 %v1850
    %v1905 = vpop.xlane.xlu0 %1904
    %1906 = vadd.xlane.f32.xlu0 %v1853
    %v1907 = vpop.xlane.xlu0 %1906
    %1908 = vadd.xlane.f32.xlu0 %v1858
    %v1909 = vpop.xlane.xlu0 %1908
    %1910 = vadd.xlane.f32.xlu0 %v1861
    %v1911 = vpop.xlane.xlu0 %1910
    %1912 = vadd.xlane.f32.xlu0 %v1866
    %v1913 = vpop.xlane.xlu0 %1912
    %1914 = vadd.xlane.f32.xlu0 %v1869
    %v1915 = vpop.xlane.xlu0 %1914
    %1916 = vadd.xlane.f32.xlu0 %v1874
    %v1917 = vpop.xlane.xlu0 %1916
    %1918 = vadd.xlane.f32.xlu0 %v1877
    %v1919 = vpop.xlane.xlu0 %1918
    %1920 = vadd.xlane.f32.xlu0 %v1882
    %v1921 = vpop.xlane.xlu0 %1920
    %1922 = vadd.xlane.f32.xlu0 %v1885
    %v1923 = vpop.xlane.xlu0 %1922
    %1924 = vadd.xlane.f32.xlu0 %v1890
    %v1925 = vpop.xlane.xlu0 %1924
    %1926 = vadd.xlane.f32.xlu0 %v1893
    %v1927 = vpop.xlane.xlu0 %1926
    %v1928 = vmul.f32 %v1834, %v1834
    %v1929 = vmul.f32 %v1837, %v1837
    %v1930 = vmul.f32 %v1842, %v1842
    %v1931 = vmul.f32 %v1845, %v1845
    %v1932 = vmul.f32 %v1850, %v1850
    %v1933 = vmul.f32 %v1853, %v1853
    %v1934 = vmul.f32 %v1858, %v1858
    %v1935 = vmul.f32 %v1861, %v1861
    %v1936 = vmul.f32 %v1866, %v1866
    %v1937 = vmul.f32 %v1869, %v1869
    %v1938 = vmul.f32 %v1874, %v1874
    %v1939 = vmul.f32 %v1877, %v1877
    %v1940 = vmul.f32 %v1882, %v1882
    %v1941 = vmul.f32 %v1885, %v1885
    %v1942 = vmul.f32 %v1890, %v1890
    %v1943 = vmul.f32 %v1893, %v1893
    %1944 = vadd.xlane.f32.xlu0 %v1928
    %v1945 = vpop.xlane.xlu0 %1944
    %1946 = vadd.xlane.f32.xlu0 %v1929
    %v1947 = vpop.xlane.xlu0 %1946
    %1948 = vadd.xlane.f32.xlu0 %v1930
    %v1949 = vpop.xlane.xlu0 %1948
    %1950 = vadd.xlane.f32.xlu0 %v1931
    %v1951 = vpop.xlane.xlu0 %1950
    %1952 = vadd.xlane.f32.xlu0 %v1932
    %v1953 = vpop.xlane.xlu0 %1952
    %1954 = vadd.xlane.f32.xlu0 %v1933
    %v1955 = vpop.xlane.xlu0 %1954
    %1956 = vadd.xlane.f32.xlu0 %v1934
    %v1957 = vpop.xlane.xlu0 %1956
    %1958 = vadd.xlane.f32.xlu0 %v1935
    %v1959 = vpop.xlane.xlu0 %1958
    %1960 = vadd.xlane.f32.xlu0 %v1936
    %v1961 = vpop.xlane.xlu0 %1960
    %1962 = vadd.xlane.f32.xlu0 %v1937
    %v1963 = vpop.xlane.xlu0 %1962
    %1964 = vadd.xlane.f32.xlu0 %v1938
    %v1965 = vpop.xlane.xlu0 %1964
    %1966 = vadd.xlane.f32.xlu0 %v1939
    %v1967 = vpop.xlane.xlu0 %1966
    %1968 = vadd.xlane.f32.xlu0 %v1940
    %v1969 = vpop.xlane.xlu0 %1968
    %1970 = vadd.xlane.f32.xlu0 %v1941
    %v1971 = vpop.xlane.xlu0 %1970
    %1972 = vadd.xlane.f32.xlu0 %v1942
    %v1973 = vpop.xlane.xlu0 %1972
    %1974 = vadd.xlane.f32.xlu0 %v1943
    %v1975 = vpop.xlane.xlu0 %1974
    %v1976 = vmul.f32 %v1897, 0.0078125
    %v1977 = vmul.f32 %v1899, 0.0078125
    %v1978 = vmul.f32 %v1901, 0.0078125
    %v1979 = vmul.f32 %v1903, 0.0078125
    %v1980 = vmul.f32 %v1905, 0.0078125
    %v1981 = vmul.f32 %v1907, 0.0078125
    %v1982 = vmul.f32 %v1909, 0.0078125
    %v1983 = vmul.f32 %v1911, 0.0078125
    %v1984 = vmul.f32 %v1913, 0.0078125
    %v1985 = vmul.f32 %v1915, 0.0078125
    %v1986 = vmul.f32 %v1917, 0.0078125
    %v1987 = vmul.f32 %v1919, 0.0078125
    %v1988 = vmul.f32 %v1921, 0.0078125
    %v1989 = vmul.f32 %v1923, 0.0078125
    %v1990 = vmul.f32 %v1925, 0.0078125
    %v1991 = vmul.f32 %v1927, 0.0078125
    %v1992 = vmul.f32 %v1945, 0.0078125
    %v1993 = vmul.f32 %v1947, 0.0078125
    %v1994 = vmul.f32 %v1949, 0.0078125
    %v1995 = vmul.f32 %v1951, 0.0078125
    %v1996 = vmul.f32 %v1953, 0.0078125
    %v1997 = vmul.f32 %v1955, 0.0078125
    %v1998 = vmul.f32 %v1957, 0.0078125
    %v1999 = vmul.f32 %v1959, 0.0078125
    %v2000 = vmul.f32 %v1961, 0.0078125
    %v2001 = vmul.f32 %v1963, 0.0078125
    %v2002 = vmul.f32 %v1965, 0.0078125
    %v2003 = vmul.f32 %v1967, 0.0078125
    %v2004 = vmul.f32 %v1969, 0.0078125
    %v2005 = vmul.f32 %v1971, 0.0078125
    %v2006 = vmul.f32 %v1973, 0.0078125
    %v2007 = vmul.f32 %v1975, 0.0078125
    %v2008 = vmul.f32 %v1976, %v1976
    %v2009 = vmul.f32 %v1977, %v1977
    %v2010 = vmul.f32 %v1978, %v1978
    %v2011 = vmul.f32 %v1979, %v1979
    %v2012 = vmul.f32 %v1980, %v1980
    %v2013 = vmul.f32 %v1981, %v1981
    %v2014 = vmul.f32 %v1982, %v1982
    %v2015 = vmul.f32 %v1983, %v1983
    %v2016 = vmul.f32 %v1984, %v1984
    %v2017 = vmul.f32 %v1985, %v1985
    %v2018 = vmul.f32 %v1986, %v1986
    %v2019 = vmul.f32 %v1987, %v1987
    %v2020 = vmul.f32 %v1988, %v1988
    %v2021 = vmul.f32 %v1989, %v1989
    %v2022 = vmul.f32 %v1990, %v1990
    %v2023 = vmul.f32 %v1991, %v1991
    %v2024 = vsub.f32 %v1992, %v2008
    %v2025 = vsub.f32 %v1993, %v2009
    %v2026 = vsub.f32 %v1994, %v2010
    %v2027 = vsub.f32 %v1995, %v2011
    %v2028 = vsub.f32 %v1996, %v2012
    %v2029 = vsub.f32 %v1997, %v2013
    %v2030 = vsub.f32 %v1998, %v2014
    %v2031 = vsub.f32 %v1999, %v2015
    %v2032 = vsub.f32 %v2000, %v2016
    %v2033 = vsub.f32 %v2001, %v2017
    %v2034 = vsub.f32 %v2002, %v2018
    %v2035 = vsub.f32 %v2003, %v2019
    %v2036 = vsub.f32 %v2004, %v2020
    %v2037 = vsub.f32 %v2005, %v2021
    %v2038 = vsub.f32 %v2006, %v2022
    %v2039 = vsub.f32 %v2007, %v2023
    %v2040 = vsub.f32 %v1834, %v1976
    %v2041 = vsub.f32 %v1837, %v1977
    %v2042 = vsub.f32 %v1842, %v1978
    %v2043 = vsub.f32 %v1845, %v1979
    %v2044 = vsub.f32 %v1850, %v1980
    %v2045 = vsub.f32 %v1853, %v1981
    %v2046 = vsub.f32 %v1858, %v1982
    %v2047 = vsub.f32 %v1861, %v1983
    %v2048 = vsub.f32 %v1866, %v1984
    %v2049 = vsub.f32 %v1869, %v1985
    %v2050 = vsub.f32 %v1874, %v1986
    %v2051 = vsub.f32 %v1877, %v1987
    %v2052 = vsub.f32 %v1882, %v1988
    %v2053 = vsub.f32 %v1885, %v1989
    %v2054 = vsub.f32 %v1890, %v1990
    %v2055 = vsub.f32 %v1893, %v1991
    %v2056 = vadd.f32 %v2024, 1e-05
    %v2057 = vadd.f32 %v2025, 1e-05
    %v2058 = vadd.f32 %v2026, 1e-05
    %v2059 = vadd.f32 %v2027, 1e-05
    %v2060 = vadd.f32 %v2028, 1e-05
    %v2061 = vadd.f32 %v2029, 1e-05
    %v2062 = vadd.f32 %v2030, 1e-05
    %v2063 = vadd.f32 %v2031, 1e-05
    %v2064 = vadd.f32 %v2032, 1e-05
    %v2065 = vadd.f32 %v2033, 1e-05
    %v2066 = vadd.f32 %v2034, 1e-05
    %v2067 = vadd.f32 %v2035, 1e-05
    %v2068 = vadd.f32 %v2036, 1e-05
    %v2069 = vadd.f32 %v2037, 1e-05
    %v2070 = vadd.f32 %v2038, 1e-05
    %v2071 = vadd.f32 %v2039, 1e-05
    %v2072 = vrsqrt.pop %v2056
    %v2073 = vrsqrt.pop %v2057
    %v2074 = vrsqrt.pop %v2058
    %v2075 = vrsqrt.pop %v2059
    %v2076 = vrsqrt.pop %v2060
    %v2077 = vrsqrt.pop %v2061
    %v2078 = vrsqrt.pop %v2062
    %v2079 = vrsqrt.pop %v2063
    %v2080 = vrsqrt.pop %v2064
    %v2081 = vrsqrt.pop %v2065
    %v2082 = vrsqrt.pop %v2066
    %v2083 = vrsqrt.pop %v2067
    %v2084 = vrsqrt.pop %v2068
    %v2085 = vrsqrt.pop %v2069
    %v2086 = vrsqrt.pop %v2070
    %v2087 = vrsqrt.pop %v2071
    %v2088 = vmul.f32 %v2040, %v2072
    %v2089 = vmul.f32 %v2041, %v2073
    %v2090 = vmul.f32 %v2042, %v2074
    %v2091 = vmul.f32 %v2043, %v2075
    %v2092 = vmul.f32 %v2044, %v2076
    %v2093 = vmul.f32 %v2045, %v2077
    %v2094 = vmul.f32 %v2046, %v2078
    %v2095 = vmul.f32 %v2047, %v2079
    %v2096 = vmul.f32 %v2048, %v2080
    %v2097 = vmul.f32 %v2049, %v2081
    %v2098 = vmul.f32 %v2050, %v2082
    %v2099 = vmul.f32 %v2051, %v2083
    %v2100 = vmul.f32 %v2052, %v2084
    %v2101 = vmul.f32 %v2053, %v2085
    %v2102 = vmul.f32 %v2054, %v2086
    %v2103 = vmul.f32 %v2055, %v2087
    %v2104 = vlaneseq
    %v2105 = vshrl.u32 %v2104, 7
    %v2106 = vsub.s32 0, %v2105
    %v2107 = vrot.slane %v1170, %v2106
    %v2108 = vmul.f32 %v2088, %v2107
    %v2109 = vmul.f32 %v2089, %v2107
    %v2110 = vmul.f32 %v2090, %v2107
    %v2111 = vmul.f32 %v2091, %v2107
    %v2112 = vmul.f32 %v2092, %v2107
    %v2113 = vmul.f32 %v2093, %v2107
    %v2114 = vmul.f32 %v2094, %v2107
    %v2115 = vmul.f32 %v2095, %v2107
    %v2116 = vmul.f32 %v2096, %v2107
    %v2117 = vmul.f32 %v2097, %v2107
    %v2118 = vmul.f32 %v2098, %v2107
    %v2119 = vmul.f32 %v2099, %v2107
    %v2120 = vmul.f32 %v2100, %v2107
    %v2121 = vmul.f32 %v2101, %v2107
    %v2122 = vmul.f32 %v2102, %v2107
    %v2123 = vmul.f32 %v2103, %v2107
    %v2124 = vlaneseq
    %v2125 = vshrl.u32 %v2124, 7
    %v2126 = vsub.s32 0, %v2125
    %v2127 = vrot.slane %v1172, %v2126
    %v2128 = vadd.f32 %v2108, %v2127
    %v2129 = vadd.f32 %v2109, %v2127
    %v2130 = vadd.f32 %v2110, %v2127
    %v2131 = vadd.f32 %v2111, %v2127
    %v2132 = vadd.f32 %v2112, %v2127
    %v2133 = vadd.f32 %v2113, %v2127
    %v2134 = vadd.f32 %v2114, %v2127
    %v2135 = vadd.f32 %v2115, %v2127
    %v2136 = vadd.f32 %v2116, %v2127
    %v2137 = vadd.f32 %v2117, %v2127
    %v2138 = vadd.f32 %v2118, %v2127
    %v2139 = vadd.f32 %v2119, %v2127
    %v2140 = vadd.f32 %v2120, %v2127
    %v2141 = vadd.f32 %v2121, %v2127
    %v2142 = vadd.f32 %v2122, %v2127
    %v2143 = vadd.f32 %v2123, %v2127
    %v2144 = vxor.u32 %v2128, 2147483648
    %v2145 = vxor.u32 %v2129, 2147483648
    %v2146 = vxor.u32 %v2130, 2147483648
    %v2147 = vxor.u32 %v2131, 2147483648
    %v2148 = vxor.u32 %v2132, 2147483648
    %v2149 = vxor.u32 %v2133, 2147483648
    %v2150 = vxor.u32 %v2134, 2147483648
    %v2151 = vxor.u32 %v2135, 2147483648
    %v2152 = vxor.u32 %v2136, 2147483648
    %v2153 = vxor.u32 %v2137, 2147483648
    %v2154 = vxor.u32 %v2138, 2147483648
    %v2155 = vxor.u32 %v2139, 2147483648
    %v2156 = vxor.u32 %v2140, 2147483648
    %v2157 = vxor.u32 %v2141, 2147483648
    %v2158 = vxor.u32 %v2142, 2147483648
    %v2159 = vxor.u32 %v2143, 2147483648
    %v2160 = vmul.f32 %v2144, 1.442695
    %v2161 = vpow.pop %v2160
    %v2162 = vmul.f32 %v2145, 1.442695
    %v2163 = vpow.pop %v2162
    %v2164 = vmul.f32 %v2146, 1.442695
    %v2165 = vpow.pop %v2164
    %v2166 = vmul.f32 %v2147, 1.442695
    %v2167 = vpow.pop %v2166
    %v2168 = vmul.f32 %v2148, 1.442695
    %v2169 = vpow.pop %v2168
    %v2170 = vmul.f32 %v2149, 1.442695
    %v2171 = vpow.pop %v2170
    %v2172 = vmul.f32 %v2150, 1.442695
    %v2173 = vpow.pop %v2172
    %v2174 = vmul.f32 %v2151, 1.442695
    %v2175 = vpow.pop %v2174
    %v2176 = vmul.f32 %v2152, 1.442695
    %v2177 = vpow.pop %v2176
    %v2178 = vmul.f32 %v2153, 1.442695
    %v2179 = vpow.pop %v2178
    %v2180 = vmul.f32 %v2154, 1.442695
    %v2181 = vpow.pop %v2180
    %v2182 = vmul.f32 %v2155, 1.442695
    %v2183 = vpow.pop %v2182
    %v2184 = vmul.f32 %v2156, 1.442695
    %v2185 = vpow.pop %v2184
    %v2186 = vmul.f32 %v2157, 1.442695
    %v2187 = vpow.pop %v2186
    %v2188 = vmul.f32 %v2158, 1.442695
    %v2189 = vpow.pop %v2188
    %v2190 = vmul.f32 %v2159, 1.442695
    %v2191 = vpow.pop %v2190
    %v2192 = vadd.f32 %v2161, 1.0
    %v2193 = vadd.f32 %v2163, 1.0
    %v2194 = vadd.f32 %v2165, 1.0
    %v2195 = vadd.f32 %v2167, 1.0
    %v2196 = vadd.f32 %v2169, 1.0
    %v2197 = vadd.f32 %v2171, 1.0
    %v2198 = vadd.f32 %v2173, 1.0
    %v2199 = vadd.f32 %v2175, 1.0
    %v2200 = vadd.f32 %v2177, 1.0
    %v2201 = vadd.f32 %v2179, 1.0
    %v2202 = vadd.f32 %v2181, 1.0
    %v2203 = vadd.f32 %v2183, 1.0
    %v2204 = vadd.f32 %v2185, 1.0
    %v2205 = vadd.f32 %v2187, 1.0
    %v2206 = vadd.f32 %v2189, 1.0
    %v2207 = vadd.f32 %v2191, 1.0
    %v2208 = vrcp.pop %v2192
    %v2209 = vmul.f32 1.0, %v2208
    %v2210 = vrcp.pop %v2193
    %v2211 = vmul.f32 1.0, %v2210
    %v2212 = vrcp.pop %v2194
    %v2213 = vmul.f32 1.0, %v2212
    %v2214 = vrcp.pop %v2195
    %v2215 = vmul.f32 1.0, %v2214
    %v2216 = vrcp.pop %v2196
    %v2217 = vmul.f32 1.0, %v2216
    %v2218 = vrcp.pop %v2197
    %v2219 = vmul.f32 1.0, %v2218
    %v2220 = vrcp.pop %v2198
    %v2221 = vmul.f32 1.0, %v2220
    %v2222 = vrcp.pop %v2199
    %v2223 = vmul.f32 1.0, %v2222
    %v2224 = vrcp.pop %v2200
    %v2225 = vmul.f32 1.0, %v2224
    %v2226 = vrcp.pop %v2201
    %v2227 = vmul.f32 1.0, %v2226
    %v2228 = vrcp.pop %v2202
    %v2229 = vmul.f32 1.0, %v2228
    %v2230 = vrcp.pop %v2203
    %v2231 = vmul.f32 1.0, %v2230
    %v2232 = vrcp.pop %v2204
    %v2233 = vmul.f32 1.0, %v2232
    %v2234 = vrcp.pop %v2205
    %v2235 = vmul.f32 1.0, %v2234
    %v2236 = vrcp.pop %v2206
    %v2237 = vmul.f32 1.0, %v2236
    %v2238 = vrcp.pop %v2207
    %v2239 = vmul.f32 1.0, %v2238
    %v2240 = vmul.f32 %v2128, %v2209
    %v2241 = vmul.f32 %v2129, %v2211
    %v2242 = vmul.f32 %v2130, %v2213
    %v2243 = vmul.f32 %v2131, %v2215
    %v2244 = vmul.f32 %v2132, %v2217
    %v2245 = vmul.f32 %v2133, %v2219
    %v2246 = vmul.f32 %v2134, %v2221
    %v2247 = vmul.f32 %v2135, %v2223
    %v2248 = vmul.f32 %v2136, %v2225
    %v2249 = vmul.f32 %v2137, %v2227
    %v2250 = vmul.f32 %v2138, %v2229
    %v2251 = vmul.f32 %v2139, %v2231
    %v2252 = vmul.f32 %v2140, %v2233
    %v2253 = vmul.f32 %v2141, %v2235
    %v2254 = vmul.f32 %v2142, %v2237
    %v2255 = vmul.f32 %v2143, %v2239
    %v2256 = vadd.f32 %v1151, %v2240
    %v2257 = vadd.f32 %v1152, %v2241
    %v2258 = vadd.f32 %v1153, %v2242
    %v2259 = vadd.f32 %v1154, %v2243
    %v2260 = vadd.f32 %v1155, %v2244
    %v2261 = vadd.f32 %v1156, %v2245
    %v2262 = vadd.f32 %v1157, %v2246
    %v2263 = vadd.f32 %v1158, %v2247
    %v2264 = vadd.f32 %v1159, %v2248
    %v2265 = vadd.f32 %v1160, %v2249
    %v2266 = vadd.f32 %v1161, %v2250
    %v2267 = vadd.f32 %v1162, %v2251
    %v2268 = vadd.f32 %v1163, %v2252
    %v2269 = vadd.f32 %v1164, %v2253
    %v2270 = vadd.f32 %v1165, %v2254
    %v2271 = vadd.f32 %v1166, %v2255
    %s2272 = scalar_lea.vmem [#allocation2], 64
    %v2273 = vld [vmem:[%s2272] sm:$0xf]
    %v2274 = vld [vmem:[%s2272 + $0x4] sm:$0xf]
    %v2275 = vld [vmem:[%s2272 + $0x8] sm:$0xf]
    %v2276 = vld [vmem:[%s2272 + $0xc] sm:$0xf]
    %v2277 = vld [vmem:[%s2272 + $0x10] sm:$0xf]
    %v2278 = vld [vmem:[%s2272 + $0x14] sm:$0xf]
    %v2279 = vld [vmem:[%s2272 + $0x18] sm:$0xf]
    %v2280 = vld [vmem:[%s2272 + $0x1c] sm:$0xf]
    %v2281 = vld [vmem:[%s2272 + $0x20] sm:$0xf]
    %v2282 = vld [vmem:[%s2272 + $0x24] sm:$0xf]
    %v2283 = vld [vmem:[%s2272 + $0x28] sm:$0xf]
    %v2284 = vld [vmem:[%s2272 + $0x2c] sm:$0xf]
    %v2285 = vld [vmem:[%s2272 + $0x30] sm:$0xf]
    %v2286 = vld [vmem:[%s2272 + $0x34] sm:$0xf]
    %v2287 = vld [vmem:[%s2272 + $0x38] sm:$0xf]
    %v2288 = vld [vmem:[%s2272 + $0x3c] sm:$0xf]
    %v2289 = vpack.c.bf16 %v1707, %v1706
    %v2290 = vpack.c.bf16 %v1709, %v1708
    %v2291 = vpack.c.bf16 %v1711, %v1710
    %v2292 = vpack.c.bf16 %v1713, %v1712
    %v2293 = vpack.c.bf16 %v1715, %v1714
    %v2294 = vpack.c.bf16 %v1717, %v1716
    %v2295 = vpack.c.bf16 %v1719, %v1718
    %v2296 = vpack.c.bf16 %v1721, %v1720
    %v2297 = vlaneseq
    %v2298 = vshrl.u32 %v2297, 7
    %v2299 = vsub.s32 1, %v2298
    %v2300 = vrot.slane %v1167, %v2299
    %v2317 = vunpack.c.l.b16 %v2273
    %v2318 = vunpack.c.l.b16 %v2274
    %v2319 = vunpack.c.l.b16 %v2275
    %v2320 = vunpack.c.l.b16 %v2276
    %v2321 = vunpack.c.l.b16 %v2277
    %v2322 = vunpack.c.l.b16 %v2278
    %v2323 = vunpack.c.l.b16 %v2279
    %v2324 = vunpack.c.l.b16 %v2280
    %v2325 = vunpack.c.l.b16 %v2281
    %v2326 = vunpack.c.l.b16 %v2282
    %v2327 = vunpack.c.l.b16 %v2283
    %v2328 = vunpack.c.l.b16 %v2284
    %v2329 = vunpack.c.l.b16 %v2285
    %v2330 = vunpack.c.l.b16 %v2286
    %v2331 = vunpack.c.l.b16 %v2287
    %v2332 = vunpack.c.l.b16 %v2288
    %v2333 = vpack.c.b16 %v2318, %v2317
    %v2334 = vpack.c.b16 %v2320, %v2319
    %v2335 = vpack.c.b16 %v2322, %v2321
    %v2336 = vpack.c.b16 %v2324, %v2323
    %v2337 = vpack.c.b16 %v2326, %v2325
    %v2338 = vpack.c.b16 %v2328, %v2327
    %v2339 = vpack.c.b16 %v2330, %v2329
    %v2340 = vpack.c.b16 %v2332, %v2331
    %2349 = vmatprep.subr.bf16.mxu0 0
    %2350 = vmatpush1.bf16.msra.mxu0 %v2333
    %2351 = vmatprep.subr.bf16.mxu0 0
    %2352 = vmatpush1.bf16.msra.mxu0 %v2334
    %2353 = vmatprep.subr.bf16.mxu0 0
    %2354 = vmatpush1.bf16.msra.mxu0 %v2335
    %2355 = vmatprep.subr.bf16.mxu0 0
    %2356 = vmatpush1.bf16.msra.mxu0 %v2336
    %2357 = vmatprep.subr.bf16.mxu0 0
    %2358 = vmatpush1.bf16.msra.mxu0 %v2337
    %2359 = vmatprep.subr.bf16.mxu0 0
    %2360 = vmatpush1.bf16.msra.mxu0 %v2338
    %2361 = vmatprep.subr.bf16.mxu0 0
    %2362 = vmatpush1.bf16.msra.mxu0 %v2339
    %2363 = vmatprep.subr.bf16.mxu0 0
    %2364 = vmatpush1.bf16.msra.mxu0 %v2340
    %2365 = vmatprep.subr.bf16.mxu0 0
    %2366 = vmatpush1.bf16.msra.mxu0 0
    %2367 = vmatprep.subr.bf16.mxu0 0
    %2368 = vmatpush1.bf16.msra.mxu0 0
    %2369 = vmatprep.subr.bf16.mxu0 0
    %2370 = vmatpush1.bf16.msra.mxu0 0
    %2371 = vmatprep.subr.bf16.mxu0 0
    %2372 = vmatpush1.bf16.msra.mxu0 0
    %2373 = vmatprep.subr.bf16.mxu0 0
    %2374 = vmatpush1.bf16.msra.mxu0 0
    %2375 = vmatprep.subr.bf16.mxu0 0
    %2376 = vmatpush1.bf16.msra.mxu0 0
    %2377 = vmatprep.subr.bf16.mxu0 0
    %2378 = vmatpush1.bf16.msra.mxu0 0
    %2379 = vmatprep.subr.bf16.mxu0 0
    %2380 = vmatpush1.bf16.msra.mxu0 0
    %2381 = vmatprep.mubr.bf16.mxu0 0
    %2382 = vmatmul.mubr.bf16.gmra.mrb[0].mxu0 %v2289
    %v2383 = vpop.f32.mrb[0].mxu0
    %v2384 = vadd.f32 %v2300, %v2383
    %v2385 = vpop.f32.mrb[0].mxu0
    %v2386 = vpop.f32.mrb[0].mxu0
    %v2387 = vadd.f32 %v2300, %v2386
    %v2388 = vpop.f32.mrb[0].mxu0
    %2389 = vmatprep.mubr.bf16.mxu0 0
    %2390 = vmatmul.mubr.bf16.gmra.mrb[0].mxu0 %v2290
    %v2391 = vpop.f32.mrb[0].mxu0
    %v2392 = vadd.f32 %v2300, %v2391
    %v2393 = vpop.f32.mrb[0].mxu0
    %v2394 = vpop.f32.mrb[0].mxu0
    %v2395 = vadd.f32 %v2300, %v2394
    %v2396 = vpop.f32.mrb[0].mxu0
    %2397 = vmatprep.mubr.bf16.mxu0 0
    %2398 = vmatmul.mubr.bf16.gmra.mrb[0].mxu0 %v2291
    %v2399 = vpop.f32.mrb[0].mxu0
    %v2400 = vadd.f32 %v2300, %v2399
    %v2401 = vpop.f32.mrb[0].mxu0
    %v2402 = vpop.f32.mrb[0].mxu0
    %v2403 = vadd.f32 %v2300, %v2402
    %v2404 = vpop.f32.mrb[0].mxu0
    %2405 = vmatprep.mubr.bf16.mxu0 0
    %2406 = vmatmul.mubr.bf16.gmra.mrb[0].mxu0 %v2292
    %v2407 = vpop.f32.mrb[0].mxu0
    %v2408 = vadd.f32 %v2300, %v2407
    %v2409 = vpop.f32.mrb[0].mxu0
    %v2410 = vpop.f32.mrb[0].mxu0
    %v2411 = vadd.f32 %v2300, %v2410
    %v2412 = vpop.f32.mrb[0].mxu0
    %2413 = vmatprep.mubr.bf16.mxu0 0
    %2414 = vmatmul.mubr.bf16.gmra.mrb[0].mxu0 %v2293
    %v2415 = vpop.f32.mrb[0].mxu0
    %v2416 = vadd.f32 %v2300, %v2415
    %v2417 = vpop.f32.mrb[0].mxu0
    %v2418 = vpop.f32.mrb[0].mxu0
    %v2419 = vadd.f32 %v2300, %v2418
    %v2420 = vpop.f32.mrb[0].mxu0
    %2421 = vmatprep.mubr.bf16.mxu0 0
    %2422 = vmatmul.mubr.bf16.gmra.mrb[0].mxu0 %v2294
    %v2423 = vpop.f32.mrb[0].mxu0
    %v2424 = vadd.f32 %v2300, %v2423
    %v2425 = vpop.f32.mrb[0].mxu0
    %v2426 = vpop.f32.mrb[0].mxu0
    %v2427 = vadd.f32 %v2300, %v2426
    %v2428 = vpop.f32.mrb[0].mxu0
    %2429 = vmatprep.mubr.bf16.mxu0 0
    %2430 = vmatmul.mubr.bf16.gmra.mrb[0].mxu0 %v2295
    %v2431 = vpop.f32.mrb[0].mxu0
    %v2432 = vadd.f32 %v2300, %v2431
    %v2433 = vpop.f32.mrb[0].mxu0
    %v2434 = vpop.f32.mrb[0].mxu0
    %v2435 = vadd.f32 %v2300, %v2434
    %v2436 = vpop.f32.mrb[0].mxu0
    %2437 = vmatprep.mubr.bf16.mxu0 0
    %2438 = vmatmul.mubr.bf16.gmra.mrb[0].mxu0 %v2296
    %v2439 = vpop.f32.mrb[0].mxu0
    %v2440 = vadd.f32 %v2300, %v2439
    %v2441 = vpop.f32.mrb[0].mxu0
    %v2442 = vpop.f32.mrb[0].mxu0
    %v2443 = vadd.f32 %v2300, %v2442
    %v2444 = vpop.f32.mrb[0].mxu0
    %2445 = vdwg.mxu0
    %2446 = vadd.xlane.f32.xlu0 %v2384
    %v2447 = vpop.xlane.xlu0 %2446
    %2448 = vadd.xlane.f32.xlu0 %v2387
    %v2449 = vpop.xlane.xlu0 %2448
    %2450 = vadd.xlane.f32.xlu0 %v2392
    %v2451 = vpop.xlane.xlu0 %2450
    %2452 = vadd.xlane.f32.xlu0 %v2395
    %v2453 = vpop.xlane.xlu0 %2452
    %2454 = vadd.xlane.f32.xlu0 %v2400
    %v2455 = vpop.xlane.xlu0 %2454
    %2456 = vadd.xlane.f32.xlu0 %v2403
    %v2457 = vpop.xlane.xlu0 %2456
    %2458 = vadd.xlane.f32.xlu0 %v2408
    %v2459 = vpop.xlane.xlu0 %2458
    %2460 = vadd.xlane.f32.xlu0 %v2411
    %v2461 = vpop.xlane.xlu0 %2460
    %2462 = vadd.xlane.f32.xlu0 %v2416
    %v2463 = vpop.xlane.xlu0 %2462
    %2464 = vadd.xlane.f32.xlu0 %v2419
    %v2465 = vpop.xlane.xlu0 %2464
    %2466 = vadd.xlane.f32.xlu0 %v2424
    %v2467 = vpop.xlane.xlu0 %2466
    %2468 = vadd.xlane.f32.xlu0 %v2427
    %v2469 = vpop.xlane.xlu0 %2468
    %2470 = vadd.xlane.f32.xlu0 %v2432
    %v2471 = vpop.xlane.xlu0 %2470
    %2472 = vadd.xlane.f32.xlu0 %v2435
    %v2473 = vpop.xlane.xlu0 %2472
    %2474 = vadd.xlane.f32.xlu0 %v2440
    %v2475 = vpop.xlane.xlu0 %2474
    %2476 = vadd.xlane.f32.xlu0 %v2443
    %v2477 = vpop.xlane.xlu0 %2476
    %v2478 = vmul.f32 %v2384, %v2384
    %v2479 = vmul.f32 %v2387, %v2387
    %v2480 = vmul.f32 %v2392, %v2392
    %v2481 = vmul.f32 %v2395, %v2395
    %v2482 = vmul.f32 %v2400, %v2400
    %v2483 = vmul.f32 %v2403, %v2403
    %v2484 = vmul.f32 %v2408, %v2408
    %v2485 = vmul.f32 %v2411, %v2411
    %v2486 = vmul.f32 %v2416, %v2416
    %v2487 = vmul.f32 %v2419, %v2419
    %v2488 = vmul.f32 %v2424, %v2424
    %v2489 = vmul.f32 %v2427, %v2427
    %v2490 = vmul.f32 %v2432, %v2432
    %v2491 = vmul.f32 %v2435, %v2435
    %v2492 = vmul.f32 %v2440, %v2440
    %v2493 = vmul.f32 %v2443, %v2443
    %2494 = vadd.xlane.f32.xlu0 %v2478
    %v2495 = vpop.xlane.xlu0 %2494
    %2496 = vadd.xlane.f32.xlu0 %v2479
    %v2497 = vpop.xlane.xlu0 %2496
    %2498 = vadd.xlane.f32.xlu0 %v2480
    %v2499 = vpop.xlane.xlu0 %2498
    %2500 = vadd.xlane.f32.xlu0 %v2481
    %v2501 = vpop.xlane.xlu0 %2500
    %2502 = vadd.xlane.f32.xlu0 %v2482
    %v2503 = vpop.xlane.xlu0 %2502
    %2504 = vadd.xlane.f32.xlu0 %v2483
    %v2505 = vpop.xlane.xlu0 %2504
    %2506 = vadd.xlane.f32.xlu0 %v2484
    %v2507 = vpop.xlane.xlu0 %2506
    %2508 = vadd.xlane.f32.xlu0 %v2485
    %v2509 = vpop.xlane.xlu0 %2508
    %2510 = vadd.xlane.f32.xlu0 %v2486
    %v2511 = vpop.xlane.xlu0 %2510
    %2512 = vadd.xlane.f32.xlu0 %v2487
    %v2513 = vpop.xlane.xlu0 %2512
    %2514 = vadd.xlane.f32.xlu0 %v2488
    %v2515 = vpop.xlane.xlu0 %2514
    %2516 = vadd.xlane.f32.xlu0 %v2489
    %v2517 = vpop.xlane.xlu0 %2516
    %2518 = vadd.xlane.f32.xlu0 %v2490
    %v2519 = vpop.xlane.xlu0 %2518
    %2520 = vadd.xlane.f32.xlu0 %v2491
    %v2521 = vpop.xlane.xlu0 %2520
    %2522 = vadd.xlane.f32.xlu0 %v2492
    %v2523 = vpop.xlane.xlu0 %2522
    %2524 = vadd.xlane.f32.xlu0 %v2493
    %v2525 = vpop.xlane.xlu0 %2524
    %v2526 = vmul.f32 %v2447, 0.0078125
    %v2527 = vmul.f32 %v2449, 0.0078125
    %v2528 = vmul.f32 %v2451, 0.0078125
    %v2529 = vmul.f32 %v2453, 0.0078125
    %v2530 = vmul.f32 %v2455, 0.0078125
    %v2531 = vmul.f32 %v2457, 0.0078125
    %v2532 = vmul.f32 %v2459, 0.0078125
    %v2533 = vmul.f32 %v2461, 0.0078125
    %v2534 = vmul.f32 %v2463, 0.0078125
    %v2535 = vmul.f32 %v2465, 0.0078125
    %v2536 = vmul.f32 %v2467, 0.0078125
    %v2537 = vmul.f32 %v2469, 0.0078125
    %v2538 = vmul.f32 %v2471, 0.0078125
    %v2539 = vmul.f32 %v2473, 0.0078125
    %v2540 = vmul.f32 %v2475, 0.0078125
    %v2541 = vmul.f32 %v2477, 0.0078125
    %v2542 = vmul.f32 %v2495, 0.0078125
    %v2543 = vmul.f32 %v2497, 0.0078125
    %v2544 = vmul.f32 %v2499, 0.0078125
    %v2545 = vmul.f32 %v2501, 0.0078125
    %v2546 = vmul.f32 %v2503, 0.0078125
    %v2547 = vmul.f32 %v2505, 0.0078125
    %v2548 = vmul.f32 %v2507, 0.0078125
    %v2549 = vmul.f32 %v2509, 0.0078125
    %v2550 = vmul.f32 %v2511, 0.0078125
    %v2551 = vmul.f32 %v2513, 0.0078125
    %v2552 = vmul.f32 %v2515, 0.0078125
    %v2553 = vmul.f32 %v2517, 0.0078125
    %v2554 = vmul.f32 %v2519, 0.0078125
    %v2555 = vmul.f32 %v2521, 0.0078125
    %v2556 = vmul.f32 %v2523, 0.0078125
    %v2557 = vmul.f32 %v2525, 0.0078125
    %v2558 = vmul.f32 %v2526, %v2526
    %v2559 = vmul.f32 %v2527, %v2527
    %v2560 = vmul.f32 %v2528, %v2528
    %v2561 = vmul.f32 %v2529, %v2529
    %v2562 = vmul.f32 %v2530, %v2530
    %v2563 = vmul.f32 %v2531, %v2531
    %v2564 = vmul.f32 %v2532, %v2532
    %v2565 = vmul.f32 %v2533, %v2533
    %v2566 = vmul.f32 %v2534, %v2534
    %v2567 = vmul.f32 %v2535, %v2535
    %v2568 = vmul.f32 %v2536, %v2536
    %v2569 = vmul.f32 %v2537, %v2537
    %v2570 = vmul.f32 %v2538, %v2538
    %v2571 = vmul.f32 %v2539, %v2539
    %v2572 = vmul.f32 %v2540, %v2540
    %v2573 = vmul.f32 %v2541, %v2541
    %v2574 = vsub.f32 %v2542, %v2558
    %v2575 = vsub.f32 %v2543, %v2559
    %v2576 = vsub.f32 %v2544, %v2560
    %v2577 = vsub.f32 %v2545, %v2561
    %v2578 = vsub.f32 %v2546, %v2562
    %v2579 = vsub.f32 %v2547, %v2563
    %v2580 = vsub.f32 %v2548, %v2564
    %v2581 = vsub.f32 %v2549, %v2565
    %v2582 = vsub.f32 %v2550, %v2566
    %v2583 = vsub.f32 %v2551, %v2567
    %v2584 = vsub.f32 %v2552, %v2568
    %v2585 = vsub.f32 %v2553, %v2569
    %v2586 = vsub.f32 %v2554, %v2570
    %v2587 = vsub.f32 %v2555, %v2571
    %v2588 = vsub.f32 %v2556, %v2572
    %v2589 = vsub.f32 %v2557, %v2573
    %v2590 = vsub.f32 %v2384, %v2526
    %v2591 = vsub.f32 %v2387, %v2527
    %v2592 = vsub.f32 %v2392, %v2528
    %v2593 = vsub.f32 %v2395, %v2529
    %v2594 = vsub.f32 %v2400, %v2530
    %v2595 = vsub.f32 %v2403, %v2531
    %v2596 = vsub.f32 %v2408, %v2532
    %v2597 = vsub.f32 %v2411, %v2533
    %v2598 = vsub.f32 %v2416, %v2534
    %v2599 = vsub.f32 %v2419, %v2535
    %v2600 = vsub.f32 %v2424, %v2536
    %v2601 = vsub.f32 %v2427, %v2537
    %v2602 = vsub.f32 %v2432, %v2538
    %v2603 = vsub.f32 %v2435, %v2539
    %v2604 = vsub.f32 %v2440, %v2540
    %v2605 = vsub.f32 %v2443, %v2541
    %v2606 = vadd.f32 %v2574, 1e-05
    %v2607 = vadd.f32 %v2575, 1e-05
    %v2608 = vadd.f32 %v2576, 1e-05
    %v2609 = vadd.f32 %v2577, 1e-05
    %v2610 = vadd.f32 %v2578, 1e-05
    %v2611 = vadd.f32 %v2579, 1e-05
    %v2612 = vadd.f32 %v2580, 1e-05
    %v2613 = vadd.f32 %v2581, 1e-05
    %v2614 = vadd.f32 %v2582, 1e-05
    %v2615 = vadd.f32 %v2583, 1e-05
    %v2616 = vadd.f32 %v2584, 1e-05
    %v2617 = vadd.f32 %v2585, 1e-05
    %v2618 = vadd.f32 %v2586, 1e-05
    %v2619 = vadd.f32 %v2587, 1e-05
    %v2620 = vadd.f32 %v2588, 1e-05
    %v2621 = vadd.f32 %v2589, 1e-05
    %v2622 = vrsqrt.pop %v2606
    %v2623 = vrsqrt.pop %v2607
    %v2624 = vrsqrt.pop %v2608
    %v2625 = vrsqrt.pop %v2609
    %v2626 = vrsqrt.pop %v2610
    %v2627 = vrsqrt.pop %v2611
    %v2628 = vrsqrt.pop %v2612
    %v2629 = vrsqrt.pop %v2613
    %v2630 = vrsqrt.pop %v2614
    %v2631 = vrsqrt.pop %v2615
    %v2632 = vrsqrt.pop %v2616
    %v2633 = vrsqrt.pop %v2617
    %v2634 = vrsqrt.pop %v2618
    %v2635 = vrsqrt.pop %v2619
    %v2636 = vrsqrt.pop %v2620
    %v2637 = vrsqrt.pop %v2621
    %v2638 = vmul.f32 %v2590, %v2622
    %v2639 = vmul.f32 %v2591, %v2623
    %v2640 = vmul.f32 %v2592, %v2624
    %v2641 = vmul.f32 %v2593, %v2625
    %v2642 = vmul.f32 %v2594, %v2626
    %v2643 = vmul.f32 %v2595, %v2627
    %v2644 = vmul.f32 %v2596, %v2628
    %v2645 = vmul.f32 %v2597, %v2629
    %v2646 = vmul.f32 %v2598, %v2630
    %v2647 = vmul.f32 %v2599, %v2631
    %v2648 = vmul.f32 %v2600, %v2632
    %v2649 = vmul.f32 %v2601, %v2633
    %v2650 = vmul.f32 %v2602, %v2634
    %v2651 = vmul.f32 %v2603, %v2635
    %v2652 = vmul.f32 %v2604, %v2636
    %v2653 = vmul.f32 %v2605, %v2637
    %v2654 = vlaneseq
    %v2655 = vshrl.u32 %v2654, 7
    %v2656 = vsub.s32 1, %v2655
    %v2657 = vrot.slane %v1169, %v2656
    %v2658 = vmul.f32 %v2638, %v2657
    %v2659 = vmul.f32 %v2639, %v2657
    %v2660 = vmul.f32 %v2640, %v2657
    %v2661 = vmul.f32 %v2641, %v2657
    %v2662 = vmul.f32 %v2642, %v2657
    %v2663 = vmul.f32 %v2643, %v2657
    %v2664 = vmul.f32 %v2644, %v2657
    %v2665 = vmul.f32 %v2645, %v2657
    %v2666 = vmul.f32 %v2646, %v2657
    %v2667 = vmul.f32 %v2647, %v2657
    %v2668 = vmul.f32 %v2648, %v2657
    %v2669 = vmul.f32 %v2649, %v2657
    %v2670 = vmul.f32 %v2650, %v2657
    %v2671 = vmul.f32 %v2651, %v2657
    %v2672 = vmul.f32 %v2652, %v2657
    %v2673 = vmul.f32 %v2653, %v2657
    %v2674 = vlaneseq
    %v2675 = vshrl.u32 %v2674, 7
    %v2676 = vsub.s32 1, %v2675
    %v2677 = vrot.slane %v1171, %v2676
    %v2678 = vadd.f32 %v2658, %v2677
    %v2679 = vadd.f32 %v2659, %v2677
    %v2680 = vadd.f32 %v2660, %v2677
    %v2681 = vadd.f32 %v2661, %v2677
    %v2682 = vadd.f32 %v2662, %v2677
    %v2683 = vadd.f32 %v2663, %v2677
    %v2684 = vadd.f32 %v2664, %v2677
    %v2685 = vadd.f32 %v2665, %v2677
    %v2686 = vadd.f32 %v2666, %v2677
    %v2687 = vadd.f32 %v2667, %v2677
    %v2688 = vadd.f32 %v2668, %v2677
    %v2689 = vadd.f32 %v2669, %v2677
    %v2690 = vadd.f32 %v2670, %v2677
    %v2691 = vadd.f32 %v2671, %v2677
    %v2692 = vadd.f32 %v2672, %v2677
    %v2693 = vadd.f32 %v2673, %v2677
    %v2694 = vxor.u32 %v2678, 2147483648
    %v2695 = vxor.u32 %v2679, 2147483648
    %v2696 = vxor.u32 %v2680, 2147483648
    %v2697 = vxor.u32 %v2681, 2147483648
    %v2698 = vxor.u32 %v2682, 2147483648
    %v2699 = vxor.u32 %v2683, 2147483648
    %v2700 = vxor.u32 %v2684, 2147483648
    %v2701 = vxor.u32 %v2685, 2147483648
    %v2702 = vxor.u32 %v2686, 2147483648
    %v2703 = vxor.u32 %v2687, 2147483648
    %v2704 = vxor.u32 %v2688, 2147483648
    %v2705 = vxor.u32 %v2689, 2147483648
    %v2706 = vxor.u32 %v2690, 2147483648
    %v2707 = vxor.u32 %v2691, 2147483648
    %v2708 = vxor.u32 %v2692, 2147483648
    %v2709 = vxor.u32 %v2693, 2147483648
    %v2710 = vmul.f32 %v2694, 1.442695
    %v2711 = vpow.pop %v2710
    %v2712 = vmul.f32 %v2695, 1.442695
    %v2713 = vpow.pop %v2712
    %v2714 = vmul.f32 %v2696, 1.442695
    %v2715 = vpow.pop %v2714
    %v2716 = vmul.f32 %v2697, 1.442695
    %v2717 = vpow.pop %v2716
    %v2718 = vmul.f32 %v2698, 1.442695
    %v2719 = vpow.pop %v2718
    %v2720 = vmul.f32 %v2699, 1.442695
    %v2721 = vpow.pop %v2720
    %v2722 = vmul.f32 %v2700, 1.442695
    %v2723 = vpow.pop %v2722
    %v2724 = vmul.f32 %v2701, 1.442695
    %v2725 = vpow.pop %v2724
    %v2726 = vmul.f32 %v2702, 1.442695
    %v2727 = vpow.pop %v2726
    %v2728 = vmul.f32 %v2703, 1.442695
    %v2729 = vpow.pop %v2728
    %v2730 = vmul.f32 %v2704, 1.442695
    %v2731 = vpow.pop %v2730
    %v2732 = vmul.f32 %v2705, 1.442695
    %v2733 = vpow.pop %v2732
    %v2734 = vmul.f32 %v2706, 1.442695
    %v2735 = vpow.pop %v2734
    %v2736 = vmul.f32 %v2707, 1.442695
    %v2737 = vpow.pop %v2736
    %v2738 = vmul.f32 %v2708, 1.442695
    %v2739 = vpow.pop %v2738
    %v2740 = vmul.f32 %v2709, 1.442695
    %v2741 = vpow.pop %v2740
    %v2742 = vadd.f32 %v2711, 1.0
    %v2743 = vadd.f32 %v2713, 1.0
    %v2744 = vadd.f32 %v2715, 1.0
    %v2745 = vadd.f32 %v2717, 1.0
    %v2746 = vadd.f32 %v2719, 1.0
    %v2747 = vadd.f32 %v2721, 1.0
    %v2748 = vadd.f32 %v2723, 1.0
    %v2749 = vadd.f32 %v2725, 1.0
    %v2750 = vadd.f32 %v2727, 1.0
    %v2751 = vadd.f32 %v2729, 1.0
    %v2752 = vadd.f32 %v2731, 1.0
    %v2753 = vadd.f32 %v2733, 1.0
    %v2754 = vadd.f32 %v2735, 1.0
    %v2755 = vadd.f32 %v2737, 1.0
    %v2756 = vadd.f32 %v2739, 1.0
    %v2757 = vadd.f32 %v2741, 1.0
    %v2758 = vrcp.pop %v2742
    %v2759 = vmul.f32 1.0, %v2758
    %v2760 = vrcp.pop %v2743
    %v2761 = vmul.f32 1.0, %v2760
    %v2762 = vrcp.pop %v2744
    %v2763 = vmul.f32 1.0, %v2762
    %v2764 = vrcp.pop %v2745
    %v2765 = vmul.f32 1.0, %v2764
    %v2766 = vrcp.pop %v2746
    %v2767 = vmul.f32 1.0, %v2766
    %v2768 = vrcp.pop %v2747
    %v2769 = vmul.f32 1.0, %v2768
    %v2770 = vrcp.pop %v2748
    %v2771 = vmul.f32 1.0, %v2770
    %v2772 = vrcp.pop %v2749
    %v2773 = vmul.f32 1.0, %v2772
    %v2774 = vrcp.pop %v2750
    %v2775 = vmul.f32 1.0, %v2774
    %v2776 = vrcp.pop %v2751
    %v2777 = vmul.f32 1.0, %v2776
    %v2778 = vrcp.pop %v2752
    %v2779 = vmul.f32 1.0, %v2778
    %v2780 = vrcp.pop %v2753
    %v2781 = vmul.f32 1.0, %v2780
    %v2782 = vrcp.pop %v2754
    %v2783 = vmul.f32 1.0, %v2782
    %v2784 = vrcp.pop %v2755
    %v2785 = vmul.f32 1.0, %v2784
    %v2786 = vrcp.pop %v2756
    %v2787 = vmul.f32 1.0, %v2786
    %v2788 = vrcp.pop %v2757
    %v2789 = vmul.f32 1.0, %v2788
    %v2790 = vmul.f32 %v2678, %v2759
    %v2791 = vmul.f32 %v2679, %v2761
    %v2792 = vmul.f32 %v2680, %v2763
    %v2793 = vmul.f32 %v2681, %v2765
    %v2794 = vmul.f32 %v2682, %v2767
    %v2795 = vmul.f32 %v2683, %v2769
    %v2796 = vmul.f32 %v2684, %v2771
    %v2797 = vmul.f32 %v2685, %v2773
    %v2798 = vmul.f32 %v2686, %v2775
    %v2799 = vmul.f32 %v2687, %v2777
    %v2800 = vmul.f32 %v2688, %v2779
    %v2801 = vmul.f32 %v2689, %v2781
    %v2802 = vmul.f32 %v2690, %v2783
    %v2803 = vmul.f32 %v2691, %v2785
    %v2804 = vmul.f32 %v2692, %v2787
    %v2805 = vmul.f32 %v2693, %v2789
    %v2806 = vadd.f32 %v1706, %v2790
    %v2807 = vadd.f32 %v1707, %v2791
    %v2808 = vadd.f32 %v1708, %v2792
    %v2809 = vadd.f32 %v1709, %v2793
    %v2810 = vadd.f32 %v1710, %v2794
    %v2811 = vadd.f32 %v1711, %v2795
    %v2812 = vadd.f32 %v1712, %v2796
    %v2813 = vadd.f32 %v1713, %v2797
    %v2814 = vadd.f32 %v1714, %v2798
    %v2815 = vadd.f32 %v1715, %v2799
    %v2816 = vadd.f32 %v1716, %v2800
    %v2817 = vadd.f32 %v1717, %v2801
    %v2818 = vadd.f32 %v1718, %v2802
    %v2819 = vadd.f32 %v1719, %v2803
    %v2820 = vadd.f32 %v1720, %v2804
    %v2821 = vadd.f32 %v1721, %v2805
    %s2822 = scalar_lea.vmem [#allocation2], 256
    %v2823 = vld [vmem:[%s2822] sm:$0xf]
    %v2824 = vld [vmem:[%s2822 + $0x4] sm:$0xf]
    %v2825 = vld [vmem:[%s2822 + $0x8] sm:$0xf]
    %v2826 = vld [vmem:[%s2822 + $0xc] sm:$0xf]
    %v2827 = vld [vmem:[%s2822 + $0x10] sm:$0xf]
    %v2828 = vld [vmem:[%s2822 + $0x14] sm:$0xf]
    %v2829 = vld [vmem:[%s2822 + $0x18] sm:$0xf]
    %v2830 = vld [vmem:[%s2822 + $0x1c] sm:$0xf]
    %v2831 = vld [vmem:[%s2822 + $0x20] sm:$0xf]
    %v2832 = vld [vmem:[%s2822 + $0x24] sm:$0xf]
    %v2833 = vld [vmem:[%s2822 + $0x28] sm:$0xf]
    %v2834 = vld [vmem:[%s2822 + $0x2c] sm:$0xf]
    %v2835 = vld [vmem:[%s2822 + $0x30] sm:$0xf]
    %v2836 = vld [vmem:[%s2822 + $0x34] sm:$0xf]
    %v2837 = vld [vmem:[%s2822 + $0x38] sm:$0xf]
    %v2838 = vld [vmem:[%s2822 + $0x3c] sm:$0xf]
    %v2839 = vpack.c.bf16 %v2257, %v2256
    %v2840 = vpack.c.bf16 %v2259, %v2258
    %v2841 = vpack.c.bf16 %v2261, %v2260
    %v2842 = vpack.c.bf16 %v2263, %v2262
    %v2843 = vpack.c.bf16 %v2265, %v2264
    %v2844 = vpack.c.bf16 %v2267, %v2266
    %v2845 = vpack.c.bf16 %v2269, %v2268
    %v2846 = vpack.c.bf16 %v2271, %v2270
    %v2847 = vlaneseq
    %v2848 = vshrl.u32 %v2847, 7
    %v2849 = vsub.s32 1, %v2848
    %v2850 = vrot.slane %v1168, %v2849
    %v2867 = vunpack.c.l.b16 %v2823
    %v2868 = vunpack.c.l.b16 %v2824
    %v2869 = vunpack.c.l.b16 %v2825
    %v2870 = vunpack.c.l.b16 %v2826
    %v2871 = vunpack.c.l.b16 %v2827
    %v2872 = vunpack.c.l.b16 %v2828
    %v2873 = vunpack.c.l.b16 %v2829
    %v2874 = vunpack.c.l.b16 %v2830
    %v2875 = vunpack.c.l.b16 %v2831
    %v2876 = vunpack.c.l.b16 %v2832
    %v2877 = vunpack.c.l.b16 %v2833
    %v2878 = vunpack.c.l.b16 %v2834
    %v2879 = vunpack.c.l.b16 %v2835
    %v2880 = vunpack.c.l.b16 %v2836
    %v2881 = vunpack.c.l.b16 %v2837
    %v2882 = vunpack.c.l.b16 %v2838
    %v2883 = vpack.c.b16 %v2868, %v2867
    %v2884 = vpack.c.b16 %v2870, %v2869
    %v2885 = vpack.c.b16 %v2872, %v2871
    %v2886 = vpack.c.b16 %v2874, %v2873
    %v2887 = vpack.c.b16 %v2876, %v2875
    %v2888 = vpack.c.b16 %v2878, %v2877
    %v2889 = vpack.c.b16 %v2880, %v2879
    %v2890 = vpack.c.b16 %v2882, %v2881
    %2899 = vmatprep.subr.bf16.mxu0 0
    %2900 = vmatpush1.bf16.msra.mxu0 %v2883
    %2901 = vmatprep.subr.bf16.mxu0 0
    %2902 = vmatpush1.bf16.msra.mxu0 %v2884
    %2903 = vmatprep.subr.bf16.mxu0 0
    %2904 = vmatpush1.bf16.msra.mxu0 %v2885
    %2905 = vmatprep.subr.bf16.mxu0 0
    %2906 = vmatpush1.bf16.msra.mxu0 %v2886
    %2907 = vmatprep.subr.bf16.mxu0 0
    %2908 = vmatpush1.bf16.msra.mxu0 %v2887
    %2909 = vmatprep.subr.bf16.mxu0 0
    %2910 = vmatpush1.bf16.msra.mxu0 %v2888
    %2911 = vmatprep.subr.bf16.mxu0 0
    %2912 = vmatpush1.bf16.msra.mxu0 %v2889
    %2913 = vmatprep.subr.bf16.mxu0 0
    %2914 = vmatpush1.bf16.msra.mxu0 %v2890
    %2915 = vmatprep.subr.bf16.mxu0 0
    %2916 = vmatpush1.bf16.msra.mxu0 0
    %2917 = vmatprep.subr.bf16.mxu0 0
    %2918 = vmatpush1.bf16.msra.mxu0 0
    %2919 = vmatprep.subr.bf16.mxu0 0
    %2920 = vmatpush1.bf16.msra.mxu0 0
    %2921 = vmatprep.subr.bf16.mxu0 0
    %2922 = vmatpush1.bf16.msra.mxu0 0
    %2923 = vmatprep.subr.bf16.mxu0 0
    %2924 = vmatpush1.bf16.msra.mxu0 0
    %2925 = vmatprep.subr.bf16.mxu0 0
    %2926 = vmatpush1.bf16.msra.mxu0 0
    %2927 = vmatprep.subr.bf16.mxu0 0
    %2928 = vmatpush1.bf16.msra.mxu0 0
    %2929 = vmatprep.subr.bf16.mxu0 0
    %2930 = vmatpush1.bf16.msra.mxu0 0
    %2931 = vmatprep.mubr.bf16.mxu0 0
    %2932 = vmatmul.mubr.bf16.gmra.mrb[0].mxu0 %v2839
    %v2933 = vpop.f32.mrb[0].mxu0
    %v2934 = vadd.f32 %v2850, %v2933
    %v2935 = vpop.f32.mrb[0].mxu0
    %v2936 = vpop.f32.mrb[0].mxu0
    %v2937 = vadd.f32 %v2850, %v2936
    %v2938 = vpop.f32.mrb[0].mxu0
    %2939 = vmatprep.mubr.bf16.mxu0 0
    %2940 = vmatmul.mubr.bf16.gmra.mrb[0].mxu0 %v2840
    %v2941 = vpop.f32.mrb[0].mxu0
    %v2942 = vadd.f32 %v2850, %v2941
    %v2943 = vpop.f32.mrb[0].mxu0
    %v2944 = vpop.f32.mrb[0].mxu0
    %v2945 = vadd.f32 %v2850, %v2944
    %v2946 = vpop.f32.mrb[0].mxu0
    %2947 = vmatprep.mubr.bf16.mxu0 0
    %2948 = vmatmul.mubr.bf16.gmra.mrb[0].mxu0 %v2841
    %v2949 = vpop.f32.mrb[0].mxu0
    %v2950 = vadd.f32 %v2850, %v2949
    %v2951 = vpop.f32.mrb[0].mxu0
    %v2952 = vpop.f32.mrb[0].mxu0
    %v2953 = vadd.f32 %v2850, %v2952
    %v2954 = vpop.f32.mrb[0].mxu0
    %2955 = vmatprep.mubr.bf16.mxu0 0
    %2956 = vmatmul.mubr.bf16.gmra.mrb[0].mxu0 %v2842
    %v2957 = vpop.f32.mrb[0].mxu0
    %v2958 = vadd.f32 %v2850, %v2957
    %v2959 = vpop.f32.mrb[0].mxu0
    %v2960 = vpop.f32.mrb[0].mxu0
    %v2961 = vadd.f32 %v2850, %v2960
    %v2962 = vpop.f32.mrb[0].mxu0
    %2963 = vmatprep.mubr.bf16.mxu0 0
    %2964 = vmatmul.mubr.bf16.gmra.mrb[0].mxu0 %v2843
    %v2965 = vpop.f32.mrb[0].mxu0
    %v2966 = vadd.f32 %v2850, %v2965
    %v2967 = vpop.f32.mrb[0].mxu0
    %v2968 = vpop.f32.mrb[0].mxu0
    %v2969 = vadd.f32 %v2850, %v2968
    %v2970 = vpop.f32.mrb[0].mxu0
    %2971 = vmatprep.mubr.bf16.mxu0 0
    %2972 = vmatmul.mubr.bf16.gmra.mrb[0].mxu0 %v2844
    %v2973 = vpop.f32.mrb[0].mxu0
    %v2974 = vadd.f32 %v2850, %v2973
    %v2975 = vpop.f32.mrb[0].mxu0
    %v2976 = vpop.f32.mrb[0].mxu0
    %v2977 = vadd.f32 %v2850, %v2976
    %v2978 = vpop.f32.mrb[0].mxu0
    %2979 = vmatprep.mubr.bf16.mxu0 0
    %2980 = vmatmul.mubr.bf16.gmra.mrb[0].mxu0 %v2845
    %v2981 = vpop.f32.mrb[0].mxu0
    %v2982 = vadd.f32 %v2850, %v2981
    %v2983 = vpop.f32.mrb[0].mxu0
    %v2984 = vpop.f32.mrb[0].mxu0
    %v2985 = vadd.f32 %v2850, %v2984
    %v2986 = vpop.f32.mrb[0].mxu0
    %2987 = vmatprep.mubr.bf16.mxu0 0
    %2988 = vmatmul.mubr.bf16.gmra.mrb[0].mxu0 %v2846
    %v2989 = vpop.f32.mrb[0].mxu0
    %v2990 = vadd.f32 %v2850, %v2989
    %v2991 = vpop.f32.mrb[0].mxu0
    %v2992 = vpop.f32.mrb[0].mxu0
    %v2993 = vadd.f32 %v2850, %v2992
    %v2994 = vpop.f32.mrb[0].mxu0
    %2995 = vdwg.mxu0
    %2996 = vadd.xlane.f32.xlu0 %v2934
    %v2997 = vpop.xlane.xlu0 %2996
    %2998 = vadd.xlane.f32.xlu0 %v2937
    %v2999 = vpop.xlane.xlu0 %2998
    %3000 = vadd.xlane.f32.xlu0 %v2942
    %v3001 = vpop.xlane.xlu0 %3000
    %3002 = vadd.xlane.f32.xlu0 %v2945
    %v3003 = vpop.xlane.xlu0 %3002
    %3004 = vadd.xlane.f32.xlu0 %v2950
    %v3005 = vpop.xlane.xlu0 %3004
    %3006 = vadd.xlane.f32.xlu0 %v2953
    %v3007 = vpop.xlane.xlu0 %3006
    %3008 = vadd.xlane.f32.xlu0 %v2958
    %v3009 = vpop.xlane.xlu0 %3008
    %3010 = vadd.xlane.f32.xlu0 %v2961
    %v3011 = vpop.xlane.xlu0 %3010
    %3012 = vadd.xlane.f32.xlu0 %v2966
    %v3013 = vpop.xlane.xlu0 %3012
    %3014 = vadd.xlane.f32.xlu0 %v2969
    %v3015 = vpop.xlane.xlu0 %3014
    %3016 = vadd.xlane.f32.xlu0 %v2974
    %v3017 = vpop.xlane.xlu0 %3016
    %3018 = vadd.xlane.f32.xlu0 %v2977
    %v3019 = vpop.xlane.xlu0 %3018
    %3020 = vadd.xlane.f32.xlu0 %v2982
    %v3021 = vpop.xlane.xlu0 %3020
    %3022 = vadd.xlane.f32.xlu0 %v2985
    %v3023 = vpop.xlane.xlu0 %3022
    %3024 = vadd.xlane.f32.xlu0 %v2990
    %v3025 = vpop.xlane.xlu0 %3024
    %3026 = vadd.xlane.f32.xlu0 %v2993
    %v3027 = vpop.xlane.xlu0 %3026
    %v3028 = vmul.f32 %v2934, %v2934
    %v3029 = vmul.f32 %v2937, %v2937
    %v3030 = vmul.f32 %v2942, %v2942
    %v3031 = vmul.f32 %v2945, %v2945
    %v3032 = vmul.f32 %v2950, %v2950
    %v3033 = vmul.f32 %v2953, %v2953
    %v3034 = vmul.f32 %v2958, %v2958
    %v3035 = vmul.f32 %v2961, %v2961
    %v3036 = vmul.f32 %v2966, %v2966
    %v3037 = vmul.f32 %v2969, %v2969
    %v3038 = vmul.f32 %v2974, %v2974
    %v3039 = vmul.f32 %v2977, %v2977
    %v3040 = vmul.f32 %v2982, %v2982
    %v3041 = vmul.f32 %v2985, %v2985
    %v3042 = vmul.f32 %v2990, %v2990
    %v3043 = vmul.f32 %v2993, %v2993
    %3044 = vadd.xlane.f32.xlu0 %v3028
    %v3045 = vpop.xlane.xlu0 %3044
    %3046 = vadd.xlane.f32.xlu0 %v3029
    %v3047 = vpop.xlane.xlu0 %3046
    %3048 = vadd.xlane.f32.xlu0 %v3030
    %v3049 = vpop.xlane.xlu0 %3048
    %3050 = vadd.xlane.f32.xlu0 %v3031
    %v3051 = vpop.xlane.xlu0 %3050
    %3052 = vadd.xlane.f32.xlu0 %v3032
    %v3053 = vpop.xlane.xlu0 %3052
    %3054 = vadd.xlane.f32.xlu0 %v3033
    %v3055 = vpop.xlane.xlu0 %3054
    %3056 = vadd.xlane.f32.xlu0 %v3034
    %v3057 = vpop.xlane.xlu0 %3056
    %3058 = vadd.xlane.f32.xlu0 %v3035
    %v3059 = vpop.xlane.xlu0 %3058
    %3060 = vadd.xlane.f32.xlu0 %v3036
    %v3061 = vpop.xlane.xlu0 %3060
    %3062 = vadd.xlane.f32.xlu0 %v3037
    %v3063 = vpop.xlane.xlu0 %3062
    %3064 = vadd.xlane.f32.xlu0 %v3038
    %v3065 = vpop.xlane.xlu0 %3064
    %3066 = vadd.xlane.f32.xlu0 %v3039
    %v3067 = vpop.xlane.xlu0 %3066
    %3068 = vadd.xlane.f32.xlu0 %v3040
    %v3069 = vpop.xlane.xlu0 %3068
    %3070 = vadd.xlane.f32.xlu0 %v3041
    %v3071 = vpop.xlane.xlu0 %3070
    %3072 = vadd.xlane.f32.xlu0 %v3042
    %v3073 = vpop.xlane.xlu0 %3072
    %3074 = vadd.xlane.f32.xlu0 %v3043
    %v3075 = vpop.xlane.xlu0 %3074
    %v3076 = vmul.f32 %v2997, 0.0078125
    %v3077 = vmul.f32 %v2999, 0.0078125
    %v3078 = vmul.f32 %v3001, 0.0078125
    %v3079 = vmul.f32 %v3003, 0.0078125
    %v3080 = vmul.f32 %v3005, 0.0078125
    %v3081 = vmul.f32 %v3007, 0.0078125
    %v3082 = vmul.f32 %v3009, 0.0078125
    %v3083 = vmul.f32 %v3011, 0.0078125
    %v3084 = vmul.f32 %v3013, 0.0078125
    %v3085 = vmul.f32 %v3015, 0.0078125
    %v3086 = vmul.f32 %v3017, 0.0078125
    %v3087 = vmul.f32 %v3019, 0.0078125
    %v3088 = vmul.f32 %v3021, 0.0078125
    %v3089 = vmul.f32 %v3023, 0.0078125
    %v3090 = vmul.f32 %v3025, 0.0078125
    %v3091 = vmul.f32 %v3027, 0.0078125
    %v3092 = vmul.f32 %v3045, 0.0078125
    %v3093 = vmul.f32 %v3047, 0.0078125
    %v3094 = vmul.f32 %v3049, 0.0078125
    %v3095 = vmul.f32 %v3051, 0.0078125
    %v3096 = vmul.f32 %v3053, 0.0078125
    %v3097 = vmul.f32 %v3055, 0.0078125
    %v3098 = vmul.f32 %v3057, 0.0078125
    %v3099 = vmul.f32 %v3059, 0.0078125
    %v3100 = vmul.f32 %v3061, 0.0078125
    %v3101 = vmul.f32 %v3063, 0.0078125
    %v3102 = vmul.f32 %v3065, 0.0078125
    %v3103 = vmul.f32 %v3067, 0.0078125
    %v3104 = vmul.f32 %v3069, 0.0078125
    %v3105 = vmul.f32 %v3071, 0.0078125
    %v3106 = vmul.f32 %v3073, 0.0078125
    %v3107 = vmul.f32 %v3075, 0.0078125
    %v3108 = vmul.f32 %v3076, %v3076
    %v3109 = vmul.f32 %v3077, %v3077
    %v3110 = vmul.f32 %v3078, %v3078
    %v3111 = vmul.f32 %v3079, %v3079
    %v3112 = vmul.f32 %v3080, %v3080
    %v3113 = vmul.f32 %v3081, %v3081
    %v3114 = vmul.f32 %v3082, %v3082
    %v3115 = vmul.f32 %v3083, %v3083
    %v3116 = vmul.f32 %v3084, %v3084
    %v3117 = vmul.f32 %v3085, %v3085
    %v3118 = vmul.f32 %v3086, %v3086
    %v3119 = vmul.f32 %v3087, %v3087
    %v3120 = vmul.f32 %v3088, %v3088
    %v3121 = vmul.f32 %v3089, %v3089
    %v3122 = vmul.f32 %v3090, %v3090
    %v3123 = vmul.f32 %v3091, %v3091
    %v3124 = vsub.f32 %v3092, %v3108
    %v3125 = vsub.f32 %v3093, %v3109
    %v3126 = vsub.f32 %v3094, %v3110
    %v3127 = vsub.f32 %v3095, %v3111
    %v3128 = vsub.f32 %v3096, %v3112
    %v3129 = vsub.f32 %v3097, %v3113
    %v3130 = vsub.f32 %v3098, %v3114
    %v3131 = vsub.f32 %v3099, %v3115
    %v3132 = vsub.f32 %v3100, %v3116
    %v3133 = vsub.f32 %v3101, %v3117
    %v3134 = vsub.f32 %v3102, %v3118
    %v3135 = vsub.f32 %v3103, %v3119
    %v3136 = vsub.f32 %v3104, %v3120
    %v3137 = vsub.f32 %v3105, %v3121
    %v3138 = vsub.f32 %v3106, %v3122
    %v3139 = vsub.f32 %v3107, %v3123
    %v3140 = vsub.f32 %v2934, %v3076
    %v3141 = vsub.f32 %v2937, %v3077
    %v3142 = vsub.f32 %v2942, %v3078
    %v3143 = vsub.f32 %v2945, %v3079
    %v3144 = vsub.f32 %v2950, %v3080
    %v3145 = vsub.f32 %v2953, %v3081
    %v3146 = vsub.f32 %v2958, %v3082
    %v3147 = vsub.f32 %v2961, %v3083
    %v3148 = vsub.f32 %v2966, %v3084
    %v3149 = vsub.f32 %v2969, %v3085
    %v3150 = vsub.f32 %v2974, %v3086
    %v3151 = vsub.f32 %v2977, %v3087
    %v3152 = vsub.f32 %v2982, %v3088
    %v3153 = vsub.f32 %v2985, %v3089
    %v3154 = vsub.f32 %v2990, %v3090
    %v3155 = vsub.f32 %v2993, %v3091
    %v3156 = vadd.f32 %v3124, 1e-05
    %v3157 = vadd.f32 %v3125, 1e-05
    %v3158 = vadd.f32 %v3126, 1e-05
    %v3159 = vadd.f32 %v3127, 1e-05
    %v3160 = vadd.f32 %v3128, 1e-05
    %v3161 = vadd.f32 %v3129, 1e-05
    %v3162 = vadd.f32 %v3130, 1e-05
    %v3163 = vadd.f32 %v3131, 1e-05
    %v3164 = vadd.f32 %v3132, 1e-05
    %v3165 = vadd.f32 %v3133, 1e-05
    %v3166 = vadd.f32 %v3134, 1e-05
    %v3167 = vadd.f32 %v3135, 1e-05
    %v3168 = vadd.f32 %v3136, 1e-05
    %v3169 = vadd.f32 %v3137, 1e-05
    %v3170 = vadd.f32 %v3138, 1e-05
    %v3171 = vadd.f32 %v3139, 1e-05
    %v3172 = vrsqrt.pop %v3156
    %v3173 = vrsqrt.pop %v3157
    %v3174 = vrsqrt.pop %v3158
    %v3175 = vrsqrt.pop %v3159
    %v3176 = vrsqrt.pop %v3160
    %v3177 = vrsqrt.pop %v3161
    %v3178 = vrsqrt.pop %v3162
    %v3179 = vrsqrt.pop %v3163
    %v3180 = vrsqrt.pop %v3164
    %v3181 = vrsqrt.pop %v3165
    %v3182 = vrsqrt.pop %v3166
    %v3183 = vrsqrt.pop %v3167
    %v3184 = vrsqrt.pop %v3168
    %v3185 = vrsqrt.pop %v3169
    %v3186 = vrsqrt.pop %v3170
    %v3187 = vrsqrt.pop %v3171
    %v3188 = vmul.f32 %v3140, %v3172
    %v3189 = vmul.f32 %v3141, %v3173
    %v3190 = vmul.f32 %v3142, %v3174
    %v3191 = vmul.f32 %v3143, %v3175
    %v3192 = vmul.f32 %v3144, %v3176
    %v3193 = vmul.f32 %v3145, %v3177
    %v3194 = vmul.f32 %v3146, %v3178
    %v3195 = vmul.f32 %v3147, %v3179
    %v3196 = vmul.f32 %v3148, %v3180
    %v3197 = vmul.f32 %v3149, %v3181
    %v3198 = vmul.f32 %v3150, %v3182
    %v3199 = vmul.f32 %v3151, %v3183
    %v3200 = vmul.f32 %v3152, %v3184
    %v3201 = vmul.f32 %v3153, %v3185
    %v3202 = vmul.f32 %v3154, %v3186
    %v3203 = vmul.f32 %v3155, %v3187
    %v3204 = vlaneseq
    %v3205 = vshrl.u32 %v3204, 7
    %v3206 = vsub.s32 1, %v3205
    %v3207 = vrot.slane %v1170, %v3206
    %v3208 = vmul.f32 %v3188, %v3207
    %v3209 = vmul.f32 %v3189, %v3207
    %v3210 = vmul.f32 %v3190, %v3207
    %v3211 = vmul.f32 %v3191, %v3207
    %v3212 = vmul.f32 %v3192, %v3207
    %v3213 = vmul.f32 %v3193, %v3207
    %v3214 = vmul.f32 %v3194, %v3207
    %v3215 = vmul.f32 %v3195, %v3207
    %v3216 = vmul.f32 %v3196, %v3207
    %v3217 = vmul.f32 %v3197, %v3207
    %v3218 = vmul.f32 %v3198, %v3207
    %v3219 = vmul.f32 %v3199, %v3207
    %v3220 = vmul.f32 %v3200, %v3207
    %v3221 = vmul.f32 %v3201, %v3207
    %v3222 = vmul.f32 %v3202, %v3207
    %v3223 = vmul.f32 %v3203, %v3207
    %v3224 = vlaneseq
    %v3225 = vshrl.u32 %v3224, 7
    %v3226 = vsub.s32 1, %v3225
    %v3227 = vrot.slane %v1172, %v3226
    %v3228 = vadd.f32 %v3208, %v3227
    %v3229 = vadd.f32 %v3209, %v3227
    %v3230 = vadd.f32 %v3210, %v3227
    %v3231 = vadd.f32 %v3211, %v3227
    %v3232 = vadd.f32 %v3212, %v3227
    %v3233 = vadd.f32 %v3213, %v3227
    %v3234 = vadd.f32 %v3214, %v3227
    %v3235 = vadd.f32 %v3215, %v3227
    %v3236 = vadd.f32 %v3216, %v3227
    %v3237 = vadd.f32 %v3217, %v3227
    %v3238 = vadd.f32 %v3218, %v3227
    %v3239 = vadd.f32 %v3219, %v3227
    %v3240 = vadd.f32 %v3220, %v3227
    %v3241 = vadd.f32 %v3221, %v3227
    %v3242 = vadd.f32 %v3222, %v3227
    %v3243 = vadd.f32 %v3223, %v3227
    %v3244 = vxor.u32 %v3228, 2147483648
    %v3245 = vxor.u32 %v3229, 2147483648
    %v3246 = vxor.u32 %v3230, 2147483648
    %v3247 = vxor.u32 %v3231, 2147483648
    %v3248 = vxor.u32 %v3232, 2147483648
    %v3249 = vxor.u32 %v3233, 2147483648
    %v3250 = vxor.u32 %v3234, 2147483648
    %v3251 = vxor.u32 %v3235, 2147483648
    %v3252 = vxor.u32 %v3236, 2147483648
    %v3253 = vxor.u32 %v3237, 2147483648
    %v3254 = vxor.u32 %v3238, 2147483648
    %v3255 = vxor.u32 %v3239, 2147483648
    %v3256 = vxor.u32 %v3240, 2147483648
    %v3257 = vxor.u32 %v3241, 2147483648
    %v3258 = vxor.u32 %v3242, 2147483648
    %v3259 = vxor.u32 %v3243, 2147483648
    %v3260 = vmul.f32 %v3244, 1.442695
    %v3261 = vpow.pop %v3260
    %v3262 = vmul.f32 %v3245, 1.442695
    %v3263 = vpow.pop %v3262
    %v3264 = vmul.f32 %v3246, 1.442695
    %v3265 = vpow.pop %v3264
    %v3266 = vmul.f32 %v3247, 1.442695
    %v3267 = vpow.pop %v3266
    %v3268 = vmul.f32 %v3248, 1.442695
    %v3269 = vpow.pop %v3268
    %v3270 = vmul.f32 %v3249, 1.442695
    %v3271 = vpow.pop %v3270
    %v3272 = vmul.f32 %v3250, 1.442695
    %v3273 = vpow.pop %v3272
    %v3274 = vmul.f32 %v3251, 1.442695
    %v3275 = vpow.pop %v3274
    %v3276 = vmul.f32 %v3252, 1.442695
    %v3277 = vpow.pop %v3276
    %v3278 = vmul.f32 %v3253, 1.442695
    %v3279 = vpow.pop %v3278
    %v3280 = vmul.f32 %v3254, 1.442695
    %v3281 = vpow.pop %v3280
    %v3282 = vmul.f32 %v3255, 1.442695
    %v3283 = vpow.pop %v3282
    %v3284 = vmul.f32 %v3256, 1.442695
    %v3285 = vpow.pop %v3284
    %v3286 = vmul.f32 %v3257, 1.442695
    %v3287 = vpow.pop %v3286
    %v3288 = vmul.f32 %v3258, 1.442695
    %v3289 = vpow.pop %v3288
    %v3290 = vmul.f32 %v3259, 1.442695
    %v3291 = vpow.pop %v3290
    %v3292 = vadd.f32 %v3261, 1.0
    %v3293 = vadd.f32 %v3263, 1.0
    %v3294 = vadd.f32 %v3265, 1.0
    %v3295 = vadd.f32 %v3267, 1.0
    %v3296 = vadd.f32 %v3269, 1.0
    %v3297 = vadd.f32 %v3271, 1.0
    %v3298 = vadd.f32 %v3273, 1.0
    %v3299 = vadd.f32 %v3275, 1.0
    %v3300 = vadd.f32 %v3277, 1.0
    %v3301 = vadd.f32 %v3279, 1.0
    %v3302 = vadd.f32 %v3281, 1.0
    %v3303 = vadd.f32 %v3283, 1.0
    %v3304 = vadd.f32 %v3285, 1.0
    %v3305 = vadd.f32 %v3287, 1.0
    %v3306 = vadd.f32 %v3289, 1.0
    %v3307 = vadd.f32 %v3291, 1.0
    %v3308 = vrcp.pop %v3292
    %v3309 = vmul.f32 1.0, %v3308
    %v3310 = vrcp.pop %v3293
    %v3311 = vmul.f32 1.0, %v3310
    %v3312 = vrcp.pop %v3294
    %v3313 = vmul.f32 1.0, %v3312
    %v3314 = vrcp.pop %v3295
    %v3315 = vmul.f32 1.0, %v3314
    %v3316 = vrcp.pop %v3296
    %v3317 = vmul.f32 1.0, %v3316
    %v3318 = vrcp.pop %v3297
    %v3319 = vmul.f32 1.0, %v3318
    %v3320 = vrcp.pop %v3298
    %v3321 = vmul.f32 1.0, %v3320
    %v3322 = vrcp.pop %v3299
    %v3323 = vmul.f32 1.0, %v3322
    %v3324 = vrcp.pop %v3300
    %v3325 = vmul.f32 1.0, %v3324
    %v3326 = vrcp.pop %v3301
    %v3327 = vmul.f32 1.0, %v3326
    %v3328 = vrcp.pop %v3302
    %v3329 = vmul.f32 1.0, %v3328
    %v3330 = vrcp.pop %v3303
    %v3331 = vmul.f32 1.0, %v3330
    %v3332 = vrcp.pop %v3304
    %v3333 = vmul.f32 1.0, %v3332
    %v3334 = vrcp.pop %v3305
    %v3335 = vmul.f32 1.0, %v3334
    %v3336 = vrcp.pop %v3306
    %v3337 = vmul.f32 1.0, %v3336
    %v3338 = vrcp.pop %v3307
    %v3339 = vmul.f32 1.0, %v3338
    %v3340 = vmul.f32 %v3228, %v3309
    %v3341 = vmul.f32 %v3229, %v3311
    %v3342 = vmul.f32 %v3230, %v3313
    %v3343 = vmul.f32 %v3231, %v3315
    %v3344 = vmul.f32 %v3232, %v3317
    %v3345 = vmul.f32 %v3233, %v3319
    %v3346 = vmul.f32 %v3234, %v3321
    %v3347 = vmul.f32 %v3235, %v3323
    %v3348 = vmul.f32 %v3236, %v3325
    %v3349 = vmul.f32 %v3237, %v3327
    %v3350 = vmul.f32 %v3238, %v3329
    %v3351 = vmul.f32 %v3239, %v3331
    %v3352 = vmul.f32 %v3240, %v3333
    %v3353 = vmul.f32 %v3241, %v3335
    %v3354 = vmul.f32 %v3242, %v3337
    %v3355 = vmul.f32 %v3243, %v3339
    %v3356 = vadd.f32 %v2256, %v3340
    %v3357 = vadd.f32 %v2257, %v3341
    %v3358 = vadd.f32 %v2258, %v3342
    %v3359 = vadd.f32 %v2259, %v3343
    %v3360 = vadd.f32 %v2260, %v3344
    %v3361 = vadd.f32 %v2261, %v3345
    %v3362 = vadd.f32 %v2262, %v3346
    %v3363 = vadd.f32 %v2263, %v3347
    %v3364 = vadd.f32 %v2264, %v3348
    %v3365 = vadd.f32 %v2265, %v3349
    %v3366 = vadd.f32 %v2266, %v3350
    %v3367 = vadd.f32 %v2267, %v3351
    %v3368 = vadd.f32 %v2268, %v3352
    %v3369 = vadd.f32 %v2269, %v3353
    %v3370 = vadd.f32 %v2270, %v3354
    %v3371 = vadd.f32 %v2271, %v3355
    %s3372 = scalar_lea.vmem [#allocation2], 128
    %v3373 = vld [vmem:[%s3372] sm:$0xf]
    %v3374 = vld [vmem:[%s3372 + $0x4] sm:$0xf]
    %v3375 = vld [vmem:[%s3372 + $0x8] sm:$0xf]
    %v3376 = vld [vmem:[%s3372 + $0xc] sm:$0xf]
    %v3377 = vld [vmem:[%s3372 + $0x10] sm:$0xf]
    %v3378 = vld [vmem:[%s3372 + $0x14] sm:$0xf]
    %v3379 = vld [vmem:[%s3372 + $0x18] sm:$0xf]
    %v3380 = vld [vmem:[%s3372 + $0x1c] sm:$0xf]
    %v3381 = vld [vmem:[%s3372 + $0x20] sm:$0xf]
    %v3382 = vld [vmem:[%s3372 + $0x24] sm:$0xf]
    %v3383 = vld [vmem:[%s3372 + $0x28] sm:$0xf]
    %v3384 = vld [vmem:[%s3372 + $0x2c] sm:$0xf]
    %v3385 = vld [vmem:[%s3372 + $0x30] sm:$0xf]
    %v3386 = vld [vmem:[%s3372 + $0x34] sm:$0xf]
    %v3387 = vld [vmem:[%s3372 + $0x38] sm:$0xf]
    %v3388 = vld [vmem:[%s3372 + $0x3c] sm:$0xf]
    %v3389 = vpack.c.bf16 %v2807, %v2806
    %v3390 = vpack.c.bf16 %v2809, %v2808
    %v3391 = vpack.c.bf16 %v2811, %v2810
    %v3392 = vpack.c.bf16 %v2813, %v2812
    %v3393 = vpack.c.bf16 %v2815, %v2814
    %v3394 = vpack.c.bf16 %v2817, %v2816
    %v3395 = vpack.c.bf16 %v2819, %v2818
    %v3396 = vpack.c.bf16 %v2821, %v2820
    %v3397 = vlaneseq
    %v3398 = vshrl.u32 %v3397, 7
    %v3399 = vsub.s32 2, %v3398
    %v3400 = vrot.slane %v1167, %v3399
    %v3417 = vunpack.c.l.b16 %v3373
    %v3418 = vunpack.c.l.b16 %v3374
    %v3419 = vunpack.c.l.b16 %v3375
    %v3420 = vunpack.c.l.b16 %v3376
    %v3421 = vunpack.c.l.b16 %v3377
    %v3422 = vunpack.c.l.b16 %v3378
    %v3423 = vunpack.c.l.b16 %v3379
    %v3424 = vunpack.c.l.b16 %v3380
    %v3425 = vunpack.c.l.b16 %v3381
    %v3426 = vunpack.c.l.b16 %v3382
    %v3427 = vunpack.c.l.b16 %v3383
    %v3428 = vunpack.c.l.b16 %v3384
    %v3429 = vunpack.c.l.b16 %v3385
    %v3430 = vunpack.c.l.b16 %v3386
    %v3431 = vunpack.c.l.b16 %v3387
    %v3432 = vunpack.c.l.b16 %v3388
    %v3433 = vpack.c.b16 %v3418, %v3417
    %v3434 = vpack.c.b16 %v3420, %v3419
    %v3435 = vpack.c.b16 %v3422, %v3421
    %v3436 = vpack.c.b16 %v3424, %v3423
    %v3437 = vpack.c.b16 %v3426, %v3425
    %v3438 = vpack.c.b16 %v3428, %v3427
    %v3439 = vpack.c.b16 %v3430, %v3429
    %v3440 = vpack.c.b16 %v3432, %v3431
    %3449 = vmatprep.subr.bf16.mxu0 0
    %3450 = vmatpush1.bf16.msra.mxu0 %v3433
    %3451 = vmatprep.subr.bf16.mxu0 0
    %3452 = vmatpush1.bf16.msra.mxu0 %v3434
    %3453 = vmatprep.subr.bf16.mxu0 0
    %3454 = vmatpush1.bf16.msra.mxu0 %v3435
    %3455 = vmatprep.subr.bf16.mxu0 0
    %3456 = vmatpush1.bf16.msra.mxu0 %v3436
    %3457 = vmatprep.subr.bf16.mxu0 0
    %3458 = vmatpush1.bf16.msra.mxu0 %v3437
    %3459 = vmatprep.subr.bf16.mxu0 0
    %3460 = vmatpush1.bf16.msra.mxu0 %v3438
    %3461 = vmatprep.subr.bf16.mxu0 0
    %3462 = vmatpush1.bf16.msra.mxu0 %v3439
    %3463 = vmatprep.subr.bf16.mxu0 0
    %3464 = vmatpush1.bf16.msra.mxu0 %v3440
    %3465 = vmatprep.subr.bf16.mxu0 0
    %3466 = vmatpush1.bf16.msra.mxu0 0
    %3467 = vmatprep.subr.bf16.mxu0 0
    %3468 = vmatpush1.bf16.msra.mxu0 0
    %3469 = vmatprep.subr.bf16.mxu0 0
    %3470 = vmatpush1.bf16.msra.mxu0 0
    %3471 = vmatprep.subr.bf16.mxu0 0
    %3472 = vmatpush1.bf16.msra.mxu0 0
    %3473 = vmatprep.subr.bf16.mxu0 0
    %3474 = vmatpush1.bf16.msra.mxu0 0
    %3475 = vmatprep.subr.bf16.mxu0 0
    %3476 = vmatpush1.bf16.msra.mxu0 0
    %3477 = vmatprep.subr.bf16.mxu0 0
    %3478 = vmatpush1.bf16.msra.mxu0 0
    %3479 = vmatprep.subr.bf16.mxu0 0
    %3480 = vmatpush1.bf16.msra.mxu0 0
    %3481 = vmatprep.mubr.bf16.mxu0 0
    %3482 = vmatmul.mubr.bf16.gmra.mrb[0].mxu0 %v3389
    %v3483 = vpop.f32.mrb[0].mxu0
    %v3484 = vadd.f32 %v3400, %v3483
    %v3485 = vpop.f32.mrb[0].mxu0
    %v3486 = vpop.f32.mrb[0].mxu0
    %v3487 = vadd.f32 %v3400, %v3486
    %v3488 = vpop.f32.mrb[0].mxu0
    %3489 = vmatprep.mubr.bf16.mxu0 0
    %3490 = vmatmul.mubr.bf16.gmra.mrb[0].mxu0 %v3390
    %v3491 = vpop.f32.mrb[0].mxu0
    %v3492 = vadd.f32 %v3400, %v3491
    %v3493 = vpop.f32.mrb[0].mxu0
    %v3494 = vpop.f32.mrb[0].mxu0
    %v3495 = vadd.f32 %v3400, %v3494
    %v3496 = vpop.f32.mrb[0].mxu0
    %3497 = vmatprep.mubr.bf16.mxu0 0
    %3498 = vmatmul.mubr.bf16.gmra.mrb[0].mxu0 %v3391
    %v3499 = vpop.f32.mrb[0].mxu0
    %v3500 = vadd.f32 %v3400, %v3499
    %v3501 = vpop.f32.mrb[0].mxu0
    %v3502 = vpop.f32.mrb[0].mxu0
    %v3503 = vadd.f32 %v3400, %v3502
    %v3504 = vpop.f32.mrb[0].mxu0
    %3505 = vmatprep.mubr.bf16.mxu0 0
    %3506 = vmatmul.mubr.bf16.gmra.mrb[0].mxu0 %v3392
    %v3507 = vpop.f32.mrb[0].mxu0
    %v3508 = vadd.f32 %v3400, %v3507
    %v3509 = vpop.f32.mrb[0].mxu0
    %v3510 = vpop.f32.mrb[0].mxu0
    %v3511 = vadd.f32 %v3400, %v3510
    %v3512 = vpop.f32.mrb[0].mxu0
    %3513 = vmatprep.mubr.bf16.mxu0 0
    %3514 = vmatmul.mubr.bf16.gmra.mrb[0].mxu0 %v3393
    %v3515 = vpop.f32.mrb[0].mxu0
    %v3516 = vadd.f32 %v3400, %v3515
    %v3517 = vpop.f32.mrb[0].mxu0
    %v3518 = vpop.f32.mrb[0].mxu0
    %v3519 = vadd.f32 %v3400, %v3518
    %v3520 = vpop.f32.mrb[0].mxu0
    %3521 = vmatprep.mubr.bf16.mxu0 0
    %3522 = vmatmul.mubr.bf16.gmra.mrb[0].mxu0 %v3394
    %v3523 = vpop.f32.mrb[0].mxu0
    %v3524 = vadd.f32 %v3400, %v3523
    %v3525 = vpop.f32.mrb[0].mxu0
    %v3526 = vpop.f32.mrb[0].mxu0
    %v3527 = vadd.f32 %v3400, %v3526
    %v3528 = vpop.f32.mrb[0].mxu0
    %3529 = vmatprep.mubr.bf16.mxu0 0
    %3530 = vmatmul.mubr.bf16.gmra.mrb[0].mxu0 %v3395
    %v3531 = vpop.f32.mrb[0].mxu0
    %v3532 = vadd.f32 %v3400, %v3531
    %v3533 = vpop.f32.mrb[0].mxu0
    %v3534 = vpop.f32.mrb[0].mxu0
    %v3535 = vadd.f32 %v3400, %v3534
    %v3536 = vpop.f32.mrb[0].mxu0
    %3537 = vmatprep.mubr.bf16.mxu0 0
    %3538 = vmatmul.mubr.bf16.gmra.mrb[0].mxu0 %v3396
    %v3539 = vpop.f32.mrb[0].mxu0
    %v3540 = vadd.f32 %v3400, %v3539
    %v3541 = vpop.f32.mrb[0].mxu0
    %v3542 = vpop.f32.mrb[0].mxu0
    %v3543 = vadd.f32 %v3400, %v3542
    %v3544 = vpop.f32.mrb[0].mxu0
    %3545 = vdwg.mxu0
    %3546 = vadd.xlane.f32.xlu0 %v3484
    %v3547 = vpop.xlane.xlu0 %3546
    %3548 = vadd.xlane.f32.xlu0 %v3487
    %v3549 = vpop.xlane.xlu0 %3548
    %3550 = vadd.xlane.f32.xlu0 %v3492
    %v3551 = vpop.xlane.xlu0 %3550
    %3552 = vadd.xlane.f32.xlu0 %v3495
    %v3553 = vpop.xlane.xlu0 %3552
    %3554 = vadd.xlane.f32.xlu0 %v3500
    %v3555 = vpop.xlane.xlu0 %3554
    %3556 = vadd.xlane.f32.xlu0 %v3503
    %v3557 = vpop.xlane.xlu0 %3556
    %3558 = vadd.xlane.f32.xlu0 %v3508
    %v3559 = vpop.xlane.xlu0 %3558
    %3560 = vadd.xlane.f32.xlu0 %v3511
    %v3561 = vpop.xlane.xlu0 %3560
    %3562 = vadd.xlane.f32.xlu0 %v3516
    %v3563 = vpop.xlane.xlu0 %3562
    %3564 = vadd.xlane.f32.xlu0 %v3519
    %v3565 = vpop.xlane.xlu0 %3564
    %3566 = vadd.xlane.f32.xlu0 %v3524
    %v3567 = vpop.xlane.xlu0 %3566
    %3568 = vadd.xlane.f32.xlu0 %v3527
    %v3569 = vpop.xlane.xlu0 %3568
    %3570 = vadd.xlane.f32.xlu0 %v3532
    %v3571 = vpop.xlane.xlu0 %3570
    %3572 = vadd.xlane.f32.xlu0 %v3535
    %v3573 = vpop.xlane.xlu0 %3572
    %3574 = vadd.xlane.f32.xlu0 %v3540
    %v3575 = vpop.xlane.xlu0 %3574
    %3576 = vadd.xlane.f32.xlu0 %v3543
    %v3577 = vpop.xlane.xlu0 %3576
    %v3578 = vmul.f32 %v3484, %v3484
    %v3579 = vmul.f32 %v3487, %v3487
    %v3580 = vmul.f32 %v3492, %v3492
    %v3581 = vmul.f32 %v3495, %v3495
    %v3582 = vmul.f32 %v3500, %v3500
    %v3583 = vmul.f32 %v3503, %v3503
    %v3584 = vmul.f32 %v3508, %v3508
    %v3585 = vmul.f32 %v3511, %v3511
    %v3586 = vmul.f32 %v3516, %v3516
    %v3587 = vmul.f32 %v3519, %v3519
    %v3588 = vmul.f32 %v3524, %v3524
    %v3589 = vmul.f32 %v3527, %v3527
    %v3590 = vmul.f32 %v3532, %v3532
    %v3591 = vmul.f32 %v3535, %v3535
    %v3592 = vmul.f32 %v3540, %v3540
    %v3593 = vmul.f32 %v3543, %v3543
    %3594 = vadd.xlane.f32.xlu0 %v3578
    %v3595 = vpop.xlane.xlu0 %3594
    %3596 = vadd.xlane.f32.xlu0 %v3579
    %v3597 = vpop.xlane.xlu0 %3596
    %3598 = vadd.xlane.f32.xlu0 %v3580
    %v3599 = vpop.xlane.xlu0 %3598
    %3600 = vadd.xlane.f32.xlu0 %v3581
    %v3601 = vpop.xlane.xlu0 %3600
    %3602 = vadd.xlane.f32.xlu0 %v3582
    %v3603 = vpop.xlane.xlu0 %3602
    %3604 = vadd.xlane.f32.xlu0 %v3583
    %v3605 = vpop.xlane.xlu0 %3604
    %3606 = vadd.xlane.f32.xlu0 %v3584
    %v3607 = vpop.xlane.xlu0 %3606
    %3608 = vadd.xlane.f32.xlu0 %v3585
    %v3609 = vpop.xlane.xlu0 %3608
    %3610 = vadd.xlane.f32.xlu0 %v3586
    %v3611 = vpop.xlane.xlu0 %3610
    %3612 = vadd.xlane.f32.xlu0 %v3587
    %v3613 = vpop.xlane.xlu0 %3612
    %3614 = vadd.xlane.f32.xlu0 %v3588
    %v3615 = vpop.xlane.xlu0 %3614
    %3616 = vadd.xlane.f32.xlu0 %v3589
    %v3617 = vpop.xlane.xlu0 %3616
    %3618 = vadd.xlane.f32.xlu0 %v3590
    %v3619 = vpop.xlane.xlu0 %3618
    %3620 = vadd.xlane.f32.xlu0 %v3591
    %v3621 = vpop.xlane.xlu0 %3620
    %3622 = vadd.xlane.f32.xlu0 %v3592
    %v3623 = vpop.xlane.xlu0 %3622
    %3624 = vadd.xlane.f32.xlu0 %v3593
    %v3625 = vpop.xlane.xlu0 %3624
    %v3626 = vmul.f32 %v3547, 0.0078125
    %v3627 = vmul.f32 %v3549, 0.0078125
    %v3628 = vmul.f32 %v3551, 0.0078125
    %v3629 = vmul.f32 %v3553, 0.0078125
    %v3630 = vmul.f32 %v3555, 0.0078125
    %v3631 = vmul.f32 %v3557, 0.0078125
    %v3632 = vmul.f32 %v3559, 0.0078125
    %v3633 = vmul.f32 %v3561, 0.0078125
    %v3634 = vmul.f32 %v3563, 0.0078125
    %v3635 = vmul.f32 %v3565, 0.0078125
    %v3636 = vmul.f32 %v3567, 0.0078125
    %v3637 = vmul.f32 %v3569, 0.0078125
    %v3638 = vmul.f32 %v3571, 0.0078125
    %v3639 = vmul.f32 %v3573, 0.0078125
    %v3640 = vmul.f32 %v3575, 0.0078125
    %v3641 = vmul.f32 %v3577, 0.0078125
    %v3642 = vmul.f32 %v3595, 0.0078125
    %v3643 = vmul.f32 %v3597, 0.0078125
    %v3644 = vmul.f32 %v3599, 0.0078125
    %v3645 = vmul.f32 %v3601, 0.0078125
    %v3646 = vmul.f32 %v3603, 0.0078125
    %v3647 = vmul.f32 %v3605, 0.0078125
    %v3648 = vmul.f32 %v3607, 0.0078125
    %v3649 = vmul.f32 %v3609, 0.0078125
    %v3650 = vmul.f32 %v3611, 0.0078125
    %v3651 = vmul.f32 %v3613, 0.0078125
    %v3652 = vmul.f32 %v3615, 0.0078125
    %v3653 = vmul.f32 %v3617, 0.0078125
    %v3654 = vmul.f32 %v3619, 0.0078125
    %v3655 = vmul.f32 %v3621, 0.0078125
    %v3656 = vmul.f32 %v3623, 0.0078125
    %v3657 = vmul.f32 %v3625, 0.0078125
    %v3658 = vmul.f32 %v3626, %v3626
    %v3659 = vmul.f32 %v3627, %v3627
    %v3660 = vmul.f32 %v3628, %v3628
    %v3661 = vmul.f32 %v3629, %v3629
    %v3662 = vmul.f32 %v3630, %v3630
    %v3663 = vmul.f32 %v3631, %v3631
    %v3664 = vmul.f32 %v3632, %v3632
    %v3665 = vmul.f32 %v3633, %v3633
    %v3666 = vmul.f32 %v3634, %v3634
    %v3667 = vmul.f32 %v3635, %v3635
    %v3668 = vmul.f32 %v3636, %v3636
    %v3669 = vmul.f32 %v3637, %v3637
    %v3670 = vmul.f32 %v3638, %v3638
    %v3671 = vmul.f32 %v3639, %v3639
    %v3672 = vmul.f32 %v3640, %v3640
    %v3673 = vmul.f32 %v3641, %v3641
    %v3674 = vsub.f32 %v3642, %v3658
    %v3675 = vsub.f32 %v3643, %v3659
    %v3676 = vsub.f32 %v3644, %v3660
    %v3677 = vsub.f32 %v3645, %v3661
    %v3678 = vsub.f32 %v3646, %v3662
    %v3679 = vsub.f32 %v3647, %v3663
    %v3680 = vsub.f32 %v3648, %v3664
    %v3681 = vsub.f32 %v3649, %v3665
    %v3682 = vsub.f32 %v3650, %v3666
    %v3683 = vsub.f32 %v3651, %v3667
    %v3684 = vsub.f32 %v3652, %v3668
    %v3685 = vsub.f32 %v3653, %v3669
    %v3686 = vsub.f32 %v3654, %v3670
    %v3687 = vsub.f32 %v3655, %v3671
    %v3688 = vsub.f32 %v3656, %v3672
    %v3689 = vsub.f32 %v3657, %v3673
    %v3690 = vsub.f32 %v3484, %v3626
    %v3691 = vsub.f32 %v3487, %v3627
    %v3692 = vsub.f32 %v3492, %v3628
    %v3693 = vsub.f32 %v3495, %v3629
    %v3694 = vsub.f32 %v3500, %v3630
    %v3695 = vsub.f32 %v3503, %v3631
    %v3696 = vsub.f32 %v3508, %v3632
    %v3697 = vsub.f32 %v3511, %v3633
    %v3698 = vsub.f32 %v3516, %v3634
    %v3699 = vsub.f32 %v3519, %v3635
    %v3700 = vsub.f32 %v3524, %v3636
    %v3701 = vsub.f32 %v3527, %v3637
    %v3702 = vsub.f32 %v3532, %v3638
    %v3703 = vsub.f32 %v3535, %v3639
    %v3704 = vsub.f32 %v3540, %v3640
    %v3705 = vsub.f32 %v3543, %v3641
    %v3706 = vadd.f32 %v3674, 1e-05
    %v3707 = vadd.f32 %v3675, 1e-05
    %v3708 = vadd.f32 %v3676, 1e-05
    %v3709 = vadd.f32 %v3677, 1e-05
    %v3710 = vadd.f32 %v3678, 1e-05
    %v3711 = vadd.f32 %v3679, 1e-05
    %v3712 = vadd.f32 %v3680, 1e-05
    %v3713 = vadd.f32 %v3681, 1e-05
    %v3714 = vadd.f32 %v3682, 1e-05
    %v3715 = vadd.f32 %v3683, 1e-05
    %v3716 = vadd.f32 %v3684, 1e-05
    %v3717 = vadd.f32 %v3685, 1e-05
    %v3718 = vadd.f32 %v3686, 1e-05
    %v3719 = vadd.f32 %v3687, 1e-05
    %v3720 = vadd.f32 %v3688, 1e-05
    %v3721 = vadd.f32 %v3689, 1e-05
    %v3722 = vrsqrt.pop %v3706
    %v3723 = vrsqrt.pop %v3707
    %v3724 = vrsqrt.pop %v3708
    %v3725 = vrsqrt.pop %v3709
    %v3726 = vrsqrt.pop %v3710
    %v3727 = vrsqrt.pop %v3711
    %v3728 = vrsqrt.pop %v3712
    %v3729 = vrsqrt.pop %v3713
    %v3730 = vrsqrt.pop %v3714
    %v3731 = vrsqrt.pop %v3715
    %v3732 = vrsqrt.pop %v3716
    %v3733 = vrsqrt.pop %v3717
    %v3734 = vrsqrt.pop %v3718
    %v3735 = vrsqrt.pop %v3719
    %v3736 = vrsqrt.pop %v3720
    %v3737 = vrsqrt.pop %v3721
    %v3738 = vmul.f32 %v3690, %v3722
    %v3739 = vmul.f32 %v3691, %v3723
    %v3740 = vmul.f32 %v3692, %v3724
    %v3741 = vmul.f32 %v3693, %v3725
    %v3742 = vmul.f32 %v3694, %v3726
    %v3743 = vmul.f32 %v3695, %v3727
    %v3744 = vmul.f32 %v3696, %v3728
    %v3745 = vmul.f32 %v3697, %v3729
    %v3746 = vmul.f32 %v3698, %v3730
    %v3747 = vmul.f32 %v3699, %v3731
    %v3748 = vmul.f32 %v3700, %v3732
    %v3749 = vmul.f32 %v3701, %v3733
    %v3750 = vmul.f32 %v3702, %v3734
    %v3751 = vmul.f32 %v3703, %v3735
    %v3752 = vmul.f32 %v3704, %v3736
    %v3753 = vmul.f32 %v3705, %v3737
    %v3754 = vlaneseq
    %v3755 = vshrl.u32 %v3754, 7
    %v3756 = vsub.s32 2, %v3755
    %v3757 = vrot.slane %v1169, %v3756
    %v3758 = vmul.f32 %v3738, %v3757
    %v3759 = vmul.f32 %v3739, %v3757
    %v3760 = vmul.f32 %v3740, %v3757
    %v3761 = vmul.f32 %v3741, %v3757
    %v3762 = vmul.f32 %v3742, %v3757
    %v3763 = vmul.f32 %v3743, %v3757
    %v3764 = vmul.f32 %v3744, %v3757
    %v3765 = vmul.f32 %v3745, %v3757
    %v3766 = vmul.f32 %v3746, %v3757
    %v3767 = vmul.f32 %v3747, %v3757
    %v3768 = vmul.f32 %v3748, %v3757
    %v3769 = vmul.f32 %v3749, %v3757
    %v3770 = vmul.f32 %v3750, %v3757
    %v3771 = vmul.f32 %v3751, %v3757
    %v3772 = vmul.f32 %v3752, %v3757
    %v3773 = vmul.f32 %v3753, %v3757
    %v3774 = vlaneseq
    %v3775 = vshrl.u32 %v3774, 7
    %v3776 = vsub.s32 2, %v3775
    %v3777 = vrot.slane %v1171, %v3776
    %v3778 = vadd.f32 %v3758, %v3777
    %v3779 = vadd.f32 %v3759, %v3777
    %v3780 = vadd.f32 %v3760, %v3777
    %v3781 = vadd.f32 %v3761, %v3777
    %v3782 = vadd.f32 %v3762, %v3777
    %v3783 = vadd.f32 %v3763, %v3777
    %v3784 = vadd.f32 %v3764, %v3777
    %v3785 = vadd.f32 %v3765, %v3777
    %v3786 = vadd.f32 %v3766, %v3777
    %v3787 = vadd.f32 %v3767, %v3777
    %v3788 = vadd.f32 %v3768, %v3777
    %v3789 = vadd.f32 %v3769, %v3777
    %v3790 = vadd.f32 %v3770, %v3777
    %v3791 = vadd.f32 %v3771, %v3777
    %v3792 = vadd.f32 %v3772, %v3777
    %v3793 = vadd.f32 %v3773, %v3777
    %v3794 = vxor.u32 %v3778, 2147483648
    %v3795 = vxor.u32 %v3779, 2147483648
    %v3796 = vxor.u32 %v3780, 2147483648
    %v3797 = vxor.u32 %v3781, 2147483648
    %v3798 = vxor.u32 %v3782, 2147483648
    %v3799 = vxor.u32 %v3783, 2147483648
    %v3800 = vxor.u32 %v3784, 2147483648
    %v3801 = vxor.u32 %v3785, 2147483648
    %v3802 = vxor.u32 %v3786, 2147483648
    %v3803 = vxor.u32 %v3787, 2147483648
    %v3804 = vxor.u32 %v3788, 2147483648
    %v3805 = vxor.u32 %v3789, 2147483648
    %v3806 = vxor.u32 %v3790, 2147483648
    %v3807 = vxor.u32 %v3791, 2147483648
    %v3808 = vxor.u32 %v3792, 2147483648
    %v3809 = vxor.u32 %v3793, 2147483648
    %v3810 = vmul.f32 %v3794, 1.442695
    %v3811 = vpow.pop %v3810
    %v3812 = vmul.f32 %v3795, 1.442695
    %v3813 = vpow.pop %v3812
    %v3814 = vmul.f32 %v3796, 1.442695
    %v3815 = vpow.pop %v3814
    %v3816 = vmul.f32 %v3797, 1.442695
    %v3817 = vpow.pop %v3816
    %v3818 = vmul.f32 %v3798, 1.442695
    %v3819 = vpow.pop %v3818
    %v3820 = vmul.f32 %v3799, 1.442695
    %v3821 = vpow.pop %v3820
    %v3822 = vmul.f32 %v3800, 1.442695
    %v3823 = vpow.pop %v3822
    %v3824 = vmul.f32 %v3801, 1.442695
    %v3825 = vpow.pop %v3824
    %v3826 = vmul.f32 %v3802, 1.442695
    %v3827 = vpow.pop %v3826
    %v3828 = vmul.f32 %v3803, 1.442695
    %v3829 = vpow.pop %v3828
    %v3830 = vmul.f32 %v3804, 1.442695
    %v3831 = vpow.pop %v3830
    %v3832 = vmul.f32 %v3805, 1.442695
    %v3833 = vpow.pop %v3832
    %v3834 = vmul.f32 %v3806, 1.442695
    %v3835 = vpow.pop %v3834
    %v3836 = vmul.f32 %v3807, 1.442695
    %v3837 = vpow.pop %v3836
    %v3838 = vmul.f32 %v3808, 1.442695
    %v3839 = vpow.pop %v3838
    %v3840 = vmul.f32 %v3809, 1.442695
    %v3841 = vpow.pop %v3840
    %v3842 = vadd.f32 %v3811, 1.0
    %v3843 = vadd.f32 %v3813, 1.0
    %v3844 = vadd.f32 %v3815, 1.0
    %v3845 = vadd.f32 %v3817, 1.0
    %v3846 = vadd.f32 %v3819, 1.0
    %v3847 = vadd.f32 %v3821, 1.0
    %v3848 = vadd.f32 %v3823, 1.0
    %v3849 = vadd.f32 %v3825, 1.0
    %v3850 = vadd.f32 %v3827, 1.0
    %v3851 = vadd.f32 %v3829, 1.0
    %v3852 = vadd.f32 %v3831, 1.0
    %v3853 = vadd.f32 %v3833, 1.0
    %v3854 = vadd.f32 %v3835, 1.0
    %v3855 = vadd.f32 %v3837, 1.0
    %v3856 = vadd.f32 %v3839, 1.0
    %v3857 = vadd.f32 %v3841, 1.0
    %v3858 = vrcp.pop %v3842
    %v3859 = vmul.f32 1.0, %v3858
    %v3860 = vrcp.pop %v3843
    %v3861 = vmul.f32 1.0, %v3860
    %v3862 = vrcp.pop %v3844
    %v3863 = vmul.f32 1.0, %v3862
    %v3864 = vrcp.pop %v3845
    %v3865 = vmul.f32 1.0, %v3864
    %v3866 = vrcp.pop %v3846
    %v3867 = vmul.f32 1.0, %v3866
    %v3868 = vrcp.pop %v3847
    %v3869 = vmul.f32 1.0, %v3868
    %v3870 = vrcp.pop %v3848
    %v3871 = vmul.f32 1.0, %v3870
    %v3872 = vrcp.pop %v3849
    %v3873 = vmul.f32 1.0, %v3872
    %v3874 = vrcp.pop %v3850
    %v3875 = vmul.f32 1.0, %v3874
    %v3876 = vrcp.pop %v3851
    %v3877 = vmul.f32 1.0, %v3876
    %v3878 = vrcp.pop %v3852
    %v3879 = vmul.f32 1.0, %v3878
    %v3880 = vrcp.pop %v3853
    %v3881 = vmul.f32 1.0, %v3880
    %v3882 = vrcp.pop %v3854
    %v3883 = vmul.f32 1.0, %v3882
    %v3884 = vrcp.pop %v3855
    %v3885 = vmul.f32 1.0, %v3884
    %v3886 = vrcp.pop %v3856
    %v3887 = vmul.f32 1.0, %v3886
    %v3888 = vrcp.pop %v3857
    %v3889 = vmul.f32 1.0, %v3888
    %v3890 = vmul.f32 %v3778, %v3859
    %v3891 = vmul.f32 %v3779, %v3861
    %v3892 = vmul.f32 %v3780, %v3863
    %v3893 = vmul.f32 %v3781, %v3865
    %v3894 = vmul.f32 %v3782, %v3867
    %v3895 = vmul.f32 %v3783, %v3869
    %v3896 = vmul.f32 %v3784, %v3871
    %v3897 = vmul.f32 %v3785, %v3873
    %v3898 = vmul.f32 %v3786, %v3875
    %v3899 = vmul.f32 %v3787, %v3877
    %v3900 = vmul.f32 %v3788, %v3879
    %v3901 = vmul.f32 %v3789, %v3881
    %v3902 = vmul.f32 %v3790, %v3883
    %v3903 = vmul.f32 %v3791, %v3885
    %v3904 = vmul.f32 %v3792, %v3887
    %v3905 = vmul.f32 %v3793, %v3889
    %v3906 = vadd.f32 %v2806, %v3890
    %v3907 = vadd.f32 %v2807, %v3891
    %v3908 = vadd.f32 %v2808, %v3892
    %v3909 = vadd.f32 %v2809, %v3893
    %v3910 = vadd.f32 %v2810, %v3894
    %v3911 = vadd.f32 %v2811, %v3895
    %v3912 = vadd.f32 %v2812, %v3896
    %v3913 = vadd.f32 %v2813, %v3897
    %v3914 = vadd.f32 %v2814, %v3898
    %v3915 = vadd.f32 %v2815, %v3899
    %v3916 = vadd.f32 %v2816, %v3900
    %v3917 = vadd.f32 %v2817, %v3901
    %v3918 = vadd.f32 %v2818, %v3902
    %v3919 = vadd.f32 %v2819, %v3903
    %v3920 = vadd.f32 %v2820, %v3904
    %v3921 = vadd.f32 %v2821, %v3905
    %s3922 = scalar_lea.vmem [#allocation2], 320
    %v3923 = vld [vmem:[%s3922] sm:$0xf]
    %v3924 = vld [vmem:[%s3922 + $0x4] sm:$0xf]
    %v3925 = vld [vmem:[%s3922 + $0x8] sm:$0xf]
    %v3926 = vld [vmem:[%s3922 + $0xc] sm:$0xf]
    %v3927 = vld [vmem:[%s3922 + $0x10] sm:$0xf]
    %v3928 = vld [vmem:[%s3922 + $0x14] sm:$0xf]
    %v3929 = vld [vmem:[%s3922 + $0x18] sm:$0xf]
    %v3930 = vld [vmem:[%s3922 + $0x1c] sm:$0xf]
    %v3931 = vld [vmem:[%s3922 + $0x20] sm:$0xf]
    %v3932 = vld [vmem:[%s3922 + $0x24] sm:$0xf]
    %v3933 = vld [vmem:[%s3922 + $0x28] sm:$0xf]
    %v3934 = vld [vmem:[%s3922 + $0x2c] sm:$0xf]
    %v3935 = vld [vmem:[%s3922 + $0x30] sm:$0xf]
    %v3936 = vld [vmem:[%s3922 + $0x34] sm:$0xf]
    %v3937 = vld [vmem:[%s3922 + $0x38] sm:$0xf]
    %v3938 = vld [vmem:[%s3922 + $0x3c] sm:$0xf]
    %v3939 = vpack.c.bf16 %v3357, %v3356
    %v3940 = vpack.c.bf16 %v3359, %v3358
    %v3941 = vpack.c.bf16 %v3361, %v3360
    %v3942 = vpack.c.bf16 %v3363, %v3362
    %v3943 = vpack.c.bf16 %v3365, %v3364
    %v3944 = vpack.c.bf16 %v3367, %v3366
    %v3945 = vpack.c.bf16 %v3369, %v3368
    %v3946 = vpack.c.bf16 %v3371, %v3370
    %v3947 = vlaneseq
    %v3948 = vshrl.u32 %v3947, 7
    %v3949 = vsub.s32 2, %v3948
    %v3950 = vrot.slane %v1168, %v3949
    %v3967 = vunpack.c.l.b16 %v3923
    %v3968 = vunpack.c.l.b16 %v3924
    %v3969 = vunpack.c.l.b16 %v3925
    %v3970 = vunpack.c.l.b16 %v3926
    %v3971 = vunpack.c.l.b16 %v3927
    %v3972 = vunpack.c.l.b16 %v3928
    %v3973 = vunpack.c.l.b16 %v3929
    %v3974 = vunpack.c.l.b16 %v3930
    %v3975 = vunpack.c.l.b16 %v3931
    %v3976 = vunpack.c.l.b16 %v3932
    %v3977 = vunpack.c.l.b16 %v3933
    %v3978 = vunpack.c.l.b16 %v3934
    %v3979 = vunpack.c.l.b16 %v3935
    %v3980 = vunpack.c.l.b16 %v3936
    %v3981 = vunpack.c.l.b16 %v3937
    %v3982 = vunpack.c.l.b16 %v3938
    %v3983 = vpack.c.b16 %v3968, %v3967
    %v3984 = vpack.c.b16 %v3970, %v3969
    %v3985 = vpack.c.b16 %v3972, %v3971
    %v3986 = vpack.c.b16 %v3974, %v3973
    %v3987 = vpack.c.b16 %v3976, %v3975
    %v3988 = vpack.c.b16 %v3978, %v3977
    %v3989 = vpack.c.b16 %v3980, %v3979
    %v3990 = vpack.c.b16 %v3982, %v3981
    %3999 = vmatprep.subr.bf16.mxu0 0
    %4000 = vmatpush1.bf16.msra.mxu0 %v3983
    %4001 = vmatprep.subr.bf16.mxu0 0
    %4002 = vmatpush1.bf16.msra.mxu0 %v3984
    %4003 = vmatprep.subr.bf16.mxu0 0
    %4004 = vmatpush1.bf16.msra.mxu0 %v3985
    %4005 = vmatprep.subr.bf16.mxu0 0
    %4006 = vmatpush1.bf16.msra.mxu0 %v3986
    %4007 = vmatprep.subr.bf16.mxu0 0
    %4008 = vmatpush1.bf16.msra.mxu0 %v3987
    %4009 = vmatprep.subr.bf16.mxu0 0
    %4010 = vmatpush1.bf16.msra.mxu0 %v3988
    %4011 = vmatprep.subr.bf16.mxu0 0
    %4012 = vmatpush1.bf16.msra.mxu0 %v3989
    %4013 = vmatprep.subr.bf16.mxu0 0
    %4014 = vmatpush1.bf16.msra.mxu0 %v3990
    %4015 = vmatprep.subr.bf16.mxu0 0
    %4016 = vmatpush1.bf16.msra.mxu0 0
    %4017 = vmatprep.subr.bf16.mxu0 0
    %4018 = vmatpush1.bf16.msra.mxu0 0
    %4019 = vmatprep.subr.bf16.mxu0 0
    %4020 = vmatpush1.bf16.msra.mxu0 0
    %4021 = vmatprep.subr.bf16.mxu0 0
    %4022 = vmatpush1.bf16.msra.mxu0 0
    %4023 = vmatprep.subr.bf16.mxu0 0
    %4024 = vmatpush1.bf16.msra.mxu0 0
    %4025 = vmatprep.subr.bf16.mxu0 0
    %4026 = vmatpush1.bf16.msra.mxu0 0
    %4027 = vmatprep.subr.bf16.mxu0 0
    %4028 = vmatpush1.bf16.msra.mxu0 0
    %4029 = vmatprep.subr.bf16.mxu0 0
    %4030 = vmatpush1.bf16.msra.mxu0 0
    %4031 = vmatprep.mubr.bf16.mxu0 0
    %4032 = vmatmul.mubr.bf16.gmra.mrb[0].mxu0 %v3939
    %v4033 = vpop.f32.mrb[0].mxu0
    %v4034 = vadd.f32 %v3950, %v4033
    %v4035 = vpop.f32.mrb[0].mxu0
    %v4036 = vpop.f32.mrb[0].mxu0
    %v4037 = vadd.f32 %v3950, %v4036
    %v4038 = vpop.f32.mrb[0].mxu0
    %4039 = vmatprep.mubr.bf16.mxu0 0
    %4040 = vmatmul.mubr.bf16.gmra.mrb[0].mxu0 %v3940
    %v4041 = vpop.f32.mrb[0].mxu0
    %v4042 = vadd.f32 %v3950, %v4041
    %v4043 = vpop.f32.mrb[0].mxu0
    %v4044 = vpop.f32.mrb[0].mxu0
    %v4045 = vadd.f32 %v3950, %v4044
    %v4046 = vpop.f32.mrb[0].mxu0
    %4047 = vmatprep.mubr.bf16.mxu0 0
    %4048 = vmatmul.mubr.bf16.gmra.mrb[0].mxu0 %v3941
    %v4049 = vpop.f32.mrb[0].mxu0
    %v4050 = vadd.f32 %v3950, %v4049
    %v4051 = vpop.f32.mrb[0].mxu0
    %v4052 = vpop.f32.mrb[0].mxu0
    %v4053 = vadd.f32 %v3950, %v4052
    %v4054 = vpop.f32.mrb[0].mxu0
    %4055 = vmatprep.mubr.bf16.mxu0 0
    %4056 = vmatmul.mubr.bf16.gmra.mrb[0].mxu0 %v3942
    %v4057 = vpop.f32.mrb[0].mxu0
    %v4058 = vadd.f32 %v3950, %v4057
    %v4059 = vpop.f32.mrb[0].mxu0
    %v4060 = vpop.f32.mrb[0].mxu0
    %v4061 = vadd.f32 %v3950, %v4060
    %v4062 = vpop.f32.mrb[0].mxu0
    %4063 = vmatprep.mubr.bf16.mxu0 0
    %4064 = vmatmul.mubr.bf16.gmra.mrb[0].mxu0 %v3943
    %v4065 = vpop.f32.mrb[0].mxu0
    %v4066 = vadd.f32 %v3950, %v4065
    %v4067 = vpop.f32.mrb[0].mxu0
    %v4068 = vpop.f32.mrb[0].mxu0
    %v4069 = vadd.f32 %v3950, %v4068
    %v4070 = vpop.f32.mrb[0].mxu0
    %4071 = vmatprep.mubr.bf16.mxu0 0
    %4072 = vmatmul.mubr.bf16.gmra.mrb[0].mxu0 %v3944
    %v4073 = vpop.f32.mrb[0].mxu0
    %v4074 = vadd.f32 %v3950, %v4073
    %v4075 = vpop.f32.mrb[0].mxu0
    %v4076 = vpop.f32.mrb[0].mxu0
    %v4077 = vadd.f32 %v3950, %v4076
    %v4078 = vpop.f32.mrb[0].mxu0
    %4079 = vmatprep.mubr.bf16.mxu0 0
    %4080 = vmatmul.mubr.bf16.gmra.mrb[0].mxu0 %v3945
    %v4081 = vpop.f32.mrb[0].mxu0
    %v4082 = vadd.f32 %v3950, %v4081
    %v4083 = vpop.f32.mrb[0].mxu0
    %v4084 = vpop.f32.mrb[0].mxu0
    %v4085 = vadd.f32 %v3950, %v4084
    %v4086 = vpop.f32.mrb[0].mxu0
    %4087 = vmatprep.mubr.bf16.mxu0 0
    %4088 = vmatmul.mubr.bf16.gmra.mrb[0].mxu0 %v3946
    %v4089 = vpop.f32.mrb[0].mxu0
    %v4090 = vadd.f32 %v3950, %v4089
    %v4091 = vpop.f32.mrb[0].mxu0
    %v4092 = vpop.f32.mrb[0].mxu0
    %v4093 = vadd.f32 %v3950, %v4092
    %v4094 = vpop.f32.mrb[0].mxu0
    %4095 = vdwg.mxu0
    %4096 = vadd.xlane.f32.xlu0 %v4034
    %v4097 = vpop.xlane.xlu0 %4096
    %4098 = vadd.xlane.f32.xlu0 %v4037
    %v4099 = vpop.xlane.xlu0 %4098
    %4100 = vadd.xlane.f32.xlu0 %v4042
    %v4101 = vpop.xlane.xlu0 %4100
    %4102 = vadd.xlane.f32.xlu0 %v4045
    %v4103 = vpop.xlane.xlu0 %4102
    %4104 = vadd.xlane.f32.xlu0 %v4050
    %v4105 = vpop.xlane.xlu0 %4104
    %4106 = vadd.xlane.f32.xlu0 %v4053
    %v4107 = vpop.xlane.xlu0 %4106
    %4108 = vadd.xlane.f32.xlu0 %v4058
    %v4109 = vpop.xlane.xlu0 %4108
    %4110 = vadd.xlane.f32.xlu0 %v4061
    %v4111 = vpop.xlane.xlu0 %4110
    %4112 = vadd.xlane.f32.xlu0 %v4066
    %v4113 = vpop.xlane.xlu0 %4112
    %4114 = vadd.xlane.f32.xlu0 %v4069
    %v4115 = vpop.xlane.xlu0 %4114
    %4116 = vadd.xlane.f32.xlu0 %v4074
    %v4117 = vpop.xlane.xlu0 %4116
    %4118 = vadd.xlane.f32.xlu0 %v4077
    %v4119 = vpop.xlane.xlu0 %4118
    %4120 = vadd.xlane.f32.xlu0 %v4082
    %v4121 = vpop.xlane.xlu0 %4120
    %4122 = vadd.xlane.f32.xlu0 %v4085
    %v4123 = vpop.xlane.xlu0 %4122
    %4124 = vadd.xlane.f32.xlu0 %v4090
    %v4125 = vpop.xlane.xlu0 %4124
    %4126 = vadd.xlane.f32.xlu0 %v4093
    %v4127 = vpop.xlane.xlu0 %4126
    %v4128 = vmul.f32 %v4034, %v4034
    %v4129 = vmul.f32 %v4037, %v4037
    %v4130 = vmul.f32 %v4042, %v4042
    %v4131 = vmul.f32 %v4045, %v4045
    %v4132 = vmul.f32 %v4050, %v4050
    %v4133 = vmul.f32 %v4053, %v4053
    %v4134 = vmul.f32 %v4058, %v4058
    %v4135 = vmul.f32 %v4061, %v4061
    %v4136 = vmul.f32 %v4066, %v4066
    %v4137 = vmul.f32 %v4069, %v4069
    %v4138 = vmul.f32 %v4074, %v4074
    %v4139 = vmul.f32 %v4077, %v4077
    %v4140 = vmul.f32 %v4082, %v4082
    %v4141 = vmul.f32 %v4085, %v4085
    %v4142 = vmul.f32 %v4090, %v4090
    %v4143 = vmul.f32 %v4093, %v4093
    %4144 = vadd.xlane.f32.xlu0 %v4128
    %v4145 = vpop.xlane.xlu0 %4144
    %4146 = vadd.xlane.f32.xlu0 %v4129
    %v4147 = vpop.xlane.xlu0 %4146
    %4148 = vadd.xlane.f32.xlu0 %v4130
    %v4149 = vpop.xlane.xlu0 %4148
    %4150 = vadd.xlane.f32.xlu0 %v4131
    %v4151 = vpop.xlane.xlu0 %4150
    %4152 = vadd.xlane.f32.xlu0 %v4132
    %v4153 = vpop.xlane.xlu0 %4152
    %4154 = vadd.xlane.f32.xlu0 %v4133
    %v4155 = vpop.xlane.xlu0 %4154
    %4156 = vadd.xlane.f32.xlu0 %v4134
    %v4157 = vpop.xlane.xlu0 %4156
    %4158 = vadd.xlane.f32.xlu0 %v4135
    %v4159 = vpop.xlane.xlu0 %4158
    %4160 = vadd.xlane.f32.xlu0 %v4136
    %v4161 = vpop.xlane.xlu0 %4160
    %4162 = vadd.xlane.f32.xlu0 %v4137
    %v4163 = vpop.xlane.xlu0 %4162
    %4164 = vadd.xlane.f32.xlu0 %v4138
    %v4165 = vpop.xlane.xlu0 %4164
    %4166 = vadd.xlane.f32.xlu0 %v4139
    %v4167 = vpop.xlane.xlu0 %4166
    %4168 = vadd.xlane.f32.xlu0 %v4140
    %v4169 = vpop.xlane.xlu0 %4168
    %4170 = vadd.xlane.f32.xlu0 %v4141
    %v4171 = vpop.xlane.xlu0 %4170
    %4172 = vadd.xlane.f32.xlu0 %v4142
    %v4173 = vpop.xlane.xlu0 %4172
    %4174 = vadd.xlane.f32.xlu0 %v4143
    %v4175 = vpop.xlane.xlu0 %4174
    %v4176 = vmul.f32 %v4097, 0.0078125
    %v4177 = vmul.f32 %v4099, 0.0078125
    %v4178 = vmul.f32 %v4101, 0.0078125
    %v4179 = vmul.f32 %v4103, 0.0078125
    %v4180 = vmul.f32 %v4105, 0.0078125
    %v4181 = vmul.f32 %v4107, 0.0078125
    %v4182 = vmul.f32 %v4109, 0.0078125
    %v4183 = vmul.f32 %v4111, 0.0078125
    %v4184 = vmul.f32 %v4113, 0.0078125
    %v4185 = vmul.f32 %v4115, 0.0078125
    %v4186 = vmul.f32 %v4117, 0.0078125
    %v4187 = vmul.f32 %v4119, 0.0078125
    %v4188 = vmul.f32 %v4121, 0.0078125
    %v4189 = vmul.f32 %v4123, 0.0078125
    %v4190 = vmul.f32 %v4125, 0.0078125
    %v4191 = vmul.f32 %v4127, 0.0078125
    %v4192 = vmul.f32 %v4145, 0.0078125
    %v4193 = vmul.f32 %v4147, 0.0078125
    %v4194 = vmul.f32 %v4149, 0.0078125
    %v4195 = vmul.f32 %v4151, 0.0078125
    %v4196 = vmul.f32 %v4153, 0.0078125
    %v4197 = vmul.f32 %v4155, 0.0078125
    %v4198 = vmul.f32 %v4157, 0.0078125
    %v4199 = vmul.f32 %v4159, 0.0078125
    %v4200 = vmul.f32 %v4161, 0.0078125
    %v4201 = vmul.f32 %v4163, 0.0078125
    %v4202 = vmul.f32 %v4165, 0.0078125
    %v4203 = vmul.f32 %v4167, 0.0078125
    %v4204 = vmul.f32 %v4169, 0.0078125
    %v4205 = vmul.f32 %v4171, 0.0078125
    %v4206 = vmul.f32 %v4173, 0.0078125
    %v4207 = vmul.f32 %v4175, 0.0078125
    %v4208 = vmul.f32 %v4176, %v4176
    %v4209 = vmul.f32 %v4177, %v4177
    %v4210 = vmul.f32 %v4178, %v4178
    %v4211 = vmul.f32 %v4179, %v4179
    %v4212 = vmul.f32 %v4180, %v4180
    %v4213 = vmul.f32 %v4181, %v4181
    %v4214 = vmul.f32 %v4182, %v4182
    %v4215 = vmul.f32 %v4183, %v4183
    %v4216 = vmul.f32 %v4184, %v4184
    %v4217 = vmul.f32 %v4185, %v4185
    %v4218 = vmul.f32 %v4186, %v4186
    %v4219 = vmul.f32 %v4187, %v4187
    %v4220 = vmul.f32 %v4188, %v4188
    %v4221 = vmul.f32 %v4189, %v4189
    %v4222 = vmul.f32 %v4190, %v4190
    %v4223 = vmul.f32 %v4191, %v4191
    %v4224 = vsub.f32 %v4192, %v4208
    %v4225 = vsub.f32 %v4193, %v4209
    %v4226 = vsub.f32 %v4194, %v4210
    %v4227 = vsub.f32 %v4195, %v4211
    %v4228 = vsub.f32 %v4196, %v4212
    %v4229 = vsub.f32 %v4197, %v4213
    %v4230 = vsub.f32 %v4198, %v4214
    %v4231 = vsub.f32 %v4199, %v4215
    %v4232 = vsub.f32 %v4200, %v4216
    %v4233 = vsub.f32 %v4201, %v4217
    %v4234 = vsub.f32 %v4202, %v4218
    %v4235 = vsub.f32 %v4203, %v4219
    %v4236 = vsub.f32 %v4204, %v4220
    %v4237 = vsub.f32 %v4205, %v4221
    %v4238 = vsub.f32 %v4206, %v4222
    %v4239 = vsub.f32 %v4207, %v4223
    %v4240 = vsub.f32 %v4034, %v4176
    %v4241 = vsub.f32 %v4037, %v4177
    %v4242 = vsub.f32 %v4042, %v4178
    %v4243 = vsub.f32 %v4045, %v4179
    %v4244 = vsub.f32 %v4050, %v4180
    %v4245 = vsub.f32 %v4053, %v4181
    %v4246 = vsub.f32 %v4058, %v4182
    %v4247 = vsub.f32 %v4061, %v4183
    %v4248 = vsub.f32 %v4066, %v4184
    %v4249 = vsub.f32 %v4069, %v4185
    %v4250 = vsub.f32 %v4074, %v4186
    %v4251 = vsub.f32 %v4077, %v4187
    %v4252 = vsub.f32 %v4082, %v4188
    %v4253 = vsub.f32 %v4085, %v4189
    %v4254 = vsub.f32 %v4090, %v4190
    %v4255 = vsub.f32 %v4093, %v4191
    %v4256 = vadd.f32 %v4224, 1e-05
    %v4257 = vadd.f32 %v4225, 1e-05
    %v4258 = vadd.f32 %v4226, 1e-05
    %v4259 = vadd.f32 %v4227, 1e-05
    %v4260 = vadd.f32 %v4228, 1e-05
    %v4261 = vadd.f32 %v4229, 1e-05
    %v4262 = vadd.f32 %v4230, 1e-05
    %v4263 = vadd.f32 %v4231, 1e-05
    %v4264 = vadd.f32 %v4232, 1e-05
    %v4265 = vadd.f32 %v4233, 1e-05
    %v4266 = vadd.f32 %v4234, 1e-05
    %v4267 = vadd.f32 %v4235, 1e-05
    %v4268 = vadd.f32 %v4236, 1e-05
    %v4269 = vadd.f32 %v4237, 1e-05
    %v4270 = vadd.f32 %v4238, 1e-05
    %v4271 = vadd.f32 %v4239, 1e-05
    %v4272 = vrsqrt.pop %v4256
    %v4273 = vrsqrt.pop %v4257
    %v4274 = vrsqrt.pop %v4258
    %v4275 = vrsqrt.pop %v4259
    %v4276 = vrsqrt.pop %v4260
    %v4277 = vrsqrt.pop %v4261
    %v4278 = vrsqrt.pop %v4262
    %v4279 = vrsqrt.pop %v4263
    %v4280 = vrsqrt.pop %v4264
    %v4281 = vrsqrt.pop %v4265
    %v4282 = vrsqrt.pop %v4266
    %v4283 = vrsqrt.pop %v4267
    %v4284 = vrsqrt.pop %v4268
    %v4285 = vrsqrt.pop %v4269
    %v4286 = vrsqrt.pop %v4270
    %v4287 = vrsqrt.pop %v4271
    %v4288 = vmul.f32 %v4240, %v4272
    %v4289 = vmul.f32 %v4241, %v4273
    %v4290 = vmul.f32 %v4242, %v4274
    %v4291 = vmul.f32 %v4243, %v4275
    %v4292 = vmul.f32 %v4244, %v4276
    %v4293 = vmul.f32 %v4245, %v4277
    %v4294 = vmul.f32 %v4246, %v4278
    %v4295 = vmul.f32 %v4247, %v4279
    %v4296 = vmul.f32 %v4248, %v4280
    %v4297 = vmul.f32 %v4249, %v4281
    %v4298 = vmul.f32 %v4250, %v4282
    %v4299 = vmul.f32 %v4251, %v4283
    %v4300 = vmul.f32 %v4252, %v4284
    %v4301 = vmul.f32 %v4253, %v4285
    %v4302 = vmul.f32 %v4254, %v4286
    %v4303 = vmul.f32 %v4255, %v4287
    %v4304 = vlaneseq
    %v4305 = vshrl.u32 %v4304, 7
    %v4306 = vsub.s32 2, %v4305
    %v4307 = vrot.slane %v1170, %v4306
    %v4308 = vmul.f32 %v4288, %v4307
    %v4309 = vmul.f32 %v4289, %v4307
    %v4310 = vmul.f32 %v4290, %v4307
    %v4311 = vmul.f32 %v4291, %v4307
    %v4312 = vmul.f32 %v4292, %v4307
    %v4313 = vmul.f32 %v4293, %v4307
    %v4314 = vmul.f32 %v4294, %v4307
    %v4315 = vmul.f32 %v4295, %v4307
    %v4316 = vmul.f32 %v4296, %v4307
    %v4317 = vmul.f32 %v4297, %v4307
    %v4318 = vmul.f32 %v4298, %v4307
    %v4319 = vmul.f32 %v4299, %v4307
    %v4320 = vmul.f32 %v4300, %v4307
    %v4321 = vmul.f32 %v4301, %v4307
    %v4322 = vmul.f32 %v4302, %v4307
    %v4323 = vmul.f32 %v4303, %v4307
    %v4324 = vlaneseq
    %v4325 = vshrl.u32 %v4324, 7
    %v4326 = vsub.s32 2, %v4325
    %v4327 = vrot.slane %v1172, %v4326
    %v4328 = vadd.f32 %v4308, %v4327
    %v4329 = vadd.f32 %v4309, %v4327
    %v4330 = vadd.f32 %v4310, %v4327
    %v4331 = vadd.f32 %v4311, %v4327
    %v4332 = vadd.f32 %v4312, %v4327
    %v4333 = vadd.f32 %v4313, %v4327
    %v4334 = vadd.f32 %v4314, %v4327
    %v4335 = vadd.f32 %v4315, %v4327
    %v4336 = vadd.f32 %v4316, %v4327
    %v4337 = vadd.f32 %v4317, %v4327
    %v4338 = vadd.f32 %v4318, %v4327
    %v4339 = vadd.f32 %v4319, %v4327
    %v4340 = vadd.f32 %v4320, %v4327
    %v4341 = vadd.f32 %v4321, %v4327
    %v4342 = vadd.f32 %v4322, %v4327
    %v4343 = vadd.f32 %v4323, %v4327
    %v4344 = vxor.u32 %v4328, 2147483648
    %v4345 = vxor.u32 %v4329, 2147483648
    %v4346 = vxor.u32 %v4330, 2147483648
    %v4347 = vxor.u32 %v4331, 2147483648
    %v4348 = vxor.u32 %v4332, 2147483648
    %v4349 = vxor.u32 %v4333, 2147483648
    %v4350 = vxor.u32 %v4334, 2147483648
    %v4351 = vxor.u32 %v4335, 2147483648
    %v4352 = vxor.u32 %v4336, 2147483648
    %v4353 = vxor.u32 %v4337, 2147483648
    %v4354 = vxor.u32 %v4338, 2147483648
    %v4355 = vxor.u32 %v4339, 2147483648
    %v4356 = vxor.u32 %v4340, 2147483648
    %v4357 = vxor.u32 %v4341, 2147483648
    %v4358 = vxor.u32 %v4342, 2147483648
    %v4359 = vxor.u32 %v4343, 2147483648
    %v4360 = vmul.f32 %v4344, 1.442695
    %v4361 = vpow.pop %v4360
    %v4362 = vmul.f32 %v4345, 1.442695
    %v4363 = vpow.pop %v4362
    %v4364 = vmul.f32 %v4346, 1.442695
    %v4365 = vpow.pop %v4364
    %v4366 = vmul.f32 %v4347, 1.442695
    %v4367 = vpow.pop %v4366
    %v4368 = vmul.f32 %v4348, 1.442695
    %v4369 = vpow.pop %v4368
    %v4370 = vmul.f32 %v4349, 1.442695
    %v4371 = vpow.pop %v4370
    %v4372 = vmul.f32 %v4350, 1.442695
    %v4373 = vpow.pop %v4372
    %v4374 = vmul.f32 %v4351, 1.442695
    %v4375 = vpow.pop %v4374
    %v4376 = vmul.f32 %v4352, 1.442695
    %v4377 = vpow.pop %v4376
    %v4378 = vmul.f32 %v4353, 1.442695
    %v4379 = vpow.pop %v4378
    %v4380 = vmul.f32 %v4354, 1.442695
    %v4381 = vpow.pop %v4380
    %v4382 = vmul.f32 %v4355, 1.442695
    %v4383 = vpow.pop %v4382
    %v4384 = vmul.f32 %v4356, 1.442695
    %v4385 = vpow.pop %v4384
    %v4386 = vmul.f32 %v4357, 1.442695
    %v4387 = vpow.pop %v4386
    %v4388 = vmul.f32 %v4358, 1.442695
    %v4389 = vpow.pop %v4388
    %v4390 = vmul.f32 %v4359, 1.442695
    %v4391 = vpow.pop %v4390
    %v4392 = vadd.f32 %v4361, 1.0
    %v4393 = vadd.f32 %v4363, 1.0
    %v4394 = vadd.f32 %v4365, 1.0
    %v4395 = vadd.f32 %v4367, 1.0
    %v4396 = vadd.f32 %v4369, 1.0
    %v4397 = vadd.f32 %v4371, 1.0
    %v4398 = vadd.f32 %v4373, 1.0
    %v4399 = vadd.f32 %v4375, 1.0
    %v4400 = vadd.f32 %v4377, 1.0
    %v4401 = vadd.f32 %v4379, 1.0
    %v4402 = vadd.f32 %v4381, 1.0
    %v4403 = vadd.f32 %v4383, 1.0
    %v4404 = vadd.f32 %v4385, 1.0
    %v4405 = vadd.f32 %v4387, 1.0
    %v4406 = vadd.f32 %v4389, 1.0
    %v4407 = vadd.f32 %v4391, 1.0
    %v4408 = vrcp.pop %v4392
    %v4409 = vmul.f32 1.0, %v4408
    %v4410 = vrcp.pop %v4393
    %v4411 = vmul.f32 1.0, %v4410
    %v4412 = vrcp.pop %v4394
    %v4413 = vmul.f32 1.0, %v4412
    %v4414 = vrcp.pop %v4395
    %v4415 = vmul.f32 1.0, %v4414
    %v4416 = vrcp.pop %v4396
    %v4417 = vmul.f32 1.0, %v4416
    %v4418 = vrcp.pop %v4397
    %v4419 = vmul.f32 1.0, %v4418
    %v4420 = vrcp.pop %v4398
    %v4421 = vmul.f32 1.0, %v4420
    %v4422 = vrcp.pop %v4399
    %v4423 = vmul.f32 1.0, %v4422
    %v4424 = vrcp.pop %v4400
    %v4425 = vmul.f32 1.0, %v4424
    %v4426 = vrcp.pop %v4401
    %v4427 = vmul.f32 1.0, %v4426
    %v4428 = vrcp.pop %v4402
    %v4429 = vmul.f32 1.0, %v4428
    %v4430 = vrcp.pop %v4403
    %v4431 = vmul.f32 1.0, %v4430
    %v4432 = vrcp.pop %v4404
    %v4433 = vmul.f32 1.0, %v4432
    %v4434 = vrcp.pop %v4405
    %v4435 = vmul.f32 1.0, %v4434
    %v4436 = vrcp.pop %v4406
    %v4437 = vmul.f32 1.0, %v4436
    %v4438 = vrcp.pop %v4407
    %v4439 = vmul.f32 1.0, %v4438
    %v4440 = vmul.f32 %v4328, %v4409
    %v4441 = vmul.f32 %v4329, %v4411
    %v4442 = vmul.f32 %v4330, %v4413
    %v4443 = vmul.f32 %v4331, %v4415
    %v4444 = vmul.f32 %v4332, %v4417
    %v4445 = vmul.f32 %v4333, %v4419
    %v4446 = vmul.f32 %v4334, %v4421
    %v4447 = vmul.f32 %v4335, %v4423
    %v4448 = vmul.f32 %v4336, %v4425
    %v4449 = vmul.f32 %v4337, %v4427
    %v4450 = vmul.f32 %v4338, %v4429
    %v4451 = vmul.f32 %v4339, %v4431
    %v4452 = vmul.f32 %v4340, %v4433
    %v4453 = vmul.f32 %v4341, %v4435
    %v4454 = vmul.f32 %v4342, %v4437
    %v4455 = vmul.f32 %v4343, %v4439
    %v4456 = vadd.f32 %v3356, %v4440
    %v4457 = vadd.f32 %v3357, %v4441
    %v4458 = vadd.f32 %v3358, %v4442
    %v4459 = vadd.f32 %v3359, %v4443
    %v4460 = vadd.f32 %v3360, %v4444
    %v4461 = vadd.f32 %v3361, %v4445
    %v4462 = vadd.f32 %v3362, %v4446
    %v4463 = vadd.f32 %v3363, %v4447
    %v4464 = vadd.f32 %v3364, %v4448
    %v4465 = vadd.f32 %v3365, %v4449
    %v4466 = vadd.f32 %v3366, %v4450
    %v4467 = vadd.f32 %v3367, %v4451
    %v4468 = vadd.f32 %v3368, %v4452
    %v4469 = vadd.f32 %v3369, %v4453
    %v4470 = vadd.f32 %v3370, %v4454
    %v4471 = vadd.f32 %v3371, %v4455
    %v4472 = vadd.f32 %v3906, %v625
    %v4473 = vadd.f32 %v3907, %v626
    %v4474 = vadd.f32 %v3908, %v627
    %v4475 = vadd.f32 %v3909, %v628
    %v4476 = vadd.f32 %v3910, %v629
    %v4477 = vadd.f32 %v3911, %v630
    %v4478 = vadd.f32 %v3912, %v631
    %v4479 = vadd.f32 %v3913, %v632
    %v4480 = vadd.f32 %v3914, %v633
    %v4481 = vadd.f32 %v3915, %v634
    %v4482 = vadd.f32 %v3916, %v635
    %v4483 = vadd.f32 %v3917, %v636
    %v4484 = vadd.f32 %v3918, %v637
    %v4485 = vadd.f32 %v3919, %v638
    %v4486 = vadd.f32 %v3920, %v639
    %v4487 = vadd.f32 %v3921, %v640
    %v4488 = vadd.f32 %v4456, %v1151
    %v4489 = vadd.f32 %v4457, %v1152
    %v4490 = vadd.f32 %v4458, %v1153
    %v4491 = vadd.f32 %v4459, %v1154
    %v4492 = vadd.f32 %v4460, %v1155
    %v4493 = vadd.f32 %v4461, %v1156
    %v4494 = vadd.f32 %v4462, %v1157
    %v4495 = vadd.f32 %v4463, %v1158
    %v4496 = vadd.f32 %v4464, %v1159
    %v4497 = vadd.f32 %v4465, %v1160
    %v4498 = vadd.f32 %v4466, %v1161
    %v4499 = vadd.f32 %v4467, %v1162
    %v4500 = vadd.f32 %v4468, %v1163
    %v4501 = vadd.f32 %v4469, %v1164
    %v4502 = vadd.f32 %v4470, %v1165
    %v4503 = vadd.f32 %v4471, %v1166
    %v4504 = vpack.c.bf16 %v4473, %v4472
    %v4505 = vpack.c.bf16 %v4475, %v4474
    %v4506 = vpack.c.bf16 %v4477, %v4476
    %v4507 = vpack.c.bf16 %v4479, %v4478
    %v4508 = vpack.c.bf16 %v4481, %v4480
    %v4509 = vpack.c.bf16 %v4483, %v4482
    %v4510 = vpack.c.bf16 %v4485, %v4484
    %v4511 = vpack.c.bf16 %v4487, %v4486
    %v4512 = vld [vmem:[%s9] sm:$0xf]
    %v4513 = vld [vmem:[%s9 + $0x4] sm:$0xf]
    %v4514 = vld [vmem:[%s9 + $0x8] sm:$0xf]
    %v4515 = vld [vmem:[%s9 + $0xc] sm:$0xf]
    %v4516 = vld [vmem:[%s9 + $0x10] sm:$0xf]
    %v4517 = vld [vmem:[%s9 + $0x14] sm:$0xf]
    %v4518 = vld [vmem:[%s9 + $0x18] sm:$0xf]
    %v4519 = vld [vmem:[%s9 + $0x1c] sm:$0xf]
    %v4520 = vld [vmem:[%s9 + $0x20] sm:$0xf]
    %v4521 = vld [vmem:[%s9 + $0x24] sm:$0xf]
    %v4522 = vld [vmem:[%s9 + $0x28] sm:$0xf]
    %v4523 = vld [vmem:[%s9 + $0x2c] sm:$0xf]
    %v4524 = vld [vmem:[%s9 + $0x30] sm:$0xf]
    %v4525 = vld [vmem:[%s9 + $0x34] sm:$0xf]
    %v4526 = vld [vmem:[%s9 + $0x38] sm:$0xf]
    %v4527 = vld [vmem:[%s9 + $0x3c] sm:$0xf]
    %v4528 = vld [vmem:[%s10] sm:$0x1]
    %v4530 = vlaneseq
    %v4531 = vshrl.u32 %v4530, 7
    %v4532 = vsub.s32 0, %v4531
    %v4533 = vrot.slane %v4528, %v4532
    %v4551 = vunpack.c.l.b16 %v4512
    %v4552 = vunpack.c.l.b16 %v4513
    %v4553 = vunpack.c.l.b16 %v4514
    %v4554 = vunpack.c.l.b16 %v4515
    %v4555 = vunpack.c.l.b16 %v4516
    %v4556 = vunpack.c.l.b16 %v4517
    %v4557 = vunpack.c.l.b16 %v4518
    %v4558 = vunpack.c.l.b16 %v4519
    %v4559 = vunpack.c.l.b16 %v4520
    %v4560 = vunpack.c.l.b16 %v4521
    %v4561 = vunpack.c.l.b16 %v4522
    %v4562 = vunpack.c.l.b16 %v4523
    %v4563 = vunpack.c.l.b16 %v4524
    %v4564 = vunpack.c.l.b16 %v4525
    %v4565 = vunpack.c.l.b16 %v4526
    %v4566 = vunpack.c.l.b16 %v4527
    %v4567 = vpack.c.b16 %v4552, %v4551
    %v4568 = vpack.c.b16 %v4554, %v4553
    %v4569 = vpack.c.b16 %v4556, %v4555
    %v4570 = vpack.c.b16 %v4558, %v4557
    %v4571 = vpack.c.b16 %v4560, %v4559
    %v4572 = vpack.c.b16 %v4562, %v4561
    %v4573 = vpack.c.b16 %v4564, %v4563
    %v4574 = vpack.c.b16 %v4566, %v4565
    %4583 = vmatprep.subr.bf16.mxu0 0
    %4584 = vmatpush1.bf16.msra.mxu0 %v4567
    %4585 = vmatprep.subr.bf16.mxu0 0
    %4586 = vmatpush1.bf16.msra.mxu0 %v4568
    %4587 = vmatprep.subr.bf16.mxu0 0
    %4588 = vmatpush1.bf16.msra.mxu0 %v4569
    %4589 = vmatprep.subr.bf16.mxu0 0
    %4590 = vmatpush1.bf16.msra.mxu0 %v4570
    %4591 = vmatprep.subr.bf16.mxu0 0
    %4592 = vmatpush1.bf16.msra.mxu0 %v4571
    %4593 = vmatprep.subr.bf16.mxu0 0
    %4594 = vmatpush1.bf16.msra.mxu0 %v4572
    %4595 = vmatprep.subr.bf16.mxu0 0
    %4596 = vmatpush1.bf16.msra.mxu0 %v4573
    %4597 = vmatprep.subr.bf16.mxu0 0
    %4598 = vmatpush1.bf16.msra.mxu0 %v4574
    %4599 = vmatprep.subr.bf16.mxu0 0
    %4600 = vmatpush1.bf16.msra.mxu0 0
    %4601 = vmatprep.subr.bf16.mxu0 0
    %4602 = vmatpush1.bf16.msra.mxu0 0
    %4603 = vmatprep.subr.bf16.mxu0 0
    %4604 = vmatpush1.bf16.msra.mxu0 0
    %4605 = vmatprep.subr.bf16.mxu0 0
    %4606 = vmatpush1.bf16.msra.mxu0 0
    %4607 = vmatprep.subr.bf16.mxu0 0
    %4608 = vmatpush1.bf16.msra.mxu0 0
    %4609 = vmatprep.subr.bf16.mxu0 0
    %4610 = vmatpush1.bf16.msra.mxu0 0
    %4611 = vmatprep.subr.bf16.mxu0 0
    %4612 = vmatpush1.bf16.msra.mxu0 0
    %4613 = vmatprep.subr.bf16.mxu0 0
    %4614 = vmatpush1.bf16.msra.mxu0 0
    %4615 = vmatprep.mubr.bf16.mxu0 0
    %4616 = vmatmul.mubr.bf16.gmra.mrb[0].mxu0 %v4504
    %v4617 = vpop.f32.mrb[0].mxu0
    %v4618 = vadd.f32 %v4533, %v4617
    %v4619 = vpop.f32.mrb[0].mxu0
    %v4620 = vpop.f32.mrb[0].mxu0
    %v4621 = vadd.f32 %v4533, %v4620
    %v4622 = vpop.f32.mrb[0].mxu0
    %4623 = vmatprep.mubr.bf16.mxu0 0
    %4624 = vmatmul.mubr.bf16.gmra.mrb[0].mxu0 %v4505
    %v4625 = vpop.f32.mrb[0].mxu0
    %v4626 = vadd.f32 %v4533, %v4625
    %v4627 = vpop.f32.mrb[0].mxu0
    %v4628 = vpop.f32.mrb[0].mxu0
    %v4629 = vadd.f32 %v4533, %v4628
    %v4630 = vpop.f32.mrb[0].mxu0
    %4631 = vmatprep.mubr.bf16.mxu0 0
    %4632 = vmatmul.mubr.bf16.gmra.mrb[0].mxu0 %v4506
    %v4633 = vpop.f32.mrb[0].mxu0
    %v4634 = vadd.f32 %v4533, %v4633
    %v4635 = vpop.f32.mrb[0].mxu0
    %v4636 = vpop.f32.mrb[0].mxu0
    %v4637 = vadd.f32 %v4533, %v4636
    %v4638 = vpop.f32.mrb[0].mxu0
    %4639 = vmatprep.mubr.bf16.mxu0 0
    %4640 = vmatmul.mubr.bf16.gmra.mrb[0].mxu0 %v4507
    %v4641 = vpop.f32.mrb[0].mxu0
    %v4642 = vadd.f32 %v4533, %v4641
    %v4643 = vpop.f32.mrb[0].mxu0
    %v4644 = vpop.f32.mrb[0].mxu0
    %v4645 = vadd.f32 %v4533, %v4644
    %v4646 = vpop.f32.mrb[0].mxu0
    %4647 = vmatprep.mubr.bf16.mxu0 0
    %4648 = vmatmul.mubr.bf16.gmra.mrb[0].mxu0 %v4508
    %v4649 = vpop.f32.mrb[0].mxu0
    %v4650 = vadd.f32 %v4533, %v4649
    %v4651 = vpop.f32.mrb[0].mxu0
    %v4652 = vpop.f32.mrb[0].mxu0
    %v4653 = vadd.f32 %v4533, %v4652
    %v4654 = vpop.f32.mrb[0].mxu0
    %4655 = vmatprep.mubr.bf16.mxu0 0
    %4656 = vmatmul.mubr.bf16.gmra.mrb[0].mxu0 %v4509
    %v4657 = vpop.f32.mrb[0].mxu0
    %v4658 = vadd.f32 %v4533, %v4657
    %v4659 = vpop.f32.mrb[0].mxu0
    %v4660 = vpop.f32.mrb[0].mxu0
    %v4661 = vadd.f32 %v4533, %v4660
    %v4662 = vpop.f32.mrb[0].mxu0
    %4663 = vmatprep.mubr.bf16.mxu0 0
    %4664 = vmatmul.mubr.bf16.gmra.mrb[0].mxu0 %v4510
    %v4665 = vpop.f32.mrb[0].mxu0
    %v4666 = vadd.f32 %v4533, %v4665
    %v4667 = vpop.f32.mrb[0].mxu0
    %v4668 = vpop.f32.mrb[0].mxu0
    %v4669 = vadd.f32 %v4533, %v4668
    %v4670 = vpop.f32.mrb[0].mxu0
    %4671 = vmatprep.mubr.bf16.mxu0 0
    %4672 = vmatmul.mubr.bf16.gmra.mrb[0].mxu0 %v4511
    %v4673 = vpop.f32.mrb[0].mxu0
    %v4674 = vadd.f32 %v4533, %v4673
    %v4675 = vpop.f32.mrb[0].mxu0
    %v4676 = vpop.f32.mrb[0].mxu0
    %v4677 = vadd.f32 %v4533, %v4676
    %v4678 = vpop.f32.mrb[0].mxu0
    %4679 = vdwg.mxu0
    %4680 = vst [vmem:[#allocation5] sm:$0xff] %v4618
    %4681 = vst [vmem:[#allocation5 + $0x8] sm:$0xff] %v4621
    %4682 = vst [vmem:[#allocation5 + $0x10] sm:$0xff] %v4626
    %4683 = vst [vmem:[#allocation5 + $0x18] sm:$0xff] %v4629
    %4684 = vst [vmem:[#allocation5 + $0x20] sm:$0xff] %v4634
    %4685 = vst [vmem:[#allocation5 + $0x28] sm:$0xff] %v4637
    %4686 = vst [vmem:[#allocation5 + $0x30] sm:$0xff] %v4642
    %4687 = vst [vmem:[#allocation5 + $0x38] sm:$0xff] %v4645
    %4688 = vst [vmem:[#allocation5 + $0x40] sm:$0xff] %v4650
    %4689 = vst [vmem:[#allocation5 + $0x48] sm:$0xff] %v4653
    %4690 = vst [vmem:[#allocation5 + $0x50] sm:$0xff] %v4658
    %4691 = vst [vmem:[#allocation5 + $0x58] sm:$0xff] %v4661
    %4692 = vst [vmem:[#allocation5 + $0x60] sm:$0xff] %v4666
    %4693 = vst [vmem:[#allocation5 + $0x68] sm:$0xff] %v4669
    %4694 = vst [vmem:[#allocation5 + $0x70] sm:$0xff] %v4674
    %4695 = vst [vmem:[#allocation5 + $0x78] sm:$0xff] %v4677
    %v4696 = vpack.c.bf16 %v4489, %v4488
    %v4697 = vpack.c.bf16 %v4491, %v4490
    %v4698 = vpack.c.bf16 %v4493, %v4492
    %v4699 = vpack.c.bf16 %v4495, %v4494
    %v4700 = vpack.c.bf16 %v4497, %v4496
    %v4701 = vpack.c.bf16 %v4499, %v4498
    %v4702 = vpack.c.bf16 %v4501, %v4500
    %v4703 = vpack.c.bf16 %v4503, %v4502
    %s4704 = scalar_lea.vmem %s9, 64
    %v4705 = vld [vmem:[%s4704] sm:$0xf]
    %v4706 = vld [vmem:[%s4704 + $0x4] sm:$0xf]
    %v4707 = vld [vmem:[%s4704 + $0x8] sm:$0xf]
    %v4708 = vld [vmem:[%s4704 + $0xc] sm:$0xf]
    %v4709 = vld [vmem:[%s4704 + $0x10] sm:$0xf]
    %v4710 = vld [vmem:[%s4704 + $0x14] sm:$0xf]
    %v4711 = vld [vmem:[%s4704 + $0x18] sm:$0xf]
    %v4712 = vld [vmem:[%s4704 + $0x1c] sm:$0xf]
    %v4713 = vld [vmem:[%s4704 + $0x20] sm:$0xf]
    %v4714 = vld [vmem:[%s4704 + $0x24] sm:$0xf]
    %v4715 = vld [vmem:[%s4704 + $0x28] sm:$0xf]
    %v4716 = vld [vmem:[%s4704 + $0x2c] sm:$0xf]
    %v4717 = vld [vmem:[%s4704 + $0x30] sm:$0xf]
    %v4718 = vld [vmem:[%s4704 + $0x34] sm:$0xf]
    %v4719 = vld [vmem:[%s4704 + $0x38] sm:$0xf]
    %v4720 = vld [vmem:[%s4704 + $0x3c] sm:$0xf]
    %s4721 = scalar_lea.vmem %s10, 1
    %v4722 = vld [vmem:[%s4721] sm:$0x1]
    %v4724 = vlaneseq
    %v4725 = vshrl.u32 %v4724, 7
    %v4726 = vsub.s32 0, %v4725
    %v4727 = vrot.slane %v4722, %v4726
    %v4745 = vunpack.c.l.b16 %v4705
    %v4746 = vunpack.c.l.b16 %v4706
    %v4747 = vunpack.c.l.b16 %v4707
    %v4748 = vunpack.c.l.b16 %v4708
    %v4749 = vunpack.c.l.b16 %v4709
    %v4750 = vunpack.c.l.b16 %v4710
    %v4751 = vunpack.c.l.b16 %v4711
    %v4752 = vunpack.c.l.b16 %v4712
    %v4753 = vunpack.c.l.b16 %v4713
    %v4754 = vunpack.c.l.b16 %v4714
    %v4755 = vunpack.c.l.b16 %v4715
    %v4756 = vunpack.c.l.b16 %v4716
    %v4757 = vunpack.c.l.b16 %v4717
    %v4758 = vunpack.c.l.b16 %v4718
    %v4759 = vunpack.c.l.b16 %v4719
    %v4760 = vunpack.c.l.b16 %v4720
    %v4761 = vpack.c.b16 %v4746, %v4745
    %v4762 = vpack.c.b16 %v4748, %v4747
    %v4763 = vpack.c.b16 %v4750, %v4749
    %v4764 = vpack.c.b16 %v4752, %v4751
    %v4765 = vpack.c.b16 %v4754, %v4753
    %v4766 = vpack.c.b16 %v4756, %v4755
    %v4767 = vpack.c.b16 %v4758, %v4757
    %v4768 = vpack.c.b16 %v4760, %v4759
    %4777 = vmatprep.subr.bf16.mxu0 0
    %4778 = vmatpush1.bf16.msra.mxu0 %v4761
    %4779 = vmatprep.subr.bf16.mxu0 0
    %4780 = vmatpush1.bf16.msra.mxu0 %v4762
    %4781 = vmatprep.subr.bf16.mxu0 0
    %4782 = vmatpush1.bf16.msra.mxu0 %v4763
    %4783 = vmatprep.subr.bf16.mxu0 0
    %4784 = vmatpush1.bf16.msra.mxu0 %v4764
    %4785 = vmatprep.subr.bf16.mxu0 0
    %4786 = vmatpush1.bf16.msra.mxu0 %v4765
    %4787 = vmatprep.subr.bf16.mxu0 0
    %4788 = vmatpush1.bf16.msra.mxu0 %v4766
    %4789 = vmatprep.subr.bf16.mxu0 0
    %4790 = vmatpush1.bf16.msra.mxu0 %v4767
    %4791 = vmatprep.subr.bf16.mxu0 0
    %4792 = vmatpush1.bf16.msra.mxu0 %v4768
    %4793 = vmatprep.subr.bf16.mxu0 0
    %4794 = vmatpush1.bf16.msra.mxu0 0
    %4795 = vmatprep.subr.bf16.mxu0 0
    %4796 = vmatpush1.bf16.msra.mxu0 0
    %4797 = vmatprep.subr.bf16.mxu0 0
    %4798 = vmatpush1.bf16.msra.mxu0 0
    %4799 = vmatprep.subr.bf16.mxu0 0
    %4800 = vmatpush1.bf16.msra.mxu0 0
    %4801 = vmatprep.subr.bf16.mxu0 0
    %4802 = vmatpush1.bf16.msra.mxu0 0
    %4803 = vmatprep.subr.bf16.mxu0 0
    %4804 = vmatpush1.bf16.msra.mxu0 0
    %4805 = vmatprep.subr.bf16.mxu0 0
    %4806 = vmatpush1.bf16.msra.mxu0 0
    %4807 = vmatprep.subr.bf16.mxu0 0
    %4808 = vmatpush1.bf16.msra.mxu0 0
    %4809 = vmatprep.mubr.bf16.mxu0 0
    %4810 = vmatmul.mubr.bf16.gmra.mrb[0].mxu0 %v4696
    %v4811 = vpop.f32.mrb[0].mxu0
    %v4812 = vadd.f32 %v4727, %v4811
    %v4813 = vpop.f32.mrb[0].mxu0
    %v4814 = vpop.f32.mrb[0].mxu0
    %v4815 = vadd.f32 %v4727, %v4814
    %v4816 = vpop.f32.mrb[0].mxu0
    %4817 = vmatprep.mubr.bf16.mxu0 0
    %4818 = vmatmul.mubr.bf16.gmra.mrb[0].mxu0 %v4697
    %v4819 = vpop.f32.mrb[0].mxu0
    %v4820 = vadd.f32 %v4727, %v4819
    %v4821 = vpop.f32.mrb[0].mxu0
    %v4822 = vpop.f32.mrb[0].mxu0
    %v4823 = vadd.f32 %v4727, %v4822
    %v4824 = vpop.f32.mrb[0].mxu0
    %4825 = vmatprep.mubr.bf16.mxu0 0
    %4826 = vmatmul.mubr.bf16.gmra.mrb[0].mxu0 %v4698
    %v4827 = vpop.f32.mrb[0].mxu0
    %v4828 = vadd.f32 %v4727, %v4827
    %v4829 = vpop.f32.mrb[0].mxu0
    %v4830 = vpop.f32.mrb[0].mxu0
    %v4831 = vadd.f32 %v4727, %v4830
    %v4832 = vpop.f32.mrb[0].mxu0
    %4833 = vmatprep.mubr.bf16.mxu0 0
    %4834 = vmatmul.mubr.bf16.gmra.mrb[0].mxu0 %v4699
    %v4835 = vpop.f32.mrb[0].mxu0
    %v4836 = vadd.f32 %v4727, %v4835
    %v4837 = vpop.f32.mrb[0].mxu0
    %v4838 = vpop.f32.mrb[0].mxu0
    %v4839 = vadd.f32 %v4727, %v4838
    %v4840 = vpop.f32.mrb[0].mxu0
    %4841 = vmatprep.mubr.bf16.mxu0 0
    %4842 = vmatmul.mubr.bf16.gmra.mrb[0].mxu0 %v4700
    %v4843 = vpop.f32.mrb[0].mxu0
    %v4844 = vadd.f32 %v4727, %v4843
    %v4845 = vpop.f32.mrb[0].mxu0
    %v4846 = vpop.f32.mrb[0].mxu0
    %v4847 = vadd.f32 %v4727, %v4846
    %v4848 = vpop.f32.mrb[0].mxu0
    %4849 = vmatprep.mubr.bf16.mxu0 0
    %4850 = vmatmul.mubr.bf16.gmra.mrb[0].mxu0 %v4701
    %v4851 = vpop.f32.mrb[0].mxu0
    %v4852 = vadd.f32 %v4727, %v4851
    %v4853 = vpop.f32.mrb[0].mxu0
    %v4854 = vpop.f32.mrb[0].mxu0
    %v4855 = vadd.f32 %v4727, %v4854
    %v4856 = vpop.f32.mrb[0].mxu0
    %4857 = vmatprep.mubr.bf16.mxu0 0
    %4858 = vmatmul.mubr.bf16.gmra.mrb[0].mxu0 %v4702
    %v4859 = vpop.f32.mrb[0].mxu0
    %v4860 = vadd.f32 %v4727, %v4859
    %v4861 = vpop.f32.mrb[0].mxu0
    %v4862 = vpop.f32.mrb[0].mxu0
    %v4863 = vadd.f32 %v4727, %v4862
    %v4864 = vpop.f32.mrb[0].mxu0
    %4865 = vmatprep.mubr.bf16.mxu0 0
    %4866 = vmatmul.mubr.bf16.gmra.mrb[0].mxu0 %v4703
    %v4867 = vpop.f32.mrb[0].mxu0
    %v4868 = vadd.f32 %v4727, %v4867
    %v4869 = vpop.f32.mrb[0].mxu0
    %v4870 = vpop.f32.mrb[0].mxu0
    %v4871 = vadd.f32 %v4727, %v4870
    %v4872 = vpop.f32.mrb[0].mxu0
    %4873 = vdwg.mxu0
    %s4874 = scalar_lea.vmem [#allocation5], 128
    %4875 = vst [vmem:[%s4874] sm:$0xff] %v4812
    %4876 = vst [vmem:[%s4874 + $0x8] sm:$0xff] %v4815
    %4877 = vst [vmem:[%s4874 + $0x10] sm:$0xff] %v4820
    %4878 = vst [vmem:[%s4874 + $0x18] sm:$0xff] %v4823
    %4879 = vst [vmem:[%s4874 + $0x20] sm:$0xff] %v4828
    %4880 = vst [vmem:[%s4874 + $0x28] sm:$0xff] %v4831
    %4881 = vst [vmem:[%s4874 + $0x30] sm:$0xff] %v4836
    %4882 = vst [vmem:[%s4874 + $0x38] sm:$0xff] %v4839
    %4883 = vst [vmem:[%s4874 + $0x40] sm:$0xff] %v4844
    %4884 = vst [vmem:[%s4874 + $0x48] sm:$0xff] %v4847
    %4885 = vst [vmem:[%s4874 + $0x50] sm:$0xff] %v4852
    %4886 = vst [vmem:[%s4874 + $0x58] sm:$0xff] %v4855
    %4887 = vst [vmem:[%s4874 + $0x60] sm:$0xff] %v4860
    %4888 = vst [vmem:[%s4874 + $0x68] sm:$0xff] %v4863
    %4889 = vst [vmem:[%s4874 + $0x70] sm:$0xff] %v4868
    %4890 = vst [vmem:[%s4874 + $0x78] sm:$0xff] %v4871
    // Predicated region
    $region50: #{tpu_custom_call.1} parent=1 // pred_check
      _
    $region51: #{tpu_custom_call.1} parent=1 // pred_check_branch
      %4892 = sbr.rel (0) target = $region53
    $region52: #{tpu_custom_call.1} parent=1 // pred_region
      %s4894 = ssub.s32 4096, 4096
      %4895 = vsyncadd [#allocation4], %s4894
      %s4896 = sshll.u32 [#allocation5], 4
      %s4897 = int_to_ptr.vmem [resolvable:$true] %s4896
      %4902 = dma.vmem_to_hbm [thread:$0]  %s4897, 4096, %s11, [#allocation4], 128, 128, 8
    $region53: #{tpu_custom_call.1} parent=1 // pred_fallthru
      _
    // Predicated region
    $region54: #{tpu_custom_call.1} parent=1 // pred_check
      _
    $region55: #{tpu_custom_call.1} parent=1 // pred_check_branch
      %4904 = sbr.rel (0) target = $region57
    $region56: #{tpu_custom_call.1} parent=1 // pred_region
      %4905 = dma.done [#allocation4], 4096
    $region57: #{tpu_custom_call.1} parent=1 // pred_fallthru
      _
    %4906 = vsyncpa [#allocation3], 1
    %4907 = vsyncpa [#allocation4], 1

</llo_original>
